<compile_context>
chip_gen: v7x
topology: tpu7x:2x2x1
jax: 0.10.0
libtpu: 0.0.40
codegen_flags: <defaults>
</compile_context>

<pallas_src>
import functools

import jax
import jax.numpy as jnp
from jax import lax
from jax.experimental import pallas as pl
from jax.experimental.pallas import tpu as pltpu

KS = 3  # 3x3 conv


def _round_up(a, m):
    return (a + m - 1) // m * m


def _cdiv(a, b):
    return -(-a // b)


def _choose_tile(HW, max_tile=2048):
    """Lane-multiple pixel tile; >=2 tiles whenever possible (megacore)."""
    hw128 = _round_up(HW, 128)
    n = max(_cdiv(hw128, max_tile), 2 if hw128 >= 256 else 1)
    return _round_up(_cdiv(hw128, n), 128)


def _convgru_kernel(h_ref, x_ref, wzr_ref, wqx_ref, wqh_ref, bzr_ref, bq_ref,
                    out_ref, patches_ref, rh_ref, *, W, Ch, Cx, T, e):
    """One (batch, pixel-tile) step of the fused ConvGRU.

    h_ref: (Ch, T + 4e) f32   input window (tile + double halo), e = W+1
    x_ref: (Cx, T + 4e) bf16
    out_ref: (Ch, T) f32      tile interior
    patches_ref: (9*(Ch+Cx), T + 2e) bf16 im2col scratch
    rh_ref: (Ch, T + 2e) f32  r*h over tile + single halo
    """
    Text = T + 2 * e            # extended width over which z/r are computed
    NH = KS * KS * Ch           # number of h-tap (later r*h-tap) rows

    # ---- per-tile column masks (dx wrap at row boundaries) -----------------
    t0 = pl.program_id(1) * T
    moff = _round_up(e, W)      # multiple of W, >= e -> keeps mod args >= 0
    iota_e = lax.broadcasted_iota(jnp.int32, (1, Text), 1)
    col_e = (iota_e + (t0 + (moff - e))) % W          # col of extended pixel
    m1 = (col_e >= 1, None, col_e <= W - 2)           # stage-1 masks, dx=0,1,2
    iota_i = lax.broadcasted_iota(jnp.int32, (1, T), 1)
    col_i = (iota_i + t0) % W                         # col of interior pixel
    m2 = (col_i >= 1, None, col_i <= W - 2)           # stage-2 masks

    # ---- stage 1: im2col of h and x (per-tap ref reads, no full image val) --
    for dy in range(KS):
        for dx in range(KS):
            t = dy * KS + dx
            s = dy * W + dx
            tap_h = h_ref[:, s:s + Text]
            tap_x = x_ref[:, s:s + Text]
            if m1[dx] is not None:
                tap_h = jnp.where(m1[dx], tap_h, jnp.zeros((), tap_h.dtype))
                tap_x = jnp.where(m1[dx], tap_x, jnp.zeros((), tap_x.dtype))
            patches_ref[t * Ch:(t + 1) * Ch, :] = tap_h.astype(jnp.bfloat16)
            patches_ref[NH + t * Cx:NH + (t + 1) * Cx, :] = tap_x

    def sig(v):                 # sigmoid via tanh: single EUP op
        return 0.5 * (jnp.tanh(0.5 * v) + 1.0)

    # z|r over the extended width (r is needed in the halo for stage 2).
    pre_zr = jnp.dot(wzr_ref[...], patches_ref[...],
                     preferred_element_type=jnp.float32) + bzr_ref[...]
    z = sig(pre_zr[:Ch, e:e + T])                     # interior only
    r = sig(pre_zr[Ch:, :])                           # extended

    # x-path of the candidate state (x-tap rows only; no zero weight block).
    q_x = jnp.dot(wqx_ref[...], patches_ref[NH:, :],
                  preferred_element_type=jnp.float32)[:, e:e + T] + bq_ref[...]

    # ---- stage 2: q = tanh(Wq_h * (r*h) + Wq_x * x + b_q) -------------------
    rh_ref[...] = r * h_ref[:, e:e + Text]            # halo is computed, not padded
    for dy in range(KS):
        for dx in range(KS):
            t = dy * KS + dx
            s = dy * W + dx
            tap = rh_ref[:, s:s + T]
            if m2[dx] is not None:
                tap = jnp.where(m2[dx], tap, jnp.zeros((), tap.dtype))
            patches_ref[t * Ch:(t + 1) * Ch, :T] = tap.astype(jnp.bfloat16)
    q_h = jnp.dot(wqh_ref[...], patches_ref[:NH, :T],
                  preferred_element_type=jnp.float32)
    q = jnp.tanh(q_h + q_x)

    # ---- GRU state update, lane-dense (Ch, T) store -------------------------
    h = h_ref[:, 2 * e:2 * e + T]
    out_ref[...] = (1.0 - z) * h + z * q


def convgru_pallas(h_nchw, x_nchw, torch_params, *, max_tile=2048):
    """ConvGRU forward.  h: [N, Ch, H, W], x: [N, Cx, H, W] -> [N, Ch, H, W].

    torch_params = (wz, bz, wr, br, wq, bq) in PyTorch Conv2d layout:
    weights (Cout, Ch+Cx, 3, 3) and biases (Cout,).
    """
    wz, bz, wr, br, wq, bq = torch_params
    N, Ch, H, W = h_nchw.shape
    Cx = x_nchw.shape[1]
    HW = H * W
    e = W + 1                                   # flattened-conv halo

    T = _choose_tile(HW, max_tile)              # pixel tile (multiple of 128)
    n_tiles = _cdiv(HW, T)
    HW_pad = n_tiles * T                        # lane-dense padded pixel count
    Wt = T + 4 * e                              # input window (double halo)
    Text = T + 2 * e
    K1 = KS * KS * (Ch + Cx)
    NH = KS * KS * Ch

    # NCHW -> (N, C, H*W), zero padding of the pixel axis (glue only).
    h_flat = h_nchw.reshape(N, Ch, HW).astype(jnp.float32)
    x_flat = x_nchw.reshape(N, Cx, HW).astype(jnp.bfloat16)   # bf16 DMA for x
    h_pad = jnp.pad(h_flat, ((0, 0), (0, 0), (2 * e, HW_pad - HW + 2 * e)))
    x_pad = jnp.pad(x_flat, ((0, 0), (0, 0), (2 * e, HW_pad - HW + 2 * e)))

    # Overlapping (tile + halo) windows so BlockSpec pipelining stays trivial.
    # TODO(synk): at very large n_tiles switch to in-kernel manual halo DMA.
    def windows(p):
        return jnp.stack([lax.slice_in_dim(p, t * T, t * T + Wt, axis=2)
                          for t in range(n_tiles)], axis=1)

    h_tiles = windows(h_pad)                    # (N, n_tiles, Ch, Wt) f32
    x_tiles = windows(x_pad)                    # (N, n_tiles, Cx, Wt) bf16

    def pack(w_oihw, lo, hi):
        # (Cout, Cin, ky, kx) -> (Cout, 9*cin_slice); columns ordered
        # (ky, kx, cin) to match the patch-matrix row layout.
        w = w_oihw[:, lo:hi]
        return jnp.transpose(w, (0, 2, 3, 1)).reshape(w.shape[0], -1)

    wz_h, wz_x = pack(wz, 0, Ch), pack(wz, Ch, Ch + Cx)
    wr_h, wr_x = pack(wr, 0, Ch), pack(wr, Ch, Ch + Cx)
    wq_h, wq_x = pack(wq, 0, Ch), pack(wq, Ch, Ch + Cx)

    wzr = jnp.concatenate([
        jnp.concatenate([wz_h, wz_x], axis=1),
        jnp.concatenate([wr_h, wr_x], axis=1),
    ], axis=0).astype(jnp.bfloat16)             # (2Ch, 9*(Ch+Cx))
    wqx = wq_x.astype(jnp.bfloat16)             # (Ch, 9*Cx)
    wqh = wq_h.astype(jnp.bfloat16)             # (Ch, 9*Ch)
    bzr = jnp.concatenate([bz, br]).reshape(2 * Ch, 1).astype(jnp.float32)
    bqv = bq.reshape(Ch, 1).astype(jnp.float32)

    kernel = functools.partial(_convgru_kernel, W=W, Ch=Ch, Cx=Cx, T=T, e=e)

    # Explicit scoped-VMEM budget from the actual buffers (+ headroom).
    bytes_blocks = 2 * (Ch * Wt * 4 + Cx * Wt * 2 + Ch * T * 4)
    bytes_weights = 2 * ((wzr.size + wqx.size + wqh.size) * 2
                         + (bzr.size + bqv.size) * 4)
    bytes_scratch = K1 * Text * 2 + Ch * Text * 4
    bytes_tmp = (4 * Ch) * Text * 4 + K1 * Text * 2 + NH * T * 2 + 4 * Ch * T * 4
    vmem_limit = int(1.3 * (bytes_blocks + bytes_weights + bytes_scratch
                            + bytes_tmp)) + (4 << 20)
    vmem_limit = max(min(vmem_limit, 64 << 20), 8 << 20)

    flops = 2 * N * n_tiles * (2 * Ch * K1 * Text
                               + Ch * (KS * KS * Cx) * Text + Ch * NH * T)
    cost = pl.CostEstimate(
        flops=flops,
        transcendentals=N * n_tiles * Ch * (Text + 2 * T),
        bytes_accessed=int(h_tiles.size * 4 + x_tiles.size * 2
                           + N * Ch * HW_pad * 4
                           + (wzr.size + wqx.size + wqh.size) * 2
                           + (bzr.size + bqv.size) * 4))

    out_flat = pl.pallas_call(
        kernel,
        out_shape=jax.ShapeDtypeStruct((N, Ch, HW_pad), jnp.float32),
        grid=(N, n_tiles),
        in_specs=[
            pl.BlockSpec((None, None, Ch, Wt), lambda b, t: (b, t, 0, 0)),
            pl.BlockSpec((None, None, Cx, Wt), lambda b, t: (b, t, 0, 0)),
            pl.BlockSpec(wzr.shape, lambda b, t: (0, 0)),   # VMEM-resident
            pl.BlockSpec(wqx.shape, lambda b, t: (0, 0)),
            pl.BlockSpec(wqh.shape, lambda b, t: (0, 0)),
            pl.BlockSpec(bzr.shape, lambda b, t: (0, 0)),
            pl.BlockSpec(bqv.shape, lambda b, t: (0, 0)),
        ],
        out_specs=pl.BlockSpec((None, Ch, T), lambda b, t: (b, 0, t)),
        scratch_shapes=[pltpu.VMEM((K1, Text), jnp.bfloat16),
                        pltpu.VMEM((Ch, Text), jnp.float32)],
        compiler_params=pltpu.CompilerParams(
            dimension_semantics=("parallel", "parallel"),
            vmem_limit_bytes=vmem_limit),
        cost_estimate=cost,
    )(h_tiles, x_tiles, wzr, wqx, wqh, bzr, bqv)

    # (N, Ch, HW_pad) -> crop padding -> NCHW (pure reshape; already channel-major).
    return out_flat[:, :, :HW].reshape(N, Ch, H, W)


def convgru_ref(h, x, params):
    """Pure-JAX reference mirroring the PyTorch module (NCHW, f32 HIGHEST)."""
    wz, bz, wr, br, wq, bq = params

    def conv(inp, w, b):
        out = lax.conv_general_dilated(
            inp, w, (1, 1), "SAME",
            dimension_numbers=("NCHW", "OIHW", "NCHW"),
            precision=lax.Precision.HIGHEST)
        return out + b[None, :, None, None]

    hx = jnp.concatenate([h, x], axis=1)
    z = jax.nn.sigmoid(conv(hx, wz, bz))
    r = jax.nn.sigmoid(conv(hx, wr, br))
    q = jnp.tanh(conv(jnp.concatenate([r * h, x], axis=1), wq, bq))
    return (1.0 - z) * h + z * q


def make_params(key, hidden_dim, input_dim):
    """Deterministic synthetic parameters (PyTorch OIHW shapes)."""
    cin = hidden_dim + input_dim
    keys = jax.random.split(key, 6)
    scale = 0.1
    wz = jax.random.normal(keys[0], (hidden_dim, cin, KS, KS), jnp.float32) * scale
    wr = jax.random.normal(keys[1], (hidden_dim, cin, KS, KS), jnp.float32) * scale
    wq = jax.random.normal(keys[2], (hidden_dim, cin, KS, KS), jnp.float32) * scale
    bz = jax.random.normal(keys[3], (hidden_dim,), jnp.float32) * scale
    br = jax.random.normal(keys[4], (hidden_dim,), jnp.float32) * scale
    bq = jax.random.normal(keys[5], (hidden_dim,), jnp.float32) * scale
    return (wz, bz, wr, br, wq, bq)


if __name__ == "__main__":
    # small shapes consistent with the module's forward; HW=256 -> 2 pixel tiles
    # of 128 lanes each, so the halo/tiling path is exercised by the test.
    N, HIDDEN, INPUT, H, W = 2, 32, 32, 16, 16

    key = jax.random.PRNGKey(0)
    k_h, k_x, k_p = jax.random.split(key, 3)

    h0 = jnp.tanh(jax.random.normal(k_h, (N, HIDDEN, H, W), jnp.float32))
    x0 = jax.random.normal(k_x, (N, INPUT, H, W), jnp.float32)
    params = make_params(k_p, HIDDEN, INPUT)

    out = jax.block_until_ready(convgru_pallas(h0, x0, params))
    ref = jax.block_until_ready(convgru_ref(h0, x0, params))

    assert out.shape == (N, HIDDEN, H, W)
    max_err = float(jnp.max(jnp.abs(out - ref)))
    assert jnp.allclose(out, ref, atol=2e-2, rtol=2e-2), max_err

    print("KERNEL_OK")
</pallas_src>

<mosaic_0001>
module attributes {stable_mosaic.version = 11 : i64} {
  func.func @_convgru_kernel(%arg0: i32, %arg1: i32, %arg2: memref<1x1x32x196xf32, #tpu.memory_space<vmem>>, %arg3: memref<1x1x32x196xbf16, #tpu.memory_space<vmem>>, %arg4: memref<64x576xbf16, #tpu.memory_space<vmem>>, %arg5: memref<32x288xbf16, #tpu.memory_space<vmem>>, %arg6: memref<32x288xbf16, #tpu.memory_space<vmem>>, %arg7: memref<64x1xf32, #tpu.memory_space<vmem>>, %arg8: memref<32x1xf32, #tpu.memory_space<vmem>>, %arg9: memref<1x32x128xf32, #tpu.memory_space<vmem>>, %arg10: memref<576x162xbf16, #tpu.memory_space<vmem>>, %arg11: memref<32x162xf32, #tpu.memory_space<vmem>>) attributes {dimension_semantics = [#tpu.dimension_semantics<parallel>, #tpu.dimension_semantics<parallel>], iteration_bounds = array<i64: 2, 2>, scalar_prefetch = 0 : i64, scratch_operands = 2 : i64, tpu.core_type = #tpu.core_type<tc>, window_params = [{transform_indices = @transform_0, window_bounds = array<i64: 1, 1, 32, 196>}, {transform_indices = @transform_1, window_bounds = array<i64: 1, 1, 32, 196>}, {pipeline_mode = #tpu.pipeline_mode<synchronous>, transform_indices = @transform_2, window_bounds = array<i64: 64, 576>}, {pipeline_mode = #tpu.pipeline_mode<synchronous>, transform_indices = @transform_3, window_bounds = array<i64: 32, 288>}, {pipeline_mode = #tpu.pipeline_mode<synchronous>, transform_indices = @transform_4, window_bounds = array<i64: 32, 288>}, {pipeline_mode = #tpu.pipeline_mode<synchronous>, transform_indices = @transform_5, window_bounds = array<i64: 64, 1>}, {pipeline_mode = #tpu.pipeline_mode<synchronous>, transform_indices = @transform_6, window_bounds = array<i64: 32, 1>}, {transform_indices = @transform_7, window_bounds = array<i64: 1, 32, 128>}]} {
    %c128_i32 = arith.constant 128 : i32
    %0 = arith.muli %arg1, %c128_i32 : i32
    %1 = tpu.iota {dimensions = array<i32: 1>} : vector<1x162xi32>
    %c15_i32 = arith.constant 15 : i32
    %2 = arith.addi %0, %c15_i32 : i32
    %3 = vector.broadcast %2 : i32 to vector<1x162xi32>
    %4 = arith.addi %1, %3 : vector<1x162xi32>
    %c16_i32 = arith.constant 16 : i32
    %c0_i32 = arith.constant 0 : i32
    %5 = arith.cmpi eq, %c16_i32, %c0_i32 : i32
    %c1_i32 = arith.constant 1 : i32
    %6 = arith.select %5, %c1_i32, %c16_i32 : i32
    %7 = vector.broadcast %6 : i32 to vector<1x162xi32>
    %8 = arith.remsi %4, %7 : vector<1x162xi32>
    %c0_i32_0 = arith.constant 0 : i32
    %9 = vector.broadcast %c0_i32_0 : i32 to vector<1x162xi32>
    %10 = arith.cmpi ne, %8, %9 : vector<1x162xi32>
    %c0_i32_1 = arith.constant 0 : i32
    %11 = vector.broadcast %c0_i32_1 : i32 to vector<1x162xi32>
    %12 = arith.cmpi slt, %8, %11 : vector<1x162xi32>
    %c0_i32_2 = arith.constant 0 : i32
    %13 = arith.cmpi slt, %6, %c0_i32_2 : i32
    %14 = vector.broadcast %13 : i1 to vector<1x162xi1>
    %15 = vector.broadcast %14 : vector<1x162xi1> to vector<1x162xi1>
    %16 = arith.xori %12, %15 : vector<1x162xi1>
    %17 = arith.andi %16, %10 : vector<1x162xi1>
    %18 = vector.broadcast %6 : i32 to vector<1x162xi32>
    %19 = arith.addi %8, %18 : vector<1x162xi32>
    %20 = arith.select %17, %19, %8 : vector<1x162xi1>, vector<1x162xi32>
    %c1_i32_3 = arith.constant 1 : i32
    %21 = vector.broadcast %c1_i32_3 : i32 to vector<1x162xi32>
    %22 = arith.cmpi sge, %20, %21 : vector<1x162xi32>
    %c14_i32 = arith.constant 14 : i32
    %23 = vector.broadcast %c14_i32 : i32 to vector<1x162xi32>
    %24 = arith.cmpi sle, %20, %23 : vector<1x162xi32>
    %25 = tpu.iota {dimensions = array<i32: 1>} : vector<1x128xi32>
    %26 = vector.broadcast %0 : i32 to vector<1x128xi32>
    %27 = arith.addi %25, %26 : vector<1x128xi32>
    %c16_i32_4 = arith.constant 16 : i32
    %c0_i32_5 = arith.constant 0 : i32
    %28 = arith.cmpi eq, %c16_i32_4, %c0_i32_5 : i32
    %c1_i32_6 = arith.constant 1 : i32
    %29 = arith.select %28, %c1_i32_6, %c16_i32_4 : i32
    %30 = vector.broadcast %29 : i32 to vector<1x128xi32>
    %31 = arith.remsi %27, %30 : vector<1x128xi32>
    %c0_i32_7 = arith.constant 0 : i32
    %32 = vector.broadcast %c0_i32_7 : i32 to vector<1x128xi32>
    %33 = arith.cmpi ne, %31, %32 : vector<1x128xi32>
    %c0_i32_8 = arith.constant 0 : i32
    %34 = vector.broadcast %c0_i32_8 : i32 to vector<1x128xi32>
    %35 = arith.cmpi slt, %31, %34 : vector<1x128xi32>
    %c0_i32_9 = arith.constant 0 : i32
    %36 = arith.cmpi slt, %29, %c0_i32_9 : i32
    %37 = vector.broadcast %36 : i1 to vector<1x128xi1>
    %38 = vector.broadcast %37 : vector<1x128xi1> to vector<1x128xi1>
    %39 = arith.xori %35, %38 : vector<1x128xi1>
    %40 = arith.andi %39, %33 : vector<1x128xi1>
    %41 = vector.broadcast %29 : i32 to vector<1x128xi32>
    %42 = arith.addi %31, %41 : vector<1x128xi32>
    %43 = arith.select %40, %42, %31 : vector<1x128xi1>, vector<1x128xi32>
    %c1_i32_10 = arith.constant 1 : i32
    %44 = vector.broadcast %c1_i32_10 : i32 to vector<1x128xi32>
    %45 = arith.cmpi sge, %43, %44 : vector<1x128xi32>
    %c14_i32_11 = arith.constant 14 : i32
    %46 = vector.broadcast %c14_i32_11 : i32 to vector<1x128xi32>
    %47 = arith.cmpi sle, %43, %46 : vector<1x128xi32>
    %c0 = arith.constant 0 : index
    %c0_12 = arith.constant 0 : index
    %c0_13 = arith.constant 0 : index
    %c0_14 = arith.constant 0 : index
    %48 = vector.load %arg2[%c0, %c0_12, %c0_13, %c0_14] : memref<1x1x32x196xf32, #tpu.memory_space<vmem>>, vector<1x1x32x162xf32>
    %49 = vector.shape_cast %48 : vector<1x1x32x162xf32> to vector<32x162xf32>
    %c0_15 = arith.constant 0 : index
    %c0_16 = arith.constant 0 : index
    %c0_17 = arith.constant 0 : index
    %c0_18 = arith.constant 0 : index
    %50 = vector.load %arg3[%c0_15, %c0_16, %c0_17, %c0_18] : memref<1x1x32x196xbf16, #tpu.memory_space<vmem>>, vector<1x1x32x162xbf16>
    %51 = vector.shape_cast %50 : vector<1x1x32x162xbf16> to vector<32x162xbf16>
    %cst = arith.constant 0.000000e+00 : f32
    %52 = vector.shape_cast %22 : vector<1x162xi1> to vector<1x162xi1>
    %53 = vector.broadcast %52 : vector<1x162xi1> to vector<32x162xi1>
    %54 = vector.broadcast %cst : f32 to vector<32x162xf32>
    %55 = arith.select %53, %49, %54 : vector<32x162xi1>, vector<32x162xf32>
    %cst_19 = arith.constant 0.000000e+00 : bf16
    %56 = vector.shape_cast %22 : vector<1x162xi1> to vector<1x162xi1>
    %57 = vector.broadcast %56 : vector<1x162xi1> to vector<32x162xi1>
    %58 = vector.broadcast %cst_19 : bf16 to vector<32x162xbf16>
    %59 = arith.select %57, %51, %58 : vector<32x162xi1>, vector<32x162xbf16>
    %60 = arith.truncf %55 : vector<32x162xf32> to vector<32x162xbf16>
    %c0_20 = arith.constant 0 : index
    %c0_21 = arith.constant 0 : index
    %61 = vector.load %arg10[%c0_20, %c0_21] : memref<576x162xbf16, #tpu.memory_space<vmem>>, vector<32x162xbf16>
    tpu.vector_store %arg10[%c0_20, %c0_21], %60 {strides = array<i32>} : memref<576x162xbf16, #tpu.memory_space<vmem>>, vector<32x162xbf16>,
    %c288 = arith.constant 288 : index
    %c0_22 = arith.constant 0 : index
    %62 = vector.load %arg10[%c288, %c0_22] : memref<576x162xbf16, #tpu.memory_space<vmem>>, vector<32x162xbf16>
    tpu.vector_store %arg10[%c288, %c0_22], %59 {strides = array<i32>} : memref<576x162xbf16, #tpu.memory_space<vmem>>, vector<32x162xbf16>,
    %c0_23 = arith.constant 0 : index
    %c0_24 = arith.constant 0 : index
    %c0_25 = arith.constant 0 : index
    %c1 = arith.constant 1 : index
    %63 = vector.load %arg2[%c0_23, %c0_24, %c0_25, %c1] : memref<1x1x32x196xf32, #tpu.memory_space<vmem>>, vector<1x1x32x162xf32>
    %64 = vector.shape_cast %63 : vector<1x1x32x162xf32> to vector<32x162xf32>
    %c0_26 = arith.constant 0 : index
    %c0_27 = arith.constant 0 : index
    %c0_28 = arith.constant 0 : index
    %c1_29 = arith.constant 1 : index
    %65 = vector.load %arg3[%c0_26, %c0_27, %c0_28, %c1_29] : memref<1x1x32x196xbf16, #tpu.memory_space<vmem>>, vector<1x1x32x162xbf16>
    %66 = vector.shape_cast %65 : vector<1x1x32x162xbf16> to vector<32x162xbf16>
    %67 = arith.truncf %64 : vector<32x162xf32> to vector<32x162xbf16>
    %c32 = arith.constant 32 : index
    %c0_30 = arith.constant 0 : index
    %68 = vector.load %arg10[%c32, %c0_30] : memref<576x162xbf16, #tpu.memory_space<vmem>>, vector<32x162xbf16>
    tpu.vector_store %arg10[%c32, %c0_30], %67 {strides = array<i32>} : memref<576x162xbf16, #tpu.memory_space<vmem>>, vector<32x162xbf16>,
    %c320 = arith.constant 320 : index
    %c0_31 = arith.constant 0 : index
    %69 = vector.load %arg10[%c320, %c0_31] : memref<576x162xbf16, #tpu.memory_space<vmem>>, vector<32x162xbf16>
    tpu.vector_store %arg10[%c320, %c0_31], %66 {strides = array<i32>} : memref<576x162xbf16, #tpu.memory_space<vmem>>, vector<32x162xbf16>,
    %c0_32 = arith.constant 0 : index
    %c0_33 = arith.constant 0 : index
    %c0_34 = arith.constant 0 : index
    %c2 = arith.constant 2 : index
    %70 = vector.load %arg2[%c0_32, %c0_33, %c0_34, %c2] : memref<1x1x32x196xf32, #tpu.memory_space<vmem>>, vector<1x1x32x162xf32>
    %71 = vector.shape_cast %70 : vector<1x1x32x162xf32> to vector<32x162xf32>
    %c0_35 = arith.constant 0 : index
    %c0_36 = arith.constant 0 : index
    %c0_37 = arith.constant 0 : index
    %c2_38 = arith.constant 2 : index
    %72 = vector.load %arg3[%c0_35, %c0_36, %c0_37, %c2_38] : memref<1x1x32x196xbf16, #tpu.memory_space<vmem>>, vector<1x1x32x162xbf16>
    %73 = vector.shape_cast %72 : vector<1x1x32x162xbf16> to vector<32x162xbf16>
    %cst_39 = arith.constant 0.000000e+00 : f32
    %74 = vector.shape_cast %24 : vector<1x162xi1> to vector<1x162xi1>
    %75 = vector.broadcast %74 : vector<1x162xi1> to vector<32x162xi1>
    %76 = vector.broadcast %cst_39 : f32 to vector<32x162xf32>
    %77 = arith.select %75, %71, %76 : vector<32x162xi1>, vector<32x162xf32>
    %cst_40 = arith.constant 0.000000e+00 : bf16
    %78 = vector.shape_cast %24 : vector<1x162xi1> to vector<1x162xi1>
    %79 = vector.broadcast %78 : vector<1x162xi1> to vector<32x162xi1>
    %80 = vector.broadcast %cst_40 : bf16 to vector<32x162xbf16>
    %81 = arith.select %79, %73, %80 : vector<32x162xi1>, vector<32x162xbf16>
    %82 = arith.truncf %77 : vector<32x162xf32> to vector<32x162xbf16>
    %c64 = arith.constant 64 : index
    %c0_41 = arith.constant 0 : index
    %83 = vector.load %arg10[%c64, %c0_41] : memref<576x162xbf16, #tpu.memory_space<vmem>>, vector<32x162xbf16>
    tpu.vector_store %arg10[%c64, %c0_41], %82 {strides = array<i32>} : memref<576x162xbf16, #tpu.memory_space<vmem>>, vector<32x162xbf16>,
    %c352 = arith.constant 352 : index
    %c0_42 = arith.constant 0 : index
    %84 = vector.load %arg10[%c352, %c0_42] : memref<576x162xbf16, #tpu.memory_space<vmem>>, vector<32x162xbf16>
    tpu.vector_store %arg10[%c352, %c0_42], %81 {strides = array<i32>} : memref<576x162xbf16, #tpu.memory_space<vmem>>, vector<32x162xbf16>,
    %c0_43 = arith.constant 0 : index
    %c0_44 = arith.constant 0 : index
    %c0_45 = arith.constant 0 : index
    %c16 = arith.constant 16 : index
    %85 = vector.load %arg2[%c0_43, %c0_44, %c0_45, %c16] : memref<1x1x32x196xf32, #tpu.memory_space<vmem>>, vector<1x1x32x162xf32>
    %86 = vector.shape_cast %85 : vector<1x1x32x162xf32> to vector<32x162xf32>
    %c0_46 = arith.constant 0 : index
    %c0_47 = arith.constant 0 : index
    %c0_48 = arith.constant 0 : index
    %c16_49 = arith.constant 16 : index
    %87 = vector.load %arg3[%c0_46, %c0_47, %c0_48, %c16_49] : memref<1x1x32x196xbf16, #tpu.memory_space<vmem>>, vector<1x1x32x162xbf16>
    %88 = vector.shape_cast %87 : vector<1x1x32x162xbf16> to vector<32x162xbf16>
    %cst_50 = arith.constant 0.000000e+00 : f32
    %89 = vector.shape_cast %22 : vector<1x162xi1> to vector<1x162xi1>
    %90 = vector.broadcast %89 : vector<1x162xi1> to vector<32x162xi1>
    %91 = vector.broadcast %cst_50 : f32 to vector<32x162xf32>
    %92 = arith.select %90, %86, %91 : vector<32x162xi1>, vector<32x162xf32>
    %cst_51 = arith.constant 0.000000e+00 : bf16
    %93 = vector.shape_cast %22 : vector<1x162xi1> to vector<1x162xi1>
    %94 = vector.broadcast %93 : vector<1x162xi1> to vector<32x162xi1>
    %95 = vector.broadcast %cst_51 : bf16 to vector<32x162xbf16>
    %96 = arith.select %94, %88, %95 : vector<32x162xi1>, vector<32x162xbf16>
    %97 = arith.truncf %92 : vector<32x162xf32> to vector<32x162xbf16>
    %c96 = arith.constant 96 : index
    %c0_52 = arith.constant 0 : index
    %98 = vector.load %arg10[%c96, %c0_52] : memref<576x162xbf16, #tpu.memory_space<vmem>>, vector<32x162xbf16>
    tpu.vector_store %arg10[%c96, %c0_52], %97 {strides = array<i32>} : memref<576x162xbf16, #tpu.memory_space<vmem>>, vector<32x162xbf16>,
    %c384 = arith.constant 384 : index
    %c0_53 = arith.constant 0 : index
    %99 = vector.load %arg10[%c384, %c0_53] : memref<576x162xbf16, #tpu.memory_space<vmem>>, vector<32x162xbf16>
    tpu.vector_store %arg10[%c384, %c0_53], %96 {strides = array<i32>} : memref<576x162xbf16, #tpu.memory_space<vmem>>, vector<32x162xbf16>,
    %c0_54 = arith.constant 0 : index
    %c0_55 = arith.constant 0 : index
    %c0_56 = arith.constant 0 : index
    %c17 = arith.constant 17 : index
    %100 = vector.load %arg2[%c0_54, %c0_55, %c0_56, %c17] : memref<1x1x32x196xf32, #tpu.memory_space<vmem>>, vector<1x1x32x162xf32>
    %101 = vector.shape_cast %100 : vector<1x1x32x162xf32> to vector<32x162xf32>
    %c0_57 = arith.constant 0 : index
    %c0_58 = arith.constant 0 : index
    %c0_59 = arith.constant 0 : index
    %c17_60 = arith.constant 17 : index
    %102 = vector.load %arg3[%c0_57, %c0_58, %c0_59, %c17_60] : memref<1x1x32x196xbf16, #tpu.memory_space<vmem>>, vector<1x1x32x162xbf16>
    %103 = vector.shape_cast %102 : vector<1x1x32x162xbf16> to vector<32x162xbf16>
    %104 = arith.truncf %101 : vector<32x162xf32> to vector<32x162xbf16>
    %c128 = arith.constant 128 : index
    %c0_61 = arith.constant 0 : index
    %105 = vector.load %arg10[%c128, %c0_61] : memref<576x162xbf16, #tpu.memory_space<vmem>>, vector<32x162xbf16>
    tpu.vector_store %arg10[%c128, %c0_61], %104 {strides = array<i32>} : memref<576x162xbf16, #tpu.memory_space<vmem>>, vector<32x162xbf16>,
    %c416 = arith.constant 416 : index
    %c0_62 = arith.constant 0 : index
    %106 = vector.load %arg10[%c416, %c0_62] : memref<576x162xbf16, #tpu.memory_space<vmem>>, vector<32x162xbf16>
    tpu.vector_store %arg10[%c416, %c0_62], %103 {strides = array<i32>} : memref<576x162xbf16, #tpu.memory_space<vmem>>, vector<32x162xbf16>,
    %c0_63 = arith.constant 0 : index
    %c0_64 = arith.constant 0 : index
    %c0_65 = arith.constant 0 : index
    %c18 = arith.constant 18 : index
    %107 = vector.load %arg2[%c0_63, %c0_64, %c0_65, %c18] : memref<1x1x32x196xf32, #tpu.memory_space<vmem>>, vector<1x1x32x162xf32>
    %108 = vector.shape_cast %107 : vector<1x1x32x162xf32> to vector<32x162xf32>
    %c0_66 = arith.constant 0 : index
    %c0_67 = arith.constant 0 : index
    %c0_68 = arith.constant 0 : index
    %c18_69 = arith.constant 18 : index
    %109 = vector.load %arg3[%c0_66, %c0_67, %c0_68, %c18_69] : memref<1x1x32x196xbf16, #tpu.memory_space<vmem>>, vector<1x1x32x162xbf16>
    %110 = vector.shape_cast %109 : vector<1x1x32x162xbf16> to vector<32x162xbf16>
    %cst_70 = arith.constant 0.000000e+00 : f32
    %111 = vector.shape_cast %24 : vector<1x162xi1> to vector<1x162xi1>
    %112 = vector.broadcast %111 : vector<1x162xi1> to vector<32x162xi1>
    %113 = vector.broadcast %cst_70 : f32 to vector<32x162xf32>
    %114 = arith.select %112, %108, %113 : vector<32x162xi1>, vector<32x162xf32>
    %cst_71 = arith.constant 0.000000e+00 : bf16
    %115 = vector.shape_cast %24 : vector<1x162xi1> to vector<1x162xi1>
    %116 = vector.broadcast %115 : vector<1x162xi1> to vector<32x162xi1>
    %117 = vector.broadcast %cst_71 : bf16 to vector<32x162xbf16>
    %118 = arith.select %116, %110, %117 : vector<32x162xi1>, vector<32x162xbf16>
    %119 = arith.truncf %114 : vector<32x162xf32> to vector<32x162xbf16>
    %c160 = arith.constant 160 : index
    %c0_72 = arith.constant 0 : index
    %120 = vector.load %arg10[%c160, %c0_72] : memref<576x162xbf16, #tpu.memory_space<vmem>>, vector<32x162xbf16>
    tpu.vector_store %arg10[%c160, %c0_72], %119 {strides = array<i32>} : memref<576x162xbf16, #tpu.memory_space<vmem>>, vector<32x162xbf16>,
    %c448 = arith.constant 448 : index
    %c0_73 = arith.constant 0 : index
    %121 = vector.load %arg10[%c448, %c0_73] : memref<576x162xbf16, #tpu.memory_space<vmem>>, vector<32x162xbf16>
    tpu.vector_store %arg10[%c448, %c0_73], %118 {strides = array<i32>} : memref<576x162xbf16, #tpu.memory_space<vmem>>, vector<32x162xbf16>,
    %c0_74 = arith.constant 0 : index
    %c0_75 = arith.constant 0 : index
    %c0_76 = arith.constant 0 : index
    %c32_77 = arith.constant 32 : index
    %122 = vector.load %arg2[%c0_74, %c0_75, %c0_76, %c32_77] : memref<1x1x32x196xf32, #tpu.memory_space<vmem>>, vector<1x1x32x162xf32>
    %123 = vector.shape_cast %122 : vector<1x1x32x162xf32> to vector<32x162xf32>
    %c0_78 = arith.constant 0 : index
    %c0_79 = arith.constant 0 : index
    %c0_80 = arith.constant 0 : index
    %c32_81 = arith.constant 32 : index
    %124 = vector.load %arg3[%c0_78, %c0_79, %c0_80, %c32_81] : memref<1x1x32x196xbf16, #tpu.memory_space<vmem>>, vector<1x1x32x162xbf16>
    %125 = vector.shape_cast %124 : vector<1x1x32x162xbf16> to vector<32x162xbf16>
    %cst_82 = arith.constant 0.000000e+00 : f32
    %126 = vector.shape_cast %22 : vector<1x162xi1> to vector<1x162xi1>
    %127 = vector.broadcast %126 : vector<1x162xi1> to vector<32x162xi1>
    %128 = vector.broadcast %cst_82 : f32 to vector<32x162xf32>
    %129 = arith.select %127, %123, %128 : vector<32x162xi1>, vector<32x162xf32>
    %cst_83 = arith.constant 0.000000e+00 : bf16
    %130 = vector.shape_cast %22 : vector<1x162xi1> to vector<1x162xi1>
    %131 = vector.broadcast %130 : vector<1x162xi1> to vector<32x162xi1>
    %132 = vector.broadcast %cst_83 : bf16 to vector<32x162xbf16>
    %133 = arith.select %131, %125, %132 : vector<32x162xi1>, vector<32x162xbf16>
    %134 = arith.truncf %129 : vector<32x162xf32> to vector<32x162xbf16>
    %c192 = arith.constant 192 : index
    %c0_84 = arith.constant 0 : index
    %135 = vector.load %arg10[%c192, %c0_84] : memref<576x162xbf16, #tpu.memory_space<vmem>>, vector<32x162xbf16>
    tpu.vector_store %arg10[%c192, %c0_84], %134 {strides = array<i32>} : memref<576x162xbf16, #tpu.memory_space<vmem>>, vector<32x162xbf16>,
    %c480 = arith.constant 480 : index
    %c0_85 = arith.constant 0 : index
    %136 = vector.load %arg10[%c480, %c0_85] : memref<576x162xbf16, #tpu.memory_space<vmem>>, vector<32x162xbf16>
    tpu.vector_store %arg10[%c480, %c0_85], %133 {strides = array<i32>} : memref<576x162xbf16, #tpu.memory_space<vmem>>, vector<32x162xbf16>,
    %c0_86 = arith.constant 0 : index
    %c0_87 = arith.constant 0 : index
    %c0_88 = arith.constant 0 : index
    %c33 = arith.constant 33 : index
    %137 = vector.load %arg2[%c0_86, %c0_87, %c0_88, %c33] : memref<1x1x32x196xf32, #tpu.memory_space<vmem>>, vector<1x1x32x162xf32>
    %138 = vector.shape_cast %137 : vector<1x1x32x162xf32> to vector<32x162xf32>
    %c0_89 = arith.constant 0 : index
    %c0_90 = arith.constant 0 : index
    %c0_91 = arith.constant 0 : index
    %c33_92 = arith.constant 33 : index
    %139 = vector.load %arg3[%c0_89, %c0_90, %c0_91, %c33_92] : memref<1x1x32x196xbf16, #tpu.memory_space<vmem>>, vector<1x1x32x162xbf16>
    %140 = vector.shape_cast %139 : vector<1x1x32x162xbf16> to vector<32x162xbf16>
    %141 = arith.truncf %138 : vector<32x162xf32> to vector<32x162xbf16>
    %c224 = arith.constant 224 : index
    %c0_93 = arith.constant 0 : index
    %142 = vector.load %arg10[%c224, %c0_93] : memref<576x162xbf16, #tpu.memory_space<vmem>>, vector<32x162xbf16>
    tpu.vector_store %arg10[%c224, %c0_93], %141 {strides = array<i32>} : memref<576x162xbf16, #tpu.memory_space<vmem>>, vector<32x162xbf16>,
    %c512 = arith.constant 512 : index
    %c0_94 = arith.constant 0 : index
    %143 = vector.load %arg10[%c512, %c0_94] : memref<576x162xbf16, #tpu.memory_space<vmem>>, vector<32x162xbf16>
    tpu.vector_store %arg10[%c512, %c0_94], %140 {strides = array<i32>} : memref<576x162xbf16, #tpu.memory_space<vmem>>, vector<32x162xbf16>,
    %c0_95 = arith.constant 0 : index
    %c0_96 = arith.constant 0 : index
    %c0_97 = arith.constant 0 : index
    %c34 = arith.constant 34 : index
    %144 = vector.load %arg2[%c0_95, %c0_96, %c0_97, %c34] : memref<1x1x32x196xf32, #tpu.memory_space<vmem>>, vector<1x1x32x162xf32>
    %145 = vector.shape_cast %144 : vector<1x1x32x162xf32> to vector<32x162xf32>
    %c0_98 = arith.constant 0 : index
    %c0_99 = arith.constant 0 : index
    %c0_100 = arith.constant 0 : index
    %c34_101 = arith.constant 34 : index
    %146 = vector.load %arg3[%c0_98, %c0_99, %c0_100, %c34_101] : memref<1x1x32x196xbf16, #tpu.memory_space<vmem>>, vector<1x1x32x162xbf16>
    %147 = vector.shape_cast %146 : vector<1x1x32x162xbf16> to vector<32x162xbf16>
    %cst_102 = arith.constant 0.000000e+00 : f32
    %148 = vector.shape_cast %24 : vector<1x162xi1> to vector<1x162xi1>
    %149 = vector.broadcast %148 : vector<1x162xi1> to vector<32x162xi1>
    %150 = vector.broadcast %cst_102 : f32 to vector<32x162xf32>
    %151 = arith.select %149, %145, %150 : vector<32x162xi1>, vector<32x162xf32>
    %cst_103 = arith.constant 0.000000e+00 : bf16
    %152 = vector.shape_cast %24 : vector<1x162xi1> to vector<1x162xi1>
    %153 = vector.broadcast %152 : vector<1x162xi1> to vector<32x162xi1>
    %154 = vector.broadcast %cst_103 : bf16 to vector<32x162xbf16>
    %155 = arith.select %153, %147, %154 : vector<32x162xi1>, vector<32x162xbf16>
    %156 = arith.truncf %151 : vector<32x162xf32> to vector<32x162xbf16>
    %c256 = arith.constant 256 : index
    %c0_104 = arith.constant 0 : index
    %157 = vector.load %arg10[%c256, %c0_104] : memref<576x162xbf16, #tpu.memory_space<vmem>>, vector<32x162xbf16>
    tpu.vector_store %arg10[%c256, %c0_104], %156 {strides = array<i32>} : memref<576x162xbf16, #tpu.memory_space<vmem>>, vector<32x162xbf16>,
    %c544 = arith.constant 544 : index
    %c0_105 = arith.constant 0 : index
    %158 = vector.load %arg10[%c544, %c0_105] : memref<576x162xbf16, #tpu.memory_space<vmem>>, vector<32x162xbf16>
    tpu.vector_store %arg10[%c544, %c0_105], %155 {strides = array<i32>} : memref<576x162xbf16, #tpu.memory_space<vmem>>, vector<32x162xbf16>,
    %c0_106 = arith.constant 0 : index
    %c0_107 = arith.constant 0 : index
    %159 = vector.load %arg4[%c0_106, %c0_107] : memref<64x576xbf16, #tpu.memory_space<vmem>>, vector<64x576xbf16>
    %c0_108 = arith.constant 0 : index
    %c0_109 = arith.constant 0 : index
    %160 = vector.load %arg10[%c0_108, %c0_109] : memref<576x162xbf16, #tpu.memory_space<vmem>>, vector<576x162xbf16>
    %cst_110 = arith.constant dense<0.000000e+00> : vector<64x162xf32>
    %161 = tpu.matmul %159, %160, %cst_110 {dimension_numbers = #tpu.dot_dimension_numbers<[1], [0], [0], [1], [0, 0, 1, 1], [], []>} : vector<64x576xbf16>, vector<576x162xbf16>, vector<64x162xf32> -> vector<64x162xf32>
    %c0_111 = arith.constant 0 : index
    %c0_112 = arith.constant 0 : index
    %162 = vector.load %arg7[%c0_111, %c0_112] : memref<64x1xf32, #tpu.memory_space<vmem>>, vector<64x1xf32>
    %163 = vector.broadcast %162 : vector<64x1xf32> to vector<64x162xf32>
    %164 = arith.addf %161, %163 : vector<64x162xf32>
    %165 = vector.extract_strided_slice %164 {offsets = [0, 17], sizes = [32, 128], strides = [1, 1]} : vector<64x162xf32> to vector<32x128xf32>
    %cst_113 = arith.constant 5.000000e-01 : f32
    %166 = vector.broadcast %cst_113 : f32 to vector<32x128xf32>
    %167 = arith.mulf %166, %165 : vector<32x128xf32>
    %168 = math.tanh %167 : vector<32x128xf32>
    %cst_114 = arith.constant 1.000000e+00 : f32
    %169 = vector.broadcast %cst_114 : f32 to vector<32x128xf32>
    %170 = arith.addf %168, %169 : vector<32x128xf32>
    %cst_115 = arith.constant 5.000000e-01 : f32
    %171 = vector.broadcast %cst_115 : f32 to vector<32x128xf32>
    %172 = arith.mulf %171, %170 : vector<32x128xf32>
    %173 = vector.extract_strided_slice %164 {offsets = [32, 0], sizes = [32, 162], strides = [1, 1]} : vector<64x162xf32> to vector<32x162xf32>
    %cst_116 = arith.constant 5.000000e-01 : f32
    %174 = vector.broadcast %cst_116 : f32 to vector<32x162xf32>
    %175 = arith.mulf %174, %173 : vector<32x162xf32>
    %176 = math.tanh %175 : vector<32x162xf32>
    %cst_117 = arith.constant 1.000000e+00 : f32
    %177 = vector.broadcast %cst_117 : f32 to vector<32x162xf32>
    %178 = arith.addf %176, %177 : vector<32x162xf32>
    %cst_118 = arith.constant 5.000000e-01 : f32
    %179 = vector.broadcast %cst_118 : f32 to vector<32x162xf32>
    %180 = arith.mulf %179, %178 : vector<32x162xf32>
    %c0_119 = arith.constant 0 : index
    %c0_120 = arith.constant 0 : index
    %181 = vector.load %arg5[%c0_119, %c0_120] : memref<32x288xbf16, #tpu.memory_space<vmem>>, vector<32x288xbf16>
    %c288_121 = arith.constant 288 : index
    %c0_122 = arith.constant 0 : index
    %182 = vector.load %arg10[%c288_121, %c0_122] : memref<576x162xbf16, #tpu.memory_space<vmem>>, vector<288x162xbf16>
    %cst_123 = arith.constant dense<0.000000e+00> : vector<32x162xf32>
    %183 = tpu.matmul %181, %182, %cst_123 {dimension_numbers = #tpu.dot_dimension_numbers<[1], [0], [0], [1], [0, 0, 1, 1], [], []>} : vector<32x288xbf16>, vector<288x162xbf16>, vector<32x162xf32> -> vector<32x162xf32>
    %184 = vector.extract_strided_slice %183 {offsets = [0, 17], sizes = [32, 128], strides = [1, 1]} : vector<32x162xf32> to vector<32x128xf32>
    %c0_124 = arith.constant 0 : index
    %c0_125 = arith.constant 0 : index
    %185 = vector.load %arg8[%c0_124, %c0_125] : memref<32x1xf32, #tpu.memory_space<vmem>>, vector<32x1xf32>
    %186 = vector.broadcast %185 : vector<32x1xf32> to vector<32x128xf32>
    %187 = arith.addf %184, %186 : vector<32x128xf32>
    %c0_126 = arith.constant 0 : index
    %c0_127 = arith.constant 0 : index
    %c0_128 = arith.constant 0 : index
    %c17_129 = arith.constant 17 : index
    %188 = vector.load %arg2[%c0_126, %c0_127, %c0_128, %c17_129] : memref<1x1x32x196xf32, #tpu.memory_space<vmem>>, vector<1x1x32x162xf32>
    %189 = vector.shape_cast %188 : vector<1x1x32x162xf32> to vector<32x162xf32>
    %190 = arith.mulf %180, %189 : vector<32x162xf32>
    %c0_130 = arith.constant 0 : index
    %c0_131 = arith.constant 0 : index
    %191 = vector.load %arg11[%c0_130, %c0_131] : memref<32x162xf32, #tpu.memory_space<vmem>>, vector<32x162xf32>
    tpu.vector_store %arg11[%c0_130, %c0_131], %190 {strides = array<i32>} : memref<32x162xf32, #tpu.memory_space<vmem>>, vector<32x162xf32>,
    %c0_132 = arith.constant 0 : index
    %c0_133 = arith.constant 0 : index
    %192 = vector.load %arg11[%c0_132, %c0_133] : memref<32x162xf32, #tpu.memory_space<vmem>>, vector<32x128xf32>
    %cst_134 = arith.constant 0.000000e+00 : f32
    %193 = vector.shape_cast %45 : vector<1x128xi1> to vector<1x128xi1>
    %194 = vector.broadcast %193 : vector<1x128xi1> to vector<32x128xi1>
    %195 = vector.broadcast %cst_134 : f32 to vector<32x128xf32>
    %196 = arith.select %194, %192, %195 : vector<32x128xi1>, vector<32x128xf32>
    %197 = arith.truncf %196 : vector<32x128xf32> to vector<32x128xbf16>
    %c0_135 = arith.constant 0 : index
    %c0_136 = arith.constant 0 : index
    %198 = vector.load %arg10[%c0_135, %c0_136] : memref<576x162xbf16, #tpu.memory_space<vmem>>, vector<32x128xbf16>
    tpu.vector_store %arg10[%c0_135, %c0_136], %197 {strides = array<i32>} : memref<576x162xbf16, #tpu.memory_space<vmem>>, vector<32x128xbf16>,
    %c0_137 = arith.constant 0 : index
    %c1_138 = arith.constant 1 : index
    %199 = vector.load %arg11[%c0_137, %c1_138] : memref<32x162xf32, #tpu.memory_space<vmem>>, vector<32x128xf32>
    %200 = arith.truncf %199 : vector<32x128xf32> to vector<32x128xbf16>
    %c32_139 = arith.constant 32 : index
    %c0_140 = arith.constant 0 : index
    %201 = vector.load %arg10[%c32_139, %c0_140] : memref<576x162xbf16, #tpu.memory_space<vmem>>, vector<32x128xbf16>
    tpu.vector_store %arg10[%c32_139, %c0_140], %200 {strides = array<i32>} : memref<576x162xbf16, #tpu.memory_space<vmem>>, vector<32x128xbf16>,
    %c0_141 = arith.constant 0 : index
    %c2_142 = arith.constant 2 : index
    %202 = vector.load %arg11[%c0_141, %c2_142] : memref<32x162xf32, #tpu.memory_space<vmem>>, vector<32x128xf32>
    %cst_143 = arith.constant 0.000000e+00 : f32
    %203 = vector.shape_cast %47 : vector<1x128xi1> to vector<1x128xi1>
    %204 = vector.broadcast %203 : vector<1x128xi1> to vector<32x128xi1>
    %205 = vector.broadcast %cst_143 : f32 to vector<32x128xf32>
    %206 = arith.select %204, %202, %205 : vector<32x128xi1>, vector<32x128xf32>
    %207 = arith.truncf %206 : vector<32x128xf32> to vector<32x128xbf16>
    %c64_144 = arith.constant 64 : index
    %c0_145 = arith.constant 0 : index
    %208 = vector.load %arg10[%c64_144, %c0_145] : memref<576x162xbf16, #tpu.memory_space<vmem>>, vector<32x128xbf16>
    tpu.vector_store %arg10[%c64_144, %c0_145], %207 {strides = array<i32>} : memref<576x162xbf16, #tpu.memory_space<vmem>>, vector<32x128xbf16>,
    %c0_146 = arith.constant 0 : index
    %c16_147 = arith.constant 16 : index
    %209 = vector.load %arg11[%c0_146, %c16_147] : memref<32x162xf32, #tpu.memory_space<vmem>>, vector<32x128xf32>
    %cst_148 = arith.constant 0.000000e+00 : f32
    %210 = vector.shape_cast %45 : vector<1x128xi1> to vector<1x128xi1>
    %211 = vector.broadcast %210 : vector<1x128xi1> to vector<32x128xi1>
    %212 = vector.broadcast %cst_148 : f32 to vector<32x128xf32>
    %213 = arith.select %211, %209, %212 : vector<32x128xi1>, vector<32x128xf32>
    %214 = arith.truncf %213 : vector<32x128xf32> to vector<32x128xbf16>
    %c96_149 = arith.constant 96 : index
    %c0_150 = arith.constant 0 : index
    %215 = vector.load %arg10[%c96_149, %c0_150] : memref<576x162xbf16, #tpu.memory_space<vmem>>, vector<32x128xbf16>
    tpu.vector_store %arg10[%c96_149, %c0_150], %214 {strides = array<i32>} : memref<576x162xbf16, #tpu.memory_space<vmem>>, vector<32x128xbf16>,
    %c0_151 = arith.constant 0 : index
    %c17_152 = arith.constant 17 : index
    %216 = vector.load %arg11[%c0_151, %c17_152] : memref<32x162xf32, #tpu.memory_space<vmem>>, vector<32x128xf32>
    %217 = arith.truncf %216 : vector<32x128xf32> to vector<32x128xbf16>
    %c128_153 = arith.constant 128 : index
    %c0_154 = arith.constant 0 : index
    %218 = vector.load %arg10[%c128_153, %c0_154] : memref<576x162xbf16, #tpu.memory_space<vmem>>, vector<32x128xbf16>
    tpu.vector_store %arg10[%c128_153, %c0_154], %217 {strides = array<i32>} : memref<576x162xbf16, #tpu.memory_space<vmem>>, vector<32x128xbf16>,
    %c0_155 = arith.constant 0 : index
    %c18_156 = arith.constant 18 : index
    %219 = vector.load %arg11[%c0_155, %c18_156] : memref<32x162xf32, #tpu.memory_space<vmem>>, vector<32x128xf32>
    %cst_157 = arith.constant 0.000000e+00 : f32
    %220 = vector.shape_cast %47 : vector<1x128xi1> to vector<1x128xi1>
    %221 = vector.broadcast %220 : vector<1x128xi1> to vector<32x128xi1>
    %222 = vector.broadcast %cst_157 : f32 to vector<32x128xf32>
    %223 = arith.select %221, %219, %222 : vector<32x128xi1>, vector<32x128xf32>
    %224 = arith.truncf %223 : vector<32x128xf32> to vector<32x128xbf16>
    %c160_158 = arith.constant 160 : index
    %c0_159 = arith.constant 0 : index
    %225 = vector.load %arg10[%c160_158, %c0_159] : memref<576x162xbf16, #tpu.memory_space<vmem>>, vector<32x128xbf16>
    tpu.vector_store %arg10[%c160_158, %c0_159], %224 {strides = array<i32>} : memref<576x162xbf16, #tpu.memory_space<vmem>>, vector<32x128xbf16>,
    %c0_160 = arith.constant 0 : index
    %c32_161 = arith.constant 32 : index
    %226 = vector.load %arg11[%c0_160, %c32_161] : memref<32x162xf32, #tpu.memory_space<vmem>>, vector<32x128xf32>
    %cst_162 = arith.constant 0.000000e+00 : f32
    %227 = vector.shape_cast %45 : vector<1x128xi1> to vector<1x128xi1>
    %228 = vector.broadcast %227 : vector<1x128xi1> to vector<32x128xi1>
    %229 = vector.broadcast %cst_162 : f32 to vector<32x128xf32>
    %230 = arith.select %228, %226, %229 : vector<32x128xi1>, vector<32x128xf32>
    %231 = arith.truncf %230 : vector<32x128xf32> to vector<32x128xbf16>
    %c192_163 = arith.constant 192 : index
    %c0_164 = arith.constant 0 : index
    %232 = vector.load %arg10[%c192_163, %c0_164] : memref<576x162xbf16, #tpu.memory_space<vmem>>, vector<32x128xbf16>
    tpu.vector_store %arg10[%c192_163, %c0_164], %231 {strides = array<i32>} : memref<576x162xbf16, #tpu.memory_space<vmem>>, vector<32x128xbf16>,
    %c0_165 = arith.constant 0 : index
    %c33_166 = arith.constant 33 : index
    %233 = vector.load %arg11[%c0_165, %c33_166] : memref<32x162xf32, #tpu.memory_space<vmem>>, vector<32x128xf32>
    %234 = arith.truncf %233 : vector<32x128xf32> to vector<32x128xbf16>
    %c224_167 = arith.constant 224 : index
    %c0_168 = arith.constant 0 : index
    %235 = vector.load %arg10[%c224_167, %c0_168] : memref<576x162xbf16, #tpu.memory_space<vmem>>, vector<32x128xbf16>
    tpu.vector_store %arg10[%c224_167, %c0_168], %234 {strides = array<i32>} : memref<576x162xbf16, #tpu.memory_space<vmem>>, vector<32x128xbf16>,
    %c0_169 = arith.constant 0 : index
    %c34_170 = arith.constant 34 : index
    %236 = vector.load %arg11[%c0_169, %c34_170] : memref<32x162xf32, #tpu.memory_space<vmem>>, vector<32x128xf32>
    %cst_171 = arith.constant 0.000000e+00 : f32
    %237 = vector.shape_cast %47 : vector<1x128xi1> to vector<1x128xi1>
    %238 = vector.broadcast %237 : vector<1x128xi1> to vector<32x128xi1>
    %239 = vector.broadcast %cst_171 : f32 to vector<32x128xf32>
    %240 = arith.select %238, %236, %239 : vector<32x128xi1>, vector<32x128xf32>
    %241 = arith.truncf %240 : vector<32x128xf32> to vector<32x128xbf16>
    %c256_172 = arith.constant 256 : index
    %c0_173 = arith.constant 0 : index
    %242 = vector.load %arg10[%c256_172, %c0_173] : memref<576x162xbf16, #tpu.memory_space<vmem>>, vector<32x128xbf16>
    tpu.vector_store %arg10[%c256_172, %c0_173], %241 {strides = array<i32>} : memref<576x162xbf16, #tpu.memory_space<vmem>>, vector<32x128xbf16>,
    %c0_174 = arith.constant 0 : index
    %c0_175 = arith.constant 0 : index
    %243 = vector.load %arg6[%c0_174, %c0_175] : memref<32x288xbf16, #tpu.memory_space<vmem>>, vector<32x288xbf16>
    %c0_176 = arith.constant 0 : index
    %c0_177 = arith.constant 0 : index
    %244 = vector.load %arg10[%c0_176, %c0_177] : memref<576x162xbf16, #tpu.memory_space<vmem>>, vector<288x128xbf16>
    %cst_178 = arith.constant dense<0.000000e+00> : vector<32x128xf32>
    %245 = tpu.matmul %243, %244, %cst_178 {dimension_numbers = #tpu.dot_dimension_numbers<[1], [0], [0], [1], [0, 0, 1, 1], [], []>} : vector<32x288xbf16>, vector<288x128xbf16>, vector<32x128xf32> -> vector<32x128xf32>
    %246 = arith.addf %245, %187 : vector<32x128xf32>
    %247 = math.tanh %246 : vector<32x128xf32>
    %c0_179 = arith.constant 0 : index
    %c0_180 = arith.constant 0 : index
    %c0_181 = arith.constant 0 : index
    %c34_182 = arith.constant 34 : index
    %248 = vector.load %arg2[%c0_179, %c0_180, %c0_181, %c34_182] : memref<1x1x32x196xf32, #tpu.memory_space<vmem>>, vector<1x1x32x128xf32>
    %249 = vector.shape_cast %248 : vector<1x1x32x128xf32> to vector<32x128xf32>
    %cst_183 = arith.constant 1.000000e+00 : f32
    %250 = vector.broadcast %cst_183 : f32 to vector<32x128xf32>
    %251 = arith.subf %250, %172 : vector<32x128xf32>
    %252 = arith.mulf %251, %249 : vector<32x128xf32>
    %253 = arith.mulf %172, %247 : vector<32x128xf32>
    %254 = arith.addf %252, %253 : vector<32x128xf32>
    %c0_184 = arith.constant 0 : index
    %c0_185 = arith.constant 0 : index
    %c0_186 = arith.constant 0 : index
    %255 = vector.load %arg9[%c0_184, %c0_185, %c0_186] : memref<1x32x128xf32, #tpu.memory_space<vmem>>, vector<1x32x128xf32>
    %256 = vector.shape_cast %255 : vector<1x32x128xf32> to vector<32x128xf32>
    %257 = vector.shape_cast %254 : vector<32x128xf32> to vector<1x32x128xf32>
    tpu.vector_store %arg9[%c0_184, %c0_185, %c0_186], %257 {strides = array<i32>} : memref<1x32x128xf32, #tpu.memory_space<vmem>>, vector<1x32x128xf32>,
    return
  }
  func.func @transform_0(%arg0: i32, %arg1: i32) -> (i32, i32, i32, i32) {
    %c0_i32 = arith.constant 0 : i32
    %c0_i32_0 = arith.constant 0 : i32
    %c0_i32_1 = arith.constant 0 : i32
    return %arg0, %arg1, %c0_i32, %c0_i32_0 : i32, i32, i32, i32
  }
  func.func @transform_1(%arg0: i32, %arg1: i32) -> (i32, i32, i32, i32) {
    %c0_i32 = arith.constant 0 : i32
    %c0_i32_0 = arith.constant 0 : i32
    %c0_i32_1 = arith.constant 0 : i32
    return %arg0, %arg1, %c0_i32, %c0_i32_0 : i32, i32, i32, i32
  }
  func.func @transform_2(%arg0: i32, %arg1: i32) -> (i32, i32) {
    %c0_i32 = arith.constant 0 : i32
    %c0_i32_0 = arith.constant 0 : i32
    %c0_i32_1 = arith.constant 0 : i32
    return %c0_i32, %c0_i32_0 : i32, i32
  }
  func.func @transform_3(%arg0: i32, %arg1: i32) -> (i32, i32) {
    %c0_i32 = arith.constant 0 : i32
    %c0_i32_0 = arith.constant 0 : i32
    %c0_i32_1 = arith.constant 0 : i32
    return %c0_i32, %c0_i32_0 : i32, i32
  }
  func.func @transform_4(%arg0: i32, %arg1: i32) -> (i32, i32) {
    %c0_i32 = arith.constant 0 : i32
    %c0_i32_0 = arith.constant 0 : i32
    %c0_i32_1 = arith.constant 0 : i32
    return %c0_i32, %c0_i32_0 : i32, i32
  }
  func.func @transform_5(%arg0: i32, %arg1: i32) -> (i32, i32) {
    %c0_i32 = arith.constant 0 : i32
    %c0_i32_0 = arith.constant 0 : i32
    %c0_i32_1 = arith.constant 0 : i32
    return %c0_i32, %c0_i32_0 : i32, i32
  }
  func.func @transform_6(%arg0: i32, %arg1: i32) -> (i32, i32) {
    %c0_i32 = arith.constant 0 : i32
    %c0_i32_0 = arith.constant 0 : i32
    %c0_i32_1 = arith.constant 0 : i32
    return %c0_i32, %c0_i32_0 : i32, i32
  }
  func.func @transform_7(%arg0: i32, %arg1: i32) -> (i32, i32, i32) {
    %c0_i32 = arith.constant 0 : i32
    %c0_i32_0 = arith.constant 0 : i32
    return %arg0, %c0_i32, %arg1 : i32, i32, i32
  }
}

</mosaic_0001>

<llo_original>
// kernel: tpu_custom_call.1
$region0: #{tpu_custom_call.1}
  #allocation0 [shape = 'u32[]', space=smem, size = 0x4, offset = 0x4, fixed_abs, tag = 'smem constant byte address 0x4 - core index']
  #allocation1 [shape = 'u32[144,128]{1,0:T(1,128)}', space=vmem, size = 0x12000, scoped, tag = 'internal scratch']
  #allocation2 [shape = 'bf16[576,162]{1,0:T(16,128)(2,1)}', space=vmem, size = 0x48000, scoped, tag = 'scratch operand']
  #allocation3 [shape = 'f32[32,162]{1,0:T(8,128)}', space=vmem, size = 0x8000, scoped, tag = 'scratch operand']
  %s0 = inlined_call_operand.hbm [shape: f32[2,2,32,196], index: 0, kind: input, shape index: {}]
  %s1 = inlined_call_operand.hbm [shape: bf16[2,2,32,196], index: 1, kind: input, shape index: {}]
  %s2 = inlined_call_operand.hbm [shape: bf16[64,576], index: 2, kind: input, shape index: {}]
  %s3 = inlined_call_operand.vmem [shape: bf16[32,288], index: 3, kind: input, shape index: {}]
  %s4 = inlined_call_operand.vmem [shape: bf16[32,288], index: 4, kind: input, shape index: {}]
  %s5 = inlined_call_operand.vmem [shape: f32[64,1], index: 5, kind: input, shape index: {}]
  %s6 = inlined_call_operand.vmem [shape: f32[32,1], index: 6, kind: input, shape index: {}]
  %s7 = inlined_call_operand.hbm [shape: f32[2,32,256], index: 7, kind: output, shape index: {}]
  %s8 = sld [smem:[#allocation0]]
  $region73: #{tpu_custom_call.1} parent=0
    _
  %s10 = ssub.s32 1, %s8
  %s11 = scalar_select 0, %s10, %s8
  $region1: #{tpu_custom_call.1} parent=0
    #allocation4 [shape = 'u8[65536]{0}', space=vmem, size = 0x10000, scoped, tag = 'input window, operand 0']
    #allocation5 [shape = 's32[2]{0}', space=sflag, size = 0x8, scoped, tag = 'scoped memory for tpu_custom_call.1']
    #allocation6 [shape = 's32[2]{0}', space=sflag, size = 0x8, scoped, tag = 'scoped memory for tpu_custom_call.1']
    #allocation7 [shape = 'u8[32768]{0}', space=vmem, size = 0x8000, scoped, tag = 'input window, operand 1']
    #allocation8 [shape = 's32[2]{0}', space=sflag, size = 0x8, scoped, tag = 'scoped memory for tpu_custom_call.1']
    #allocation9 [shape = 'u8[81920]{0}', space=vmem, size = 0x14000, scoped, tag = 'input window, operand 2, single buffered']
    #allocation10 [shape = 'u8[32768]{0}', space=vmem, size = 0x8000, scoped, tag = 'output window, operand 0']
    %12 = vsyncpa [#allocation5], 0
    %s13 = scalar_lea.sflag [#allocation5], 1
    %14 = vsyncpa %s13, 0
    %15 = vsyncpa [#allocation8], 0
    %s16 = scalar_lea.sflag [#allocation8], 1
    %17 = vsyncpa %s16, 0
    %18 = vsyncpa [#allocation6], 0
    %s19 = scalar_lea.sflag [#allocation6], 1
    %20 = vsyncpa %s19, 0
    loop: start=0, step=1, limit=6
    $region2: #{tpu_custom_call.1} parent=1 // loop_pre_header
      _
    $region3: #{tpu_custom_call.1} parent=1 // loop_header
      %s22 = sphi 0, %s26
      %p23 = scmp.ge.s32.totalorder %s22, 6
      %s29 = sphi 0, %s41
      %s30 = sphi 0, %s37
      %s31 = sphi 0, %s29
      %s32 = sphi 0, %s30
      %s33 = sphi 0, %s31
      %s34 = sphi 0, %s32
      %s46 = sphi 0, %s48
      %s49 = sphi 0, %s46
      %s50 = sphi 0, %s49
      %s66 = sphi 0, %s50
      %s74 = sphi 0, %s76
      %s77 = sphi 0, %s74
      %s78 = sphi 0, %s77
      %s94 = sphi 0, %s78
      %s98 = sphi 0, %s98
      %s100 = sphi 0, %s98
      %s101 = sphi 0, %s100
      %s115 = sphi 0, %s101
      %s119 = sphi 0, %s119
      %s121 = sphi 0, %s119
      %s122 = sphi 0, %s121
      %s136 = sphi 0, %s122
      %s140 = sphi 0, %s140
      %s142 = sphi 0, %s140
      %s143 = sphi 0, %s142
      %s157 = sphi 0, %s143
      %s161 = sphi 0, %s161
      %s163 = sphi 0, %s161
      %s164 = sphi 0, %s163
      %s178 = sphi 0, %s164
      %s182 = sphi 0, %s182
      %s184 = sphi 0, %s182
      %s185 = sphi 0, %s184
      %s199 = sphi 0, %s185
      %s207 = sphi 0, %s209
      %s210 = sphi 0, %s207
      %s211 = sphi 0, %s210
      %s227 = sphi 0, %s211
    $region4: #{tpu_custom_call.1} parent=1 // loop_header_branch
      %25 = sbr.rel (%p23) target = $region8
    $region5: #{tpu_custom_call.1} parent=1 // loop_body
      %s27 = ssub.s32 %s22, 1
      %s28 = ssub.s32 %s22, 2
      %s35 = sadd.s32 1, %s30
      %p36 = scmp.ge.s32.totalorder %s35, 2
      %s37 = scalar_select %p36, 0, %s35
      %s38 = sadd.s32 1, %s29
      %s39 = scalar_select %p36, %s38, %s29
      %p40 = scmp.ge.s32.totalorder %s39, 2
      %s41 = scalar_select %p40, 0, %s39
      %s42 = ssub.s32 %s29, %s41
      %s43 = ssub.s32 %s30, %s37
      %s44 = sor.u32 %s42, %s43
      %p45 = scmp.eq.s32.totalorder %s44, 0
      %s47 = sadd.s32 %s46, 1
      %s48 = scalar_select %p45, %s46, %s47
      %p51 = pneg %p45
      %p52 = scmp.eq.s32.totalorder %s22, 3
      %p53 = por %p51, %p52
      %p54 = scmp.ne.s32.totalorder %s46, %s49
      %p55 = scmp.eq.s32.totalorder %s22, 0
      %p56 = por %p54, %p55
      %p57 = scmp.ne.s32.totalorder %s46, %s49
      %p58 = scmp.eq.s32.totalorder %s27, 3
      %p59 = por %p57, %p58
      %p60 = scmp.ne.s32.totalorder %s49, %s50
      %p61 = scmp.eq.s32.totalorder %s27, 0
      %p62 = por %p60, %p61
      %p63 = scmp.ne.s32.totalorder %s49, %s50
      %p64 = scmp.eq.s32.totalorder %s28, 3
      %p65 = por %p63, %p64
      %p67 = scmp.ne.s32.totalorder %s50, %s66
      %p68 = scmp.eq.s32.totalorder %s28, 0
      %p69 = por %p67, %p68
      %s70 = ssub.s32 %s29, %s41
      %s71 = ssub.s32 %s30, %s37
      %s72 = sor.u32 %s70, %s71
      %p73 = scmp.eq.s32.totalorder %s72, 0
      %s75 = sadd.s32 %s74, 1
      %s76 = scalar_select %p73, %s74, %s75
      %p79 = pneg %p73
      %p80 = scmp.eq.s32.totalorder %s22, 3
      %p81 = por %p79, %p80
      %p82 = scmp.ne.s32.totalorder %s74, %s77
      %p83 = scmp.eq.s32.totalorder %s22, 0
      %p84 = por %p82, %p83
      %p85 = scmp.ne.s32.totalorder %s74, %s77
      %p86 = scmp.eq.s32.totalorder %s27, 3
      %p87 = por %p85, %p86
      %p88 = scmp.ne.s32.totalorder %s77, %s78
      %p89 = scmp.eq.s32.totalorder %s27, 0
      %p90 = por %p88, %p89
      %p91 = scmp.ne.s32.totalorder %s77, %s78
      %p92 = scmp.eq.s32.totalorder %s28, 3
      %p93 = por %p91, %p92
      %p95 = scmp.ne.s32.totalorder %s78, %s94
      %p96 = scmp.eq.s32.totalorder %s28, 0
      %p97 = por %p95, %p96
      %s99 = sadd.s32 %s98, 1
      %p102 = scmp.eq.s32.totalorder %s22, 3
      %p103 = scmp.ne.s32.totalorder %s98, %s100
      %p104 = scmp.eq.s32.totalorder %s22, 0
      %p105 = por %p103, %p104
      %p106 = scmp.ne.s32.totalorder %s98, %s100
      %p107 = scmp.eq.s32.totalorder %s27, 3
      %p108 = por %p106, %p107
      %p109 = scmp.ne.s32.totalorder %s100, %s101
      %p110 = scmp.eq.s32.totalorder %s27, 0
      %p111 = por %p109, %p110
      %p112 = scmp.ne.s32.totalorder %s100, %s101
      %p113 = scmp.eq.s32.totalorder %s28, 3
      %p114 = por %p112, %p113
      %p116 = scmp.ne.s32.totalorder %s101, %s115
      %p117 = scmp.eq.s32.totalorder %s28, 0
      %p118 = por %p116, %p117
      %s120 = sadd.s32 %s119, 1
      %p123 = scmp.eq.s32.totalorder %s22, 3
      %p124 = scmp.ne.s32.totalorder %s119, %s121
      %p125 = scmp.eq.s32.totalorder %s22, 0
      %p126 = por %p124, %p125
      %p127 = scmp.ne.s32.totalorder %s119, %s121
      %p128 = scmp.eq.s32.totalorder %s27, 3
      %p129 = por %p127, %p128
      %p130 = scmp.ne.s32.totalorder %s121, %s122
      %p131 = scmp.eq.s32.totalorder %s27, 0
      %p132 = por %p130, %p131
      %p133 = scmp.ne.s32.totalorder %s121, %s122
      %p134 = scmp.eq.s32.totalorder %s28, 3
      %p135 = por %p133, %p134
      %p137 = scmp.ne.s32.totalorder %s122, %s136
      %p138 = scmp.eq.s32.totalorder %s28, 0
      %p139 = por %p137, %p138
      %s141 = sadd.s32 %s140, 1
      %p144 = scmp.eq.s32.totalorder %s22, 3
      %p145 = scmp.ne.s32.totalorder %s140, %s142
      %p146 = scmp.eq.s32.totalorder %s22, 0
      %p147 = por %p145, %p146
      %p148 = scmp.ne.s32.totalorder %s140, %s142
      %p149 = scmp.eq.s32.totalorder %s27, 3
      %p150 = por %p148, %p149
      %p151 = scmp.ne.s32.totalorder %s142, %s143
      %p152 = scmp.eq.s32.totalorder %s27, 0
      %p153 = por %p151, %p152
      %p154 = scmp.ne.s32.totalorder %s142, %s143
      %p155 = scmp.eq.s32.totalorder %s28, 3
      %p156 = por %p154, %p155
      %p158 = scmp.ne.s32.totalorder %s143, %s157
      %p159 = scmp.eq.s32.totalorder %s28, 0
      %p160 = por %p158, %p159
      %s162 = sadd.s32 %s161, 1
      %p165 = scmp.eq.s32.totalorder %s22, 3
      %p166 = scmp.ne.s32.totalorder %s161, %s163
      %p167 = scmp.eq.s32.totalorder %s22, 0
      %p168 = por %p166, %p167
      %p169 = scmp.ne.s32.totalorder %s161, %s163
      %p170 = scmp.eq.s32.totalorder %s27, 3
      %p171 = por %p169, %p170
      %p172 = scmp.ne.s32.totalorder %s163, %s164
      %p173 = scmp.eq.s32.totalorder %s27, 0
      %p174 = por %p172, %p173
      %p175 = scmp.ne.s32.totalorder %s163, %s164
      %p176 = scmp.eq.s32.totalorder %s28, 3
      %p177 = por %p175, %p176
      %p179 = scmp.ne.s32.totalorder %s164, %s178
      %p180 = scmp.eq.s32.totalorder %s28, 0
      %p181 = por %p179, %p180
      %s183 = sadd.s32 %s182, 1
      %p186 = scmp.eq.s32.totalorder %s22, 3
      %p187 = scmp.ne.s32.totalorder %s182, %s184
      %p188 = scmp.eq.s32.totalorder %s22, 0
      %p189 = por %p187, %p188
      %p190 = scmp.ne.s32.totalorder %s182, %s184
      %p191 = scmp.eq.s32.totalorder %s27, 3
      %p192 = por %p190, %p191
      %p193 = scmp.ne.s32.totalorder %s184, %s185
      %p194 = scmp.eq.s32.totalorder %s27, 0
      %p195 = por %p193, %p194
      %p196 = scmp.ne.s32.totalorder %s184, %s185
      %p197 = scmp.eq.s32.totalorder %s28, 3
      %p198 = por %p196, %p197
      %p200 = scmp.ne.s32.totalorder %s185, %s199
      %p201 = scmp.eq.s32.totalorder %s28, 0
      %p202 = por %p200, %p201
      %s203 = ssub.s32 %s29, %s41
      %s204 = ssub.s32 %s30, %s37
      %s205 = sor.u32 %s203, %s204
      %p206 = scmp.eq.s32.totalorder %s205, 0
      %s208 = sadd.s32 %s207, 1
      %s209 = scalar_select %p206, %s207, %s208
      %p212 = pneg %p206
      %p213 = scmp.eq.s32.totalorder %s22, 3
      %p214 = por %p212, %p213
      %p215 = scmp.ne.s32.totalorder %s207, %s210
      %p216 = scmp.eq.s32.totalorder %s22, 0
      %p217 = por %p215, %p216
      %p218 = scmp.ne.s32.totalorder %s207, %s210
      %p219 = scmp.eq.s32.totalorder %s27, 3
      %p220 = por %p218, %p219
      %p221 = scmp.ne.s32.totalorder %s210, %s211
      %p222 = scmp.eq.s32.totalorder %s27, 0
      %p223 = por %p221, %p222
      %p224 = scmp.ne.s32.totalorder %s210, %s211
      %p225 = scmp.eq.s32.totalorder %s28, 3
      %p226 = por %p224, %p225
      %p228 = scmp.ne.s32.totalorder %s211, %s227
      %p229 = scmp.eq.s32.totalorder %s28, 0
      %p230 = por %p228, %p229
      %p231 = scmp.le.s32.totalorder 1, %s22
      %p232 = scmp.lt.s32.totalorder %s22, 5
      %p233 = pnand %p231, %p232
      %p234 = pneg %p233
      // Predicated region
      $region9: #{tpu_custom_call.1} parent=5 // pred_check
        _
      $region10: #{tpu_custom_call.1} parent=5 // pred_check_branch
        %236 = sbr.rel (%p233) target = $region12
      $region11: #{tpu_custom_call.1} parent=5 // pred_region
        %s237 = ssub.s32 %s22, 1
        // Predicated region
        $region13: #{tpu_custom_call.1} parent=11 // pred_check
          %p238 = pneg %p111
        $region14: #{tpu_custom_call.1} parent=11 // pred_check_branch
          %240 = sbr.rel (%p238) target = $region16
        $region15: #{tpu_custom_call.1} parent=11 // pred_region
          %s242 = ssub.s32 2560, 2560
          %243 = vsyncadd [#allocation8], %s242
          %s244 = sshll.u32 [#allocation9], 4
          %s245 = int_to_ptr.vmem [resolvable:$true] %s244
          %250 = dma.hbm_to_vmem [thread:$0]  %s2, 2560, %s245, [#allocation8], 320, 320, 20
        $region16: #{tpu_custom_call.1} parent=11 // pred_fallthru
          _
        // Predicated region
        $region17: #{tpu_custom_call.1} parent=11 // pred_check
          %p251 = pneg %p132
        $region18: #{tpu_custom_call.1} parent=11 // pred_check_branch
          %253 = sbr.rel (%p251) target = $region20
        $region19: #{tpu_custom_call.1} parent=11 // pred_region
          _
        $region20: #{tpu_custom_call.1} parent=11 // pred_fallthru
          _
        // Predicated region
        $region21: #{tpu_custom_call.1} parent=11 // pred_check
          %p254 = pneg %p153
        $region22: #{tpu_custom_call.1} parent=11 // pred_check_branch
          %256 = sbr.rel (%p254) target = $region24
        $region23: #{tpu_custom_call.1} parent=11 // pred_region
          _
        $region24: #{tpu_custom_call.1} parent=11 // pred_fallthru
          _
        // Predicated region
        $region25: #{tpu_custom_call.1} parent=11 // pred_check
          %p257 = pneg %p174
        $region26: #{tpu_custom_call.1} parent=11 // pred_check_branch
          %259 = sbr.rel (%p257) target = $region28
        $region27: #{tpu_custom_call.1} parent=11 // pred_region
          _
        $region28: #{tpu_custom_call.1} parent=11 // pred_fallthru
          _
        // Predicated region
        $region29: #{tpu_custom_call.1} parent=11 // pred_check
          %p260 = pneg %p195
        $region30: #{tpu_custom_call.1} parent=11 // pred_check_branch
          %262 = sbr.rel (%p260) target = $region32
        $region31: #{tpu_custom_call.1} parent=11 // pred_region
          _
        $region32: #{tpu_custom_call.1} parent=11 // pred_fallthru
          _
      $region12: #{tpu_custom_call.1} parent=5 // pred_fallthru
        _
      %p263 = scmp.lt.s32.totalorder %s22, 4
      // Predicated region
      $region33: #{tpu_custom_call.1} parent=5 // pred_check
        %p264 = pneg %p263
      $region34: #{tpu_custom_call.1} parent=5 // pred_check_branch
        %266 = sbr.rel (%p264) target = $region36
      $region35: #{tpu_custom_call.1} parent=5 // pred_region
        // Predicated region
        $region37: #{tpu_custom_call.1} parent=35 // pred_check
          %p267 = pneg %p56
        $region38: #{tpu_custom_call.1} parent=35 // pred_check_branch
          %269 = sbr.rel (%p267) target = $region40
        $region39: #{tpu_custom_call.1} parent=35 // pred_region
          %s270 = sand.u32 %s46, 1
          %s271 = scalar_lea.sflag [#allocation5], %s270
          %s272 = sand.u32 %s46, 1
          %s273 = smul.addr %s272, 64
          %s274 = scalar_lea.vmem [#allocation4], %s273
          %s276 = ssub.s32 1024, 1024
          %277 = vsyncadd %s271, %s276
          %s278 = smul.addr %s30, 8
          %s279 = smul.addr %s29, 16
          %s280 = sadd.s32 %s278, %s279
          %s281 = smul.addr %s280, 128
          %s282 = scalar_lea.hbm %s0, %s281
          %s283 = sshll.u32 %s274, 4
          %s284 = int_to_ptr.vmem [resolvable:$true] %s283
          %289 = dma.hbm_to_vmem [thread:$0]  %s282, 1024, %s284, %s271, 256, 256, 16
        $region40: #{tpu_custom_call.1} parent=35 // pred_fallthru
          _
        // Predicated region
        $region41: #{tpu_custom_call.1} parent=35 // pred_check
          %p290 = pneg %p84
        $region42: #{tpu_custom_call.1} parent=35 // pred_check_branch
          %292 = sbr.rel (%p290) target = $region44
        $region43: #{tpu_custom_call.1} parent=35 // pred_region
          %s293 = sand.u32 %s22, 1
          %s294 = scalar_lea.sflag [#allocation8], %s293
          %s295 = sand.u32 %s74, 1
          %s296 = smul.addr %s295, 32
          %s297 = scalar_lea.vmem [#allocation7], %s296
          %s299 = ssub.s32 512, 512
          %300 = vsyncadd %s294, %s299
          %s301 = smul.addr %s30, 8
          %s302 = smul.addr %s29, 16
          %s303 = sadd.s32 %s301, %s302
          %s304 = smul.addr %s303, 64
          %s305 = scalar_lea.hbm %s1, %s304
          %s306 = sshll.u32 %s297, 4
          %s307 = int_to_ptr.vmem [resolvable:$true] %s306
          %312 = dma.hbm_to_vmem [thread:$0]  %s305, 512, %s307, %s294, 128, 128, 8
        $region44: #{tpu_custom_call.1} parent=35 // pred_fallthru
          _
      $region36: #{tpu_custom_call.1} parent=5 // pred_fallthru
        _
      %p313 = scmp.le.s32.totalorder 1, %s22
      %p314 = scmp.lt.s32.totalorder %s22, 5
      %p315 = pnand %p313, %p314
      %p316 = pneg %p315
      // Predicated region
      $region45: #{tpu_custom_call.1} parent=5 // pred_check
        _
      $region46: #{tpu_custom_call.1} parent=5 // pred_check_branch
        %318 = sbr.rel (%p315) target = $region48
      $region47: #{tpu_custom_call.1} parent=5 // pred_region
        %s319 = ssub.s32 %s22, 1
        %s320 = sand.u32 %s49, 1
        %s321 = scalar_lea.sflag [#allocation5], %s320
        %s322 = sand.u32 %s49, 1
        %s323 = smul.addr %s322, 64
        %s324 = scalar_lea.vmem [#allocation4], %s323
        // Predicated region
        $region49: #{tpu_custom_call.1} parent=47 // pred_check
          %p325 = pneg %p62
        $region50: #{tpu_custom_call.1} parent=47 // pred_check_branch
          %327 = sbr.rel (%p325) target = $region52
        $region51: #{tpu_custom_call.1} parent=47 // pred_region
          %328 = dma.done %s321, 1024
        $region52: #{tpu_custom_call.1} parent=47 // pred_fallthru
          _
        %s329 = sand.u32 %s27, 1
        %s330 = scalar_lea.sflag [#allocation8], %s329
        %s331 = sand.u32 %s77, 1
        %s332 = smul.addr %s331, 32
        %s333 = scalar_lea.vmem [#allocation7], %s332
        // Predicated region
        $region53: #{tpu_custom_call.1} parent=47 // pred_check
          %p334 = pneg %p90
        $region54: #{tpu_custom_call.1} parent=47 // pred_check_branch
          %336 = sbr.rel (%p334) target = $region56
        $region55: #{tpu_custom_call.1} parent=47 // pred_region
          %337 = dma.done %s330, 512
        $region56: #{tpu_custom_call.1} parent=47 // pred_fallthru
          _
        // Predicated region
        $region57: #{tpu_custom_call.1} parent=47 // pred_check
          %p338 = pneg %p111
        $region58: #{tpu_custom_call.1} parent=47 // pred_check_branch
          %340 = sbr.rel (%p338) target = $region60
        $region59: #{tpu_custom_call.1} parent=47 // pred_region
          %341 = dma.done [#allocation8], 2560
        $region60: #{tpu_custom_call.1} parent=47 // pred_fallthru
          _
        %s342 = sand.u32 %s49, 1
        %s343 = scalar_lea.sflag [#allocation5], %s342
        %s344 = sand.u32 %s49, 1
        %s345 = smul.addr %s344, 64
        %s346 = scalar_lea.vmem [#allocation4], %s345
        %p347 = pneg %p62
        %p348 = pneg %p59
        %s349 = sand.u32 %s27, 1
        %s350 = scalar_lea.sflag [#allocation8], %s349
        %s351 = sand.u32 %s77, 1
        %s352 = smul.addr %s351, 32
        %s353 = scalar_lea.vmem [#allocation7], %s352
        %p354 = pneg %p90
        %p355 = pneg %p87
        %p356 = pneg %p111
        %p357 = pneg %p108
        %p358 = pneg %p132
        %p359 = pneg %p129
        %p360 = pneg %p153
        %p361 = pneg %p150
        %p362 = pneg %p174
        %p363 = pneg %p171
        %p364 = pneg %p195
        %p365 = pneg %p192
        %p366 = pneg %p223
        %p367 = pneg %p220
        %s368 = sand.u32 %s210, 1
        %s369 = scalar_lea.sflag [#allocation6], %s368
        %s370 = sand.u32 %s210, 1
        %s371 = smul.addr %s370, 32
        %s372 = scalar_lea.vmem [#allocation10], %s371
        %s376 = smul.u32 %s32, 128
        %v377 = vlaneseq
        %v378 = vand.u32 %v377, 127
        %v379 = vadd.s32 %v378, 128
        %s380 = sadd.s32 %s376, 15
        %v381 = vstv %s380
        %v382 = vadd.s32 %v378, %v381
        %v383 = vadd.s32 %v379, %v381
        %vm384 = vcmp.lt.s32.totalorder %v382, 0
        %v385 = vsub.s32 0, %v382
        %v386 = vsel %vm384, %v385, %v382
        %v387 = vshrl.u32 %v386, 4
        %v388 = vand.u32 %v386, 15
        %v389 = vsub.s32 0, %v388
        %v390 = vsel %vm384, %v389, %v388
        %vm391 = vcmp.lt.s32.totalorder %v383, 0
        %v392 = vsub.s32 0, %v383
        %v393 = vsel %vm391, %v392, %v383
        %v394 = vshrl.u32 %v393, 4
        %v395 = vand.u32 %v393, 15
        %v396 = vsub.s32 0, %v395
        %v397 = vsel %vm391, %v396, %v395
        %vm398 = vcmp.ne.s32.totalorder %v390, 0
        %vm399 = vcmp.ne.s32.totalorder %v397, 0
        %vm400 = vcmp.lt.s32.totalorder %v390, 0
        %vm401 = vcmp.lt.s32.totalorder %v397, 0
        %vm402 = vmand %vm400, %vm398
        %vm403 = vmand %vm401, %vm399
        %v404 = vadd.s32 %v390, 16
        %v405 = vadd.s32 %v397, 16
        %v406 = vsel %vm402, %v404, %v390
        %v407 = vsel %vm403, %v405, %v397
        %vm408 = vcmp.ge.s32.totalorder %v406, 1
        %vm409 = vcmp.ge.s32.totalorder %v407, 1
        %vm410 = vcmp.le.s32.totalorder %v406, 14
        %vm411 = vcmp.le.s32.totalorder %v407, 14
        %v412 = vstv %s376
        %v413 = vadd.s32 %v378, %v412
        %vm414 = vcmp.lt.s32.totalorder %v413, 0
        %v415 = vsub.s32 0, %v413
        %v416 = vsel %vm414, %v415, %v413
        %v417 = vshrl.u32 %v416, 4
        %v418 = vand.u32 %v416, 15
        %v419 = vsub.s32 0, %v418
        %v420 = vsel %vm414, %v419, %v418
        %vm421 = vcmp.ne.s32.totalorder %v420, 0
        %vm422 = vcmp.lt.s32.totalorder %v420, 0
        %vm423 = vmand %vm422, %vm421
        %v424 = vadd.s32 %v420, 16
        %v425 = vsel %vm423, %v424, %v420
        %vm426 = vcmp.ge.s32.totalorder %v425, 1
        %vm427 = vcmp.le.s32.totalorder %v425, 14
        %v428 = vld [vmem:[%s324] sm:$0xff]
        %v429 = vld [vmem:[%s324 + $0x8] sm:$0xff]
        %v430 = vld [vmem:[%s324 + $0x10] sm:$0xff]
        %v431 = vld [vmem:[%s324 + $0x18] sm:$0xff]
        %v432 = vld [vmem:[%s324 + $0x20] sm:$0xff]
        %v433 = vld [vmem:[%s324 + $0x28] sm:$0xff]
        %v434 = vld [vmem:[%s324 + $0x30] sm:$0xff]
        %v435 = vld [vmem:[%s324 + $0x38] sm:$0xff]
        %v436 = vld [vmem:[%s333] sm:$0xff]
        %v437 = vld [vmem:[%s333 + $0x8] sm:$0xff]
        %v438 = vld [vmem:[%s333 + $0x10] sm:$0xff]
        %v439 = vld [vmem:[%s333 + $0x18] sm:$0xff]
        %v440 = vsel %vm408, 1, 0
        %v441 = vsel %vm409, 1, 0
        %vm442 = vcmp.eq.s32.totalorder %v440, 1
        %vm443 = vcmp.eq.s32.totalorder %v441, 1
        %v444 = vsel %vm442, %v428, 0.0
        %v445 = vsel %vm443, %v429, 0.0
        %v446 = vsel %vm442, %v430, 0.0
        %v447 = vsel %vm443, %v431, 0.0
        %v448 = vsel %vm442, %v432, 0.0
        %v449 = vsel %vm443, %v433, 0.0
        %v450 = vsel %vm442, %v434, 0.0
        %v451 = vsel %vm443, %v435, 0.0
        %vm452 = vmpackc.low %vm443, %vm442
        %v453 = vsel %vm452, %v436, 0
        %v454 = vsel %vm452, %v437, 0
        %v455 = vsel %vm452, %v438, 0
        %v456 = vsel %vm452, %v439, 0
        %v457 = vpack.c.bf16 %v446, %v444
        %v458 = vpack.c.bf16 %v447, %v445
        %v459 = vpack.c.bf16 %v450, %v448
        %v460 = vpack.c.bf16 %v451, %v449
        %461 = vst [vmem:[#allocation2] sm:$0xff] %v457
        %vm462 = vcmask 277504
        %463 = vst.msk [vmem:[#allocation2 + $0x8] sm:$0xff] %vm462, %v458
        %464 = vst [vmem:[#allocation2 + $0x10] sm:$0xff] %v459
        %465 = vst.msk [vmem:[#allocation2 + $0x18] sm:$0xff] %vm462, %v460
        %v470 = vunpack.c.l.b16 %v453
        %v471 = vunpack.c.h.b16 %v453
        %v472 = vunpack.c.l.b16 %v454
        %v473 = vunpack.c.h.b16 %v454
        %v474 = vunpack.c.l.b16 %v455
        %v475 = vunpack.c.h.b16 %v455
        %v476 = vunpack.c.l.b16 %v456
        %v477 = vunpack.c.h.b16 %v456
        %v478 = vpack.c.b16 %v472, %v470
        %v479 = vpack.c.b16 %v473, %v471
        %v480 = vpack.c.b16 %v476, %v474
        %v481 = vpack.c.b16 %v477, %v475
        %486 = vst [vmem:[#allocation2 + $0x120] sm:$0xff] %v478
        %487 = vst.msk [vmem:[#allocation2 + $0x128] sm:$0xff] %vm462, %v479
        %488 = vst [vmem:[#allocation2 + $0x130] sm:$0xff] %v480
        %489 = vst.msk [vmem:[#allocation2 + $0x138] sm:$0xff] %vm462, %v481
        %v490 = vld [vmem:[%s324] sm:$0xff]
        %v491 = vld [vmem:[%s324 + $0x8] sm:$0xff]
        %v492 = vld [vmem:[%s324 + $0x10] sm:$0xff]
        %v493 = vld [vmem:[%s324 + $0x18] sm:$0xff]
        %v494 = vld [vmem:[%s324 + $0x20] sm:$0xff]
        %v495 = vld [vmem:[%s324 + $0x28] sm:$0xff]
        %v496 = vld [vmem:[%s324 + $0x30] sm:$0xff]
        %v497 = vld [vmem:[%s324 + $0x38] sm:$0xff]
        %v498 = vld [vmem:[%s333] sm:$0xff]
        %v499 = vld [vmem:[%s333 + $0x8] sm:$0xff]
        %v500 = vld [vmem:[%s333 + $0x10] sm:$0xff]
        %v501 = vld [vmem:[%s333 + $0x18] sm:$0xff]
        %v502 = vpack.c.bf16 %v492, %v490
        %v503 = vpack.c.bf16 %v493, %v491
        %v504 = vpack.c.bf16 %v496, %v494
        %v505 = vpack.c.bf16 %v497, %v495
        %510 = vrot.lane.b32.xlu0 %v502, 127
        %v511 = vpop.permute.xlu0 %510
        %512 = vrot.lane.b32.xlu0 %v503, 127
        %v513 = vpop.permute.xlu0 %512
        %514 = vrot.lane.b32.xlu0 %v504, 127
        %v515 = vpop.permute.xlu0 %514
        %516 = vrot.lane.b32.xlu0 %v505, 127
        %v517 = vpop.permute.xlu0 %516
        %vm518 = vcmask 1039360
        %v519 = vsel %vm518, %v511, %v513
        %v520 = vsel %vm518, %v515, %v517
        %525 = vst [vmem:[#allocation2 + $0x20] sm:$0xff] %v519
        %526 = vst.msk [vmem:[#allocation2 + $0x28] sm:$0xff] %vm462, %v513
        %527 = vst [vmem:[#allocation2 + $0x30] sm:$0xff] %v520
        %528 = vst.msk [vmem:[#allocation2 + $0x38] sm:$0xff] %vm462, %v517
        %v533 = vunpack.c.l.b16 %v498
        %v534 = vunpack.c.h.b16 %v498
        %v535 = vunpack.c.l.b16 %v499
        %v536 = vunpack.c.h.b16 %v499
        %v537 = vunpack.c.l.b16 %v500
        %v538 = vunpack.c.h.b16 %v500
        %v539 = vunpack.c.l.b16 %v501
        %v540 = vunpack.c.h.b16 %v501
        %v541 = vpack.c.b16 %v535, %v533
        %v542 = vpack.c.b16 %v536, %v534
        %v543 = vpack.c.b16 %v539, %v537
        %v544 = vpack.c.b16 %v540, %v538
        %545 = vrot.lane.b32.xlu0 %v541, 127
        %v546 = vpop.permute.xlu0 %545
        %547 = vrot.lane.b32.xlu0 %v542, 127
        %v548 = vpop.permute.xlu0 %547
        %549 = vrot.lane.b32.xlu0 %v543, 127
        %v550 = vpop.permute.xlu0 %549
        %551 = vrot.lane.b32.xlu0 %v544, 127
        %v552 = vpop.permute.xlu0 %551
        %v553 = vsel %vm518, %v546, %v548
        %v554 = vsel %vm518, %v550, %v552
        %559 = vst [vmem:[#allocation2 + $0x140] sm:$0xff] %v553
        %560 = vst.msk [vmem:[#allocation2 + $0x148] sm:$0xff] %vm462, %v548
        %561 = vst [vmem:[#allocation2 + $0x150] sm:$0xff] %v554
        %562 = vst.msk [vmem:[#allocation2 + $0x158] sm:$0xff] %vm462, %v552
        %v563 = vld [vmem:[%s324] sm:$0xff]
        %v564 = vld [vmem:[%s324 + $0x8] sm:$0xff]
        %v565 = vld [vmem:[%s324 + $0x10] sm:$0xff]
        %v566 = vld [vmem:[%s324 + $0x18] sm:$0xff]
        %v567 = vld [vmem:[%s324 + $0x20] sm:$0xff]
        %v568 = vld [vmem:[%s324 + $0x28] sm:$0xff]
        %v569 = vld [vmem:[%s324 + $0x30] sm:$0xff]
        %v570 = vld [vmem:[%s324 + $0x38] sm:$0xff]
        %v571 = vld [vmem:[%s333] sm:$0xff]
        %v572 = vld [vmem:[%s333 + $0x8] sm:$0xff]
        %v573 = vld [vmem:[%s333 + $0x10] sm:$0xff]
        %v574 = vld [vmem:[%s333 + $0x18] sm:$0xff]
        %v575 = vsel %vm410, 1, 0
        %v576 = vsel %vm411, 1, 0
        %vm577 = vcmp.eq.s32.totalorder %v575, 1
        %vm578 = vcmp.eq.s32.totalorder %v576, 1
        %587 = vrot.lane.b32.xlu0 %v563, 126
        %v588 = vpop.permute.xlu0 %587
        %589 = vrot.lane.b32.xlu0 %v564, 126
        %v590 = vpop.permute.xlu0 %589
        %591 = vrot.lane.b32.xlu0 %v565, 126
        %v592 = vpop.permute.xlu0 %591
        %593 = vrot.lane.b32.xlu0 %v566, 126
        %v594 = vpop.permute.xlu0 %593
        %595 = vrot.lane.b32.xlu0 %v567, 126
        %v596 = vpop.permute.xlu0 %595
        %597 = vrot.lane.b32.xlu0 %v568, 126
        %v598 = vpop.permute.xlu0 %597
        %599 = vrot.lane.b32.xlu0 %v569, 126
        %v600 = vpop.permute.xlu0 %599
        %601 = vrot.lane.b32.xlu0 %v570, 126
        %v602 = vpop.permute.xlu0 %601
        %vm603 = vcmask 1031168
        %v604 = vsel %vm603, %v588, %v590
        %v605 = vsel %vm603, %v592, %v594
        %v606 = vsel %vm603, %v596, %v598
        %v607 = vsel %vm603, %v600, %v602
        %v616 = vsel %vm577, %v604, 0.0
        %v617 = vsel %vm578, %v590, 0.0
        %v618 = vsel %vm577, %v605, 0.0
        %v619 = vsel %vm578, %v594, 0.0
        %v620 = vsel %vm577, %v606, 0.0
        %v621 = vsel %vm578, %v598, 0.0
        %v622 = vsel %vm577, %v607, 0.0
        %v623 = vsel %vm578, %v602, 0.0
        %vm624 = vmpackc.low %vm578, %vm577
        %v625 = vsel %vm624, 65537, 0
        %626 = vrot.lane.b32.xlu0 %v625, 2
        %v627 = vpop.permute.xlu0 %626
        %v628 = vrot.slane %v627, 4
        %vm629 = vcmask 15360
        %v630 = vsel %vm629, %v628, %v627
        %vm631 = vcmp.ne.s16.totalorder %v630, 0
        %v632 = vsel %vm631, %v571, 0
        %v633 = vsel %vm631, %v572, 0
        %v634 = vsel %vm631, %v573, 0
        %v635 = vsel %vm631, %v574, 0
        %v636 = vpack.c.bf16 %v618, %v616
        %v637 = vpack.c.bf16 %v619, %v617
        %v638 = vpack.c.bf16 %v622, %v620
        %v639 = vpack.c.bf16 %v623, %v621
        %640 = vst [vmem:[#allocation2 + $0x40] sm:$0xff] %v636
        %641 = vst.msk [vmem:[#allocation2 + $0x48] sm:$0xff] %vm462, %v637
        %642 = vst [vmem:[#allocation2 + $0x50] sm:$0xff] %v638
        %643 = vst.msk [vmem:[#allocation2 + $0x58] sm:$0xff] %vm462, %v639
        %v648 = vunpack.c.l.b16 %v632
        %v649 = vunpack.c.h.b16 %v632
        %v650 = vunpack.c.l.b16 %v633
        %v651 = vunpack.c.h.b16 %v633
        %v652 = vunpack.c.l.b16 %v634
        %v653 = vunpack.c.h.b16 %v634
        %v654 = vunpack.c.l.b16 %v635
        %v655 = vunpack.c.h.b16 %v635
        %v656 = vpack.c.b16 %v650, %v648
        %v657 = vpack.c.b16 %v651, %v649
        %v658 = vpack.c.b16 %v654, %v652
        %v659 = vpack.c.b16 %v655, %v653
        %660 = vrot.lane.b32.xlu0 %v656, 126
        %v661 = vpop.permute.xlu0 %660
        %662 = vrot.lane.b32.xlu0 %v657, 126
        %v663 = vpop.permute.xlu0 %662
        %664 = vrot.lane.b32.xlu0 %v658, 126
        %v665 = vpop.permute.xlu0 %664
        %666 = vrot.lane.b32.xlu0 %v659, 126
        %v667 = vpop.permute.xlu0 %666
        %vm668 = vcmask 1031168
        %v669 = vsel %vm668, %v661, %v663
        %v670 = vsel %vm668, %v665, %v667
        %675 = vst [vmem:[#allocation2 + $0x160] sm:$0xff] %v669
        %676 = vst.msk [vmem:[#allocation2 + $0x168] sm:$0xff] %vm462, %v663
        %677 = vst [vmem:[#allocation2 + $0x170] sm:$0xff] %v670
        %678 = vst.msk [vmem:[#allocation2 + $0x178] sm:$0xff] %vm462, %v667
        %v679 = vld [vmem:[%s324] sm:$0xff]
        %v680 = vld [vmem:[%s324 + $0x8] sm:$0xff]
        %v681 = vld [vmem:[%s324 + $0x10] sm:$0xff]
        %v682 = vld [vmem:[%s324 + $0x18] sm:$0xff]
        %v683 = vld [vmem:[%s324 + $0x20] sm:$0xff]
        %v684 = vld [vmem:[%s324 + $0x28] sm:$0xff]
        %v685 = vld [vmem:[%s324 + $0x30] sm:$0xff]
        %v686 = vld [vmem:[%s324 + $0x38] sm:$0xff]
        %v687 = vld [vmem:[%s333] sm:$0xff]
        %v688 = vld [vmem:[%s333 + $0x8] sm:$0xff]
        %v689 = vld [vmem:[%s333 + $0x10] sm:$0xff]
        %v690 = vld [vmem:[%s333 + $0x18] sm:$0xff]
        %699 = vrot.lane.b32.xlu0 %v679, 112
        %v700 = vpop.permute.xlu0 %699
        %701 = vrot.lane.b32.xlu0 %v680, 112
        %v702 = vpop.permute.xlu0 %701
        %703 = vrot.lane.b32.xlu0 %v681, 112
        %v704 = vpop.permute.xlu0 %703
        %705 = vrot.lane.b32.xlu0 %v682, 112
        %v706 = vpop.permute.xlu0 %705
        %707 = vrot.lane.b32.xlu0 %v683, 112
        %v708 = vpop.permute.xlu0 %707
        %709 = vrot.lane.b32.xlu0 %v684, 112
        %v710 = vpop.permute.xlu0 %709
        %711 = vrot.lane.b32.xlu0 %v685, 112
        %v712 = vpop.permute.xlu0 %711
        %713 = vrot.lane.b32.xlu0 %v686, 112
        %v714 = vpop.permute.xlu0 %713
        %vm715 = vcmask 916480
        %v716 = vsel %vm715, %v700, %v702
        %v717 = vsel %vm715, %v704, %v706
        %v718 = vsel %vm715, %v708, %v710
        %v719 = vsel %vm715, %v712, %v714
        %v728 = vsel %vm442, %v716, 0.0
        %v729 = vsel %vm443, %v702, 0.0
        %v730 = vsel %vm442, %v717, 0.0
        %v731 = vsel %vm443, %v706, 0.0
        %v732 = vsel %vm442, %v718, 0.0
        %v733 = vsel %vm443, %v710, 0.0
        %v734 = vsel %vm442, %v719, 0.0
        %v735 = vsel %vm443, %v714, 0.0
        %v736 = vsel %vm452, 65537, 0
        %737 = vrot.lane.b32.xlu0 %v736, 16
        %v738 = vpop.permute.xlu0 %737
        %v739 = vrot.slane %v738, 4
        %vm740 = vcmask 130048
        %v741 = vsel %vm740, %v739, %v738
        %vm742 = vcmp.ne.s16.totalorder %v741, 0
        %v743 = vsel %vm742, %v687, 0
        %v744 = vsel %vm742, %v688, 0
        %v745 = vsel %vm742, %v689, 0
        %v746 = vsel %vm742, %v690, 0
        %v747 = vpack.c.bf16 %v730, %v728
        %v748 = vpack.c.bf16 %v731, %v729
        %v749 = vpack.c.bf16 %v734, %v732
        %v750 = vpack.c.bf16 %v735, %v733
        %751 = vst [vmem:[#allocation2 + $0x60] sm:$0xff] %v747
        %752 = vst.msk [vmem:[#allocation2 + $0x68] sm:$0xff] %vm462, %v748
        %753 = vst [vmem:[#allocation2 + $0x70] sm:$0xff] %v749
        %754 = vst.msk [vmem:[#allocation2 + $0x78] sm:$0xff] %vm462, %v750
        %v759 = vunpack.c.l.b16 %v743
        %v760 = vunpack.c.h.b16 %v743
        %v761 = vunpack.c.l.b16 %v744
        %v762 = vunpack.c.h.b16 %v744
        %v763 = vunpack.c.l.b16 %v745
        %v764 = vunpack.c.h.b16 %v745
        %v765 = vunpack.c.l.b16 %v746
        %v766 = vunpack.c.h.b16 %v746
        %v767 = vpack.c.b16 %v761, %v759
        %v768 = vpack.c.b16 %v762, %v760
        %v769 = vpack.c.b16 %v765, %v763
        %v770 = vpack.c.b16 %v766, %v764
        %771 = vrot.lane.b32.xlu0 %v767, 112
        %v772 = vpop.permute.xlu0 %771
        %773 = vrot.lane.b32.xlu0 %v768, 112
        %v774 = vpop.permute.xlu0 %773
        %775 = vrot.lane.b32.xlu0 %v769, 112
        %v776 = vpop.permute.xlu0 %775
        %777 = vrot.lane.b32.xlu0 %v770, 112
        %v778 = vpop.permute.xlu0 %777
        %vm779 = vcmask 916480
        %v780 = vsel %vm779, %v772, %v774
        %v781 = vsel %vm779, %v776, %v778
        %786 = vst [vmem:[#allocation2 + $0x180] sm:$0xff] %v780
        %787 = vst.msk [vmem:[#allocation2 + $0x188] sm:$0xff] %vm462, %v774
        %788 = vst [vmem:[#allocation2 + $0x190] sm:$0xff] %v781
        %789 = vst.msk [vmem:[#allocation2 + $0x198] sm:$0xff] %vm462, %v778
        %v790 = vld [vmem:[%s324] sm:$0xff]
        %v791 = vld [vmem:[%s324 + $0x8] sm:$0xff]
        %v792 = vld [vmem:[%s324 + $0x10] sm:$0xff]
        %v793 = vld [vmem:[%s324 + $0x18] sm:$0xff]
        %v794 = vld [vmem:[%s324 + $0x20] sm:$0xff]
        %v795 = vld [vmem:[%s324 + $0x28] sm:$0xff]
        %v796 = vld [vmem:[%s324 + $0x30] sm:$0xff]
        %v797 = vld [vmem:[%s324 + $0x38] sm:$0xff]
        %v798 = vld [vmem:[%s333] sm:$0xff]
        %v799 = vld [vmem:[%s333 + $0x8] sm:$0xff]
        %v800 = vld [vmem:[%s333 + $0x10] sm:$0xff]
        %v801 = vld [vmem:[%s333 + $0x18] sm:$0xff]
        %v802 = vpack.c.bf16 %v792, %v790
        %v803 = vpack.c.bf16 %v793, %v791
        %v804 = vpack.c.bf16 %v796, %v794
        %v805 = vpack.c.bf16 %v797, %v795
        %810 = vrot.lane.b32.xlu0 %v802, 111
        %v811 = vpop.permute.xlu0 %810
        %812 = vrot.lane.b32.xlu0 %v803, 111
        %v813 = vpop.permute.xlu0 %812
        %814 = vrot.lane.b32.xlu0 %v804, 111
        %v815 = vpop.permute.xlu0 %814
        %816 = vrot.lane.b32.xlu0 %v805, 111
        %v817 = vpop.permute.xlu0 %816
        %vm818 = vcmask 908288
        %v819 = vsel %vm818, %v811, %v813
        %v820 = vsel %vm818, %v815, %v817
        %825 = vst [vmem:[#allocation2 + $0x80] sm:$0xff] %v819
        %826 = vst.msk [vmem:[#allocation2 + $0x88] sm:$0xff] %vm462, %v813
        %827 = vst [vmem:[#allocation2 + $0x90] sm:$0xff] %v820
        %828 = vst.msk [vmem:[#allocation2 + $0x98] sm:$0xff] %vm462, %v817
        %v833 = vunpack.c.l.b16 %v798
        %v834 = vunpack.c.h.b16 %v798
        %v835 = vunpack.c.l.b16 %v799
        %v836 = vunpack.c.h.b16 %v799
        %v837 = vunpack.c.l.b16 %v800
        %v838 = vunpack.c.h.b16 %v800
        %v839 = vunpack.c.l.b16 %v801
        %v840 = vunpack.c.h.b16 %v801
        %v841 = vpack.c.b16 %v835, %v833
        %v842 = vpack.c.b16 %v836, %v834
        %v843 = vpack.c.b16 %v839, %v837
        %v844 = vpack.c.b16 %v840, %v838
        %845 = vrot.lane.b32.xlu0 %v841, 111
        %v846 = vpop.permute.xlu0 %845
        %847 = vrot.lane.b32.xlu0 %v842, 111
        %v848 = vpop.permute.xlu0 %847
        %849 = vrot.lane.b32.xlu0 %v843, 111
        %v850 = vpop.permute.xlu0 %849
        %851 = vrot.lane.b32.xlu0 %v844, 111
        %v852 = vpop.permute.xlu0 %851
        %v853 = vsel %vm818, %v846, %v848
        %v854 = vsel %vm818, %v850, %v852
        %859 = vst [vmem:[#allocation2 + $0x1a0] sm:$0xff] %v853
        %860 = vst.msk [vmem:[#allocation2 + $0x1a8] sm:$0xff] %vm462, %v848
        %861 = vst [vmem:[#allocation2 + $0x1b0] sm:$0xff] %v854
        %862 = vst.msk [vmem:[#allocation2 + $0x1b8] sm:$0xff] %vm462, %v852
        %v863 = vld [vmem:[%s324] sm:$0xff]
        %v864 = vld [vmem:[%s324 + $0x8] sm:$0xff]
        %v865 = vld [vmem:[%s324 + $0x10] sm:$0xff]
        %v866 = vld [vmem:[%s324 + $0x18] sm:$0xff]
        %v867 = vld [vmem:[%s324 + $0x20] sm:$0xff]
        %v868 = vld [vmem:[%s324 + $0x28] sm:$0xff]
        %v869 = vld [vmem:[%s324 + $0x30] sm:$0xff]
        %v870 = vld [vmem:[%s324 + $0x38] sm:$0xff]
        %v871 = vld [vmem:[%s333] sm:$0xff]
        %v872 = vld [vmem:[%s333 + $0x8] sm:$0xff]
        %v873 = vld [vmem:[%s333 + $0x10] sm:$0xff]
        %v874 = vld [vmem:[%s333 + $0x18] sm:$0xff]
        %883 = vrot.lane.b32.xlu0 %v863, 110
        %v884 = vpop.permute.xlu0 %883
        %885 = vrot.lane.b32.xlu0 %v864, 110
        %v886 = vpop.permute.xlu0 %885
        %887 = vrot.lane.b32.xlu0 %v865, 110
        %v888 = vpop.permute.xlu0 %887
        %889 = vrot.lane.b32.xlu0 %v866, 110
        %v890 = vpop.permute.xlu0 %889
        %891 = vrot.lane.b32.xlu0 %v867, 110
        %v892 = vpop.permute.xlu0 %891
        %893 = vrot.lane.b32.xlu0 %v868, 110
        %v894 = vpop.permute.xlu0 %893
        %895 = vrot.lane.b32.xlu0 %v869, 110
        %v896 = vpop.permute.xlu0 %895
        %897 = vrot.lane.b32.xlu0 %v870, 110
        %v898 = vpop.permute.xlu0 %897
        %vm899 = vcmask 900096
        %v900 = vsel %vm899, %v884, %v886
        %v901 = vsel %vm899, %v888, %v890
        %v902 = vsel %vm899, %v892, %v894
        %v903 = vsel %vm899, %v896, %v898
        %v912 = vsel %vm577, %v900, 0.0
        %v913 = vsel %vm578, %v886, 0.0
        %v914 = vsel %vm577, %v901, 0.0
        %v915 = vsel %vm578, %v890, 0.0
        %v916 = vsel %vm577, %v902, 0.0
        %v917 = vsel %vm578, %v894, 0.0
        %v918 = vsel %vm577, %v903, 0.0
        %v919 = vsel %vm578, %v898, 0.0
        %920 = vrot.lane.b32.xlu0 %v625, 18
        %v921 = vpop.permute.xlu0 %920
        %v922 = vrot.slane %v921, 4
        %vm923 = vcmask 146432
        %v924 = vsel %vm923, %v922, %v921
        %vm925 = vcmp.ne.s16.totalorder %v924, 0
        %v926 = vsel %vm925, %v871, 0
        %v927 = vsel %vm925, %v872, 0
        %v928 = vsel %vm925, %v873, 0
        %v929 = vsel %vm925, %v874, 0
        %v930 = vpack.c.bf16 %v914, %v912
        %v931 = vpack.c.bf16 %v915, %v913
        %v932 = vpack.c.bf16 %v918, %v916
        %v933 = vpack.c.bf16 %v919, %v917
        %934 = vst [vmem:[#allocation2 + $0xa0] sm:$0xff] %v930
        %935 = vst.msk [vmem:[#allocation2 + $0xa8] sm:$0xff] %vm462, %v931
        %936 = vst [vmem:[#allocation2 + $0xb0] sm:$0xff] %v932
        %937 = vst.msk [vmem:[#allocation2 + $0xb8] sm:$0xff] %vm462, %v933
        %v942 = vunpack.c.l.b16 %v926
        %v943 = vunpack.c.h.b16 %v926
        %v944 = vunpack.c.l.b16 %v927
        %v945 = vunpack.c.h.b16 %v927
        %v946 = vunpack.c.l.b16 %v928
        %v947 = vunpack.c.h.b16 %v928
        %v948 = vunpack.c.l.b16 %v929
        %v949 = vunpack.c.h.b16 %v929
        %v950 = vpack.c.b16 %v944, %v942
        %v951 = vpack.c.b16 %v945, %v943
        %v952 = vpack.c.b16 %v948, %v946
        %v953 = vpack.c.b16 %v949, %v947
        %954 = vrot.lane.b32.xlu0 %v950, 110
        %v955 = vpop.permute.xlu0 %954
        %956 = vrot.lane.b32.xlu0 %v951, 110
        %v957 = vpop.permute.xlu0 %956
        %958 = vrot.lane.b32.xlu0 %v952, 110
        %v959 = vpop.permute.xlu0 %958
        %960 = vrot.lane.b32.xlu0 %v953, 110
        %v961 = vpop.permute.xlu0 %960
        %vm962 = vcmask 900096
        %v963 = vsel %vm962, %v955, %v957
        %v964 = vsel %vm962, %v959, %v961
        %969 = vst [vmem:[#allocation2 + $0x1c0] sm:$0xff] %v963
        %970 = vst.msk [vmem:[#allocation2 + $0x1c8] sm:$0xff] %vm462, %v957
        %971 = vst [vmem:[#allocation2 + $0x1d0] sm:$0xff] %v964
        %972 = vst.msk [vmem:[#allocation2 + $0x1d8] sm:$0xff] %vm462, %v961
        %v973 = vld [vmem:[%s324] sm:$0xff]
        %v974 = vld [vmem:[%s324 + $0x8] sm:$0xff]
        %v975 = vld [vmem:[%s324 + $0x10] sm:$0xff]
        %v976 = vld [vmem:[%s324 + $0x18] sm:$0xff]
        %v977 = vld [vmem:[%s324 + $0x20] sm:$0xff]
        %v978 = vld [vmem:[%s324 + $0x28] sm:$0xff]
        %v979 = vld [vmem:[%s324 + $0x30] sm:$0xff]
        %v980 = vld [vmem:[%s324 + $0x38] sm:$0xff]
        %v981 = vld [vmem:[%s333] sm:$0xff]
        %v982 = vld [vmem:[%s333 + $0x8] sm:$0xff]
        %v983 = vld [vmem:[%s333 + $0x10] sm:$0xff]
        %v984 = vld [vmem:[%s333 + $0x18] sm:$0xff]
        %993 = vrot.lane.b32.xlu0 %v973, 96
        %v994 = vpop.permute.xlu0 %993
        %995 = vrot.lane.b32.xlu0 %v974, 96
        %v996 = vpop.permute.xlu0 %995
        %997 = vrot.lane.b32.xlu0 %v975, 96
        %v998 = vpop.permute.xlu0 %997
        %999 = vrot.lane.b32.xlu0 %v976, 96
        %v1000 = vpop.permute.xlu0 %999
        %1001 = vrot.lane.b32.xlu0 %v977, 96
        %v1002 = vpop.permute.xlu0 %1001
        %1003 = vrot.lane.b32.xlu0 %v978, 96
        %v1004 = vpop.permute.xlu0 %1003
        %1005 = vrot.lane.b32.xlu0 %v979, 96
        %v1006 = vpop.permute.xlu0 %1005
        %1007 = vrot.lane.b32.xlu0 %v980, 96
        %v1008 = vpop.permute.xlu0 %1007
        %vm1009 = vcmask 785408
        %v1010 = vsel %vm1009, %v994, %v996
        %v1011 = vsel %vm1009, %v998, %v1000
        %v1012 = vsel %vm1009, %v1002, %v1004
        %v1013 = vsel %vm1009, %v1006, %v1008
        %v1022 = vsel %vm442, %v1010, 0.0
        %v1023 = vsel %vm443, %v996, 0.0
        %v1024 = vsel %vm442, %v1011, 0.0
        %v1025 = vsel %vm443, %v1000, 0.0
        %v1026 = vsel %vm442, %v1012, 0.0
        %v1027 = vsel %vm443, %v1004, 0.0
        %v1028 = vsel %vm442, %v1013, 0.0
        %v1029 = vsel %vm443, %v1008, 0.0
        %1030 = vrot.lane.b32.xlu0 %v736, 32
        %v1031 = vpop.permute.xlu0 %1030
        %v1032 = vrot.slane %v1031, 4
        %vm1033 = vcmask 261120
        %v1034 = vsel %vm1033, %v1032, %v1031
        %vm1035 = vcmp.ne.s16.totalorder %v1034, 0
        %v1036 = vsel %vm1035, %v981, 0
        %v1037 = vsel %vm1035, %v982, 0
        %v1038 = vsel %vm1035, %v983, 0
        %v1039 = vsel %vm1035, %v984, 0
        %v1040 = vpack.c.bf16 %v1024, %v1022
        %v1041 = vpack.c.bf16 %v1025, %v1023
        %v1042 = vpack.c.bf16 %v1028, %v1026
        %v1043 = vpack.c.bf16 %v1029, %v1027
        %1044 = vst [vmem:[#allocation2 + $0xc0] sm:$0xff] %v1040
        %1045 = vst.msk [vmem:[#allocation2 + $0xc8] sm:$0xff] %vm462, %v1041
        %1046 = vst [vmem:[#allocation2 + $0xd0] sm:$0xff] %v1042
        %1047 = vst.msk [vmem:[#allocation2 + $0xd8] sm:$0xff] %vm462, %v1043
        %v1052 = vunpack.c.l.b16 %v1036
        %v1053 = vunpack.c.h.b16 %v1036
        %v1054 = vunpack.c.l.b16 %v1037
        %v1055 = vunpack.c.h.b16 %v1037
        %v1056 = vunpack.c.l.b16 %v1038
        %v1057 = vunpack.c.h.b16 %v1038
        %v1058 = vunpack.c.l.b16 %v1039
        %v1059 = vunpack.c.h.b16 %v1039
        %v1060 = vpack.c.b16 %v1054, %v1052
        %v1061 = vpack.c.b16 %v1055, %v1053
        %v1062 = vpack.c.b16 %v1058, %v1056
        %v1063 = vpack.c.b16 %v1059, %v1057
        %1064 = vrot.lane.b32.xlu0 %v1060, 96
        %v1065 = vpop.permute.xlu0 %1064
        %1066 = vrot.lane.b32.xlu0 %v1061, 96
        %v1067 = vpop.permute.xlu0 %1066
        %1068 = vrot.lane.b32.xlu0 %v1062, 96
        %v1069 = vpop.permute.xlu0 %1068
        %1070 = vrot.lane.b32.xlu0 %v1063, 96
        %v1071 = vpop.permute.xlu0 %1070
        %vm1072 = vcmask 785408
        %v1073 = vsel %vm1072, %v1065, %v1067
        %v1074 = vsel %vm1072, %v1069, %v1071
        %1079 = vst [vmem:[#allocation2 + $0x1e0] sm:$0xff] %v1073
        %1080 = vst.msk [vmem:[#allocation2 + $0x1e8] sm:$0xff] %vm462, %v1067
        %1081 = vst [vmem:[#allocation2 + $0x1f0] sm:$0xff] %v1074
        %1082 = vst.msk [vmem:[#allocation2 + $0x1f8] sm:$0xff] %vm462, %v1071
        %v1083 = vld [vmem:[%s324] sm:$0xff]
        %v1084 = vld [vmem:[%s324 + $0x8] sm:$0xff]
        %v1085 = vld [vmem:[%s324 + $0x10] sm:$0xff]
        %v1086 = vld [vmem:[%s324 + $0x18] sm:$0xff]
        %v1087 = vld [vmem:[%s324 + $0x20] sm:$0xff]
        %v1088 = vld [vmem:[%s324 + $0x28] sm:$0xff]
        %v1089 = vld [vmem:[%s324 + $0x30] sm:$0xff]
        %v1090 = vld [vmem:[%s324 + $0x38] sm:$0xff]
        %v1091 = vld [vmem:[%s333] sm:$0xff]
        %v1092 = vld [vmem:[%s333 + $0x8] sm:$0xff]
        %v1093 = vld [vmem:[%s333 + $0x10] sm:$0xff]
        %v1094 = vld [vmem:[%s333 + $0x18] sm:$0xff]
        %v1095 = vpack.c.bf16 %v1085, %v1083
        %v1096 = vpack.c.bf16 %v1086, %v1084
        %v1097 = vpack.c.bf16 %v1089, %v1087
        %v1098 = vpack.c.bf16 %v1090, %v1088
        %1103 = vrot.lane.b32.xlu0 %v1095, 95
        %v1104 = vpop.permute.xlu0 %1103
        %1105 = vrot.lane.b32.xlu0 %v1096, 95
        %v1106 = vpop.permute.xlu0 %1105
        %1107 = vrot.lane.b32.xlu0 %v1097, 95
        %v1108 = vpop.permute.xlu0 %1107
        %1109 = vrot.lane.b32.xlu0 %v1098, 95
        %v1110 = vpop.permute.xlu0 %1109
        %vm1111 = vcmask 777216
        %v1112 = vsel %vm1111, %v1104, %v1106
        %v1113 = vsel %vm1111, %v1108, %v1110
        %1118 = vst [vmem:[#allocation2 + $0xe0] sm:$0xff] %v1112
        %1119 = vst.msk [vmem:[#allocation2 + $0xe8] sm:$0xff] %vm462, %v1106
        %1120 = vst [vmem:[#allocation2 + $0xf0] sm:$0xff] %v1113
        %1121 = vst.msk [vmem:[#allocation2 + $0xf8] sm:$0xff] %vm462, %v1110
        %v1126 = vunpack.c.l.b16 %v1091
        %v1127 = vunpack.c.h.b16 %v1091
        %v1128 = vunpack.c.l.b16 %v1092
        %v1129 = vunpack.c.h.b16 %v1092
        %v1130 = vunpack.c.l.b16 %v1093
        %v1131 = vunpack.c.h.b16 %v1093
        %v1132 = vunpack.c.l.b16 %v1094
        %v1133 = vunpack.c.h.b16 %v1094
        %v1134 = vpack.c.b16 %v1128, %v1126
        %v1135 = vpack.c.b16 %v1129, %v1127
        %v1136 = vpack.c.b16 %v1132, %v1130
        %v1137 = vpack.c.b16 %v1133, %v1131
        %1138 = vrot.lane.b32.xlu0 %v1134, 95
        %v1139 = vpop.permute.xlu0 %1138
        %1140 = vrot.lane.b32.xlu0 %v1135, 95
        %v1141 = vpop.permute.xlu0 %1140
        %1142 = vrot.lane.b32.xlu0 %v1136, 95
        %v1143 = vpop.permute.xlu0 %1142
        %1144 = vrot.lane.b32.xlu0 %v1137, 95
        %v1145 = vpop.permute.xlu0 %1144
        %v1146 = vsel %vm1111, %v1139, %v1141
        %v1147 = vsel %vm1111, %v1143, %v1145
        %1152 = vst [vmem:[#allocation2 + $0x200] sm:$0xff] %v1146
        %1153 = vst.msk [vmem:[#allocation2 + $0x208] sm:$0xff] %vm462, %v1141
        %1154 = vst [vmem:[#allocation2 + $0x210] sm:$0xff] %v1147
        %1155 = vst.msk [vmem:[#allocation2 + $0x218] sm:$0xff] %vm462, %v1145
        %v1156 = vld [vmem:[%s324] sm:$0xff]
        %v1157 = vld [vmem:[%s324 + $0x8] sm:$0xff]
        %v1158 = vld [vmem:[%s324 + $0x10] sm:$0xff]
        %v1159 = vld [vmem:[%s324 + $0x18] sm:$0xff]
        %v1160 = vld [vmem:[%s324 + $0x20] sm:$0xff]
        %v1161 = vld [vmem:[%s324 + $0x28] sm:$0xff]
        %v1162 = vld [vmem:[%s324 + $0x30] sm:$0xff]
        %v1163 = vld [vmem:[%s324 + $0x38] sm:$0xff]
        %v1164 = vld [vmem:[%s333] sm:$0xff]
        %v1165 = vld [vmem:[%s333 + $0x8] sm:$0xff]
        %v1166 = vld [vmem:[%s333 + $0x10] sm:$0xff]
        %v1167 = vld [vmem:[%s333 + $0x18] sm:$0xff]
        %1176 = vrot.lane.b32.xlu0 %v1156, 94
        %v1177 = vpop.permute.xlu0 %1176
        %1178 = vrot.lane.b32.xlu0 %v1157, 94
        %v1179 = vpop.permute.xlu0 %1178
        %1180 = vrot.lane.b32.xlu0 %v1158, 94
        %v1181 = vpop.permute.xlu0 %1180
        %1182 = vrot.lane.b32.xlu0 %v1159, 94
        %v1183 = vpop.permute.xlu0 %1182
        %1184 = vrot.lane.b32.xlu0 %v1160, 94
        %v1185 = vpop.permute.xlu0 %1184
        %1186 = vrot.lane.b32.xlu0 %v1161, 94
        %v1187 = vpop.permute.xlu0 %1186
        %1188 = vrot.lane.b32.xlu0 %v1162, 94
        %v1189 = vpop.permute.xlu0 %1188
        %1190 = vrot.lane.b32.xlu0 %v1163, 94
        %v1191 = vpop.permute.xlu0 %1190
        %vm1192 = vcmask 769024
        %v1193 = vsel %vm1192, %v1177, %v1179
        %v1194 = vsel %vm1192, %v1181, %v1183
        %v1195 = vsel %vm1192, %v1185, %v1187
        %v1196 = vsel %vm1192, %v1189, %v1191
        %v1205 = vsel %vm577, %v1193, 0.0
        %v1206 = vsel %vm578, %v1179, 0.0
        %v1207 = vsel %vm577, %v1194, 0.0
        %v1208 = vsel %vm578, %v1183, 0.0
        %v1209 = vsel %vm577, %v1195, 0.0
        %v1210 = vsel %vm578, %v1187, 0.0
        %v1211 = vsel %vm577, %v1196, 0.0
        %v1212 = vsel %vm578, %v1191, 0.0
        %1213 = vrot.lane.b32.xlu0 %v625, 34
        %v1214 = vpop.permute.xlu0 %1213
        %v1215 = vrot.slane %v1214, 4
        %vm1216 = vcmask 277504
        %v1217 = vsel %vm1216, %v1215, %v1214
        %vm1218 = vcmp.ne.s16.totalorder %v1217, 0
        %v1219 = vsel %vm1218, %v1164, 0
        %v1220 = vsel %vm1218, %v1165, 0
        %v1221 = vsel %vm1218, %v1166, 0
        %v1222 = vsel %vm1218, %v1167, 0
        %v1223 = vpack.c.bf16 %v1207, %v1205
        %v1224 = vpack.c.bf16 %v1208, %v1206
        %v1225 = vpack.c.bf16 %v1211, %v1209
        %v1226 = vpack.c.bf16 %v1212, %v1210
        %1227 = vst [vmem:[#allocation2 + $0x100] sm:$0xff] %v1223
        %1228 = vst.msk [vmem:[#allocation2 + $0x108] sm:$0xff] %vm462, %v1224
        %1229 = vst [vmem:[#allocation2 + $0x110] sm:$0xff] %v1225
        %1230 = vst.msk [vmem:[#allocation2 + $0x118] sm:$0xff] %vm462, %v1226
        %v1235 = vunpack.c.l.b16 %v1219
        %v1236 = vunpack.c.h.b16 %v1219
        %v1237 = vunpack.c.l.b16 %v1220
        %v1238 = vunpack.c.h.b16 %v1220
        %v1239 = vunpack.c.l.b16 %v1221
        %v1240 = vunpack.c.h.b16 %v1221
        %v1241 = vunpack.c.l.b16 %v1222
        %v1242 = vunpack.c.h.b16 %v1222
        %v1243 = vpack.c.b16 %v1237, %v1235
        %v1244 = vpack.c.b16 %v1238, %v1236
        %v1245 = vpack.c.b16 %v1241, %v1239
        %v1246 = vpack.c.b16 %v1242, %v1240
        %1247 = vrot.lane.b32.xlu0 %v1243, 94
        %v1248 = vpop.permute.xlu0 %1247
        %1249 = vrot.lane.b32.xlu0 %v1244, 94
        %v1250 = vpop.permute.xlu0 %1249
        %1251 = vrot.lane.b32.xlu0 %v1245, 94
        %v1252 = vpop.permute.xlu0 %1251
        %1253 = vrot.lane.b32.xlu0 %v1246, 94
        %v1254 = vpop.permute.xlu0 %1253
        %vm1255 = vcmask 769024
        %v1256 = vsel %vm1255, %v1248, %v1250
        %v1257 = vsel %vm1255, %v1252, %v1254
        %1262 = vst [vmem:[#allocation2 + $0x220] sm:$0xff] %v1256
        %1263 = vst.msk [vmem:[#allocation2 + $0x228] sm:$0xff] %vm462, %v1250
        %1264 = vst [vmem:[#allocation2 + $0x230] sm:$0xff] %v1257
        %1265 = vst.msk [vmem:[#allocation2 + $0x238] sm:$0xff] %vm462, %v1254
        %v1266 = vld [vmem:[#allocation9] sm:$0xff]
        %v1267 = vld [vmem:[#allocation9 + $0x8] sm:$0xff]
        %v1268 = vld [vmem:[#allocation9 + $0x10] sm:$0xf]
        %v1269 = vld [vmem:[#allocation9 + $0x14] sm:$0xff]
        %v1270 = vld [vmem:[#allocation9 + $0x1c] sm:$0xff]
        %v1271 = vld [vmem:[#allocation9 + $0x24] sm:$0xf]
        %v1272 = vld [vmem:[#allocation9 + $0x28] sm:$0xff]
        %v1273 = vld [vmem:[#allocation9 + $0x30] sm:$0xff]
        %v1274 = vld [vmem:[#allocation9 + $0x38] sm:$0xf]
        %v1275 = vld [vmem:[#allocation9 + $0x3c] sm:$0xff]
        %v1276 = vld [vmem:[#allocation9 + $0x44] sm:$0xff]
        %v1277 = vld [vmem:[#allocation9 + $0x4c] sm:$0xf]
        %v1278 = vld [vmem:[#allocation9 + $0x50] sm:$0xff]
        %v1279 = vld [vmem:[#allocation9 + $0x58] sm:$0xff]
        %v1280 = vld [vmem:[#allocation9 + $0x60] sm:$0xf]
        %v1281 = vld [vmem:[#allocation9 + $0x64] sm:$0xff]
        %v1282 = vld [vmem:[#allocation9 + $0x6c] sm:$0xff]
        %v1283 = vld [vmem:[#allocation9 + $0x74] sm:$0xf]
        %v1284 = vld [vmem:[#allocation9 + $0x78] sm:$0xff]
        %v1285 = vld [vmem:[#allocation9 + $0x80] sm:$0xff]
        %v1286 = vld [vmem:[#allocation9 + $0x88] sm:$0xf]
        %v1287 = vld [vmem:[#allocation9 + $0x8c] sm:$0xff]
        %v1288 = vld [vmem:[#allocation9 + $0x94] sm:$0xff]
        %v1289 = vld [vmem:[#allocation9 + $0x9c] sm:$0xf]
        %v1290 = vld [vmem:[#allocation2] sm:$0xff]
        %v1291 = vld [vmem:[#allocation2 + $0x8] sm:$0xff]
        %v1292 = vld [vmem:[#allocation2 + $0x10] sm:$0xff]
        %v1293 = vld [vmem:[#allocation2 + $0x18] sm:$0xff]
        %v1294 = vld [vmem:[#allocation2 + $0x20] sm:$0xff]
        %v1295 = vld [vmem:[#allocation2 + $0x28] sm:$0xff]
        %v1296 = vld [vmem:[#allocation2 + $0x30] sm:$0xff]
        %v1297 = vld [vmem:[#allocation2 + $0x38] sm:$0xff]
        %v1298 = vld [vmem:[#allocation2 + $0x40] sm:$0xff]
        %v1299 = vld [vmem:[#allocation2 + $0x48] sm:$0xff]
        %v1300 = vld [vmem:[#allocation2 + $0x50] sm:$0xff]
        %v1301 = vld [vmem:[#allocation2 + $0x58] sm:$0xff]
        %v1302 = vld [vmem:[#allocation2 + $0x60] sm:$0xff]
        %v1303 = vld [vmem:[#allocation2 + $0x68] sm:$0xff]
        %v1304 = vld [vmem:[#allocation2 + $0x70] sm:$0xff]
        %v1305 = vld [vmem:[#allocation2 + $0x78] sm:$0xff]
        %v1306 = vld [vmem:[#allocation2 + $0x80] sm:$0xff]
        %v1307 = vld [vmem:[#allocation2 + $0x88] sm:$0xff]
        %v1308 = vld [vmem:[#allocation2 + $0x90] sm:$0xff]
        %v1309 = vld [vmem:[#allocation2 + $0x98] sm:$0xff]
        %v1310 = vld [vmem:[#allocation2 + $0xa0] sm:$0xff]
        %v1311 = vld [vmem:[#allocation2 + $0xa8] sm:$0xff]
        %v1312 = vld [vmem:[#allocation2 + $0xb0] sm:$0xff]
        %v1313 = vld [vmem:[#allocation2 + $0xb8] sm:$0xff]
        %v1314 = vld [vmem:[#allocation2 + $0xc0] sm:$0xff]
        %v1315 = vld [vmem:[#allocation2 + $0xc8] sm:$0xff]
        %v1316 = vld [vmem:[#allocation2 + $0xd0] sm:$0xff]
        %v1317 = vld [vmem:[#allocation2 + $0xd8] sm:$0xff]
        %v1318 = vld [vmem:[#allocation2 + $0xe0] sm:$0xff]
        %v1319 = vld [vmem:[#allocation2 + $0xe8] sm:$0xff]
        %v1320 = vld [vmem:[#allocation2 + $0xf0] sm:$0xff]
        %v1321 = vld [vmem:[#allocation2 + $0xf8] sm:$0xff]
        %v1322 = vld [vmem:[#allocation2 + $0x100] sm:$0xff]
        %v1323 = vld [vmem:[#allocation2 + $0x108] sm:$0xff]
        %v1324 = vld [vmem:[#allocation2 + $0x110] sm:$0xff]
        %v1325 = vld [vmem:[#allocation2 + $0x118] sm:$0xff]
        %v1326 = vld [vmem:[#allocation2 + $0x120] sm:$0xff]
        %v1327 = vld [vmem:[#allocation2 + $0x128] sm:$0xff]
        %v1328 = vld [vmem:[#allocation2 + $0x130] sm:$0xff]
        %v1329 = vld [vmem:[#allocation2 + $0x138] sm:$0xff]
        %v1330 = vld [vmem:[#allocation2 + $0x140] sm:$0xff]
        %v1331 = vld [vmem:[#allocation2 + $0x148] sm:$0xff]
        %v1332 = vld [vmem:[#allocation2 + $0x150] sm:$0xff]
        %v1333 = vld [vmem:[#allocation2 + $0x158] sm:$0xff]
        %v1334 = vld [vmem:[#allocation2 + $0x160] sm:$0xff]
        %v1335 = vld [vmem:[#allocation2 + $0x168] sm:$0xff]
        %v1336 = vld [vmem:[#allocation2 + $0x170] sm:$0xff]
        %v1337 = vld [vmem:[#allocation2 + $0x178] sm:$0xff]
        %v1338 = vld [vmem:[#allocation2 + $0x180] sm:$0xff]
        %v1339 = vld [vmem:[#allocation2 + $0x188] sm:$0xff]
        %v1340 = vld [vmem:[#allocation2 + $0x190] sm:$0xff]
        %v1341 = vld [vmem:[#allocation2 + $0x198] sm:$0xff]
        %v1342 = vld [vmem:[#allocation2 + $0x1a0] sm:$0xff]
        %v1343 = vld [vmem:[#allocation2 + $0x1a8] sm:$0xff]
        %v1344 = vld [vmem:[#allocation2 + $0x1b0] sm:$0xff]
        %v1345 = vld [vmem:[#allocation2 + $0x1b8] sm:$0xff]
        %v1346 = vld [vmem:[#allocation2 + $0x1c0] sm:$0xff]
        %v1347 = vld [vmem:[#allocation2 + $0x1c8] sm:$0xff]
        %v1348 = vld [vmem:[#allocation2 + $0x1d0] sm:$0xff]
        %v1349 = vld [vmem:[#allocation2 + $0x1d8] sm:$0xff]
        %v1350 = vld [vmem:[#allocation2 + $0x1e0] sm:$0xff]
        %v1351 = vld [vmem:[#allocation2 + $0x1e8] sm:$0xff]
        %v1352 = vld [vmem:[#allocation2 + $0x1f0] sm:$0xff]
        %v1353 = vld [vmem:[#allocation2 + $0x1f8] sm:$0xff]
        %v1354 = vld [vmem:[#allocation2 + $0x200] sm:$0xff]
        %v1355 = vld [vmem:[#allocation2 + $0x208] sm:$0xff]
        %v1356 = vld [vmem:[#allocation2 + $0x210] sm:$0xff]
        %v1357 = vld [vmem:[#allocation2 + $0x218] sm:$0xff]
        %v1358 = vld [vmem:[#allocation2 + $0x220] sm:$0xff]
        %v1359 = vld [vmem:[#allocation2 + $0x228] sm:$0xff]
        %v1360 = vld [vmem:[#allocation2 + $0x230] sm:$0xff]
        %v1361 = vld [vmem:[#allocation2 + $0x238] sm:$0xff]
        %v1362 = vld [vmem:[%s5] sm:$0xff]
        %v1363 = vld [vmem:[%s5 + $0x8] sm:$0xff]
        %v1364 = vld [vmem:[%s5 + $0x10] sm:$0xff]
        %v1365 = vld [vmem:[%s5 + $0x18] sm:$0xff]
        %v1366 = vld [vmem:[%s5 + $0x20] sm:$0xff]
        %v1367 = vld [vmem:[%s5 + $0x28] sm:$0xff]
        %v1368 = vld [vmem:[%s5 + $0x30] sm:$0xff]
        %v1369 = vld [vmem:[%s5 + $0x38] sm:$0xff]
        %1371 = vset.pattern.permute.xlu0 0
        %1372 = vperm.xlu0 %1371, %v1362
        %v1373 = vpop.permute.xlu0 %1372
        %1376 = vset.pattern.permute.xlu0 0
        %1377 = vperm.xlu0 %1376, %v1363
        %v1378 = vpop.permute.xlu0 %1377
        %1381 = vset.pattern.permute.xlu0 0
        %1382 = vperm.xlu0 %1381, %v1364
        %v1383 = vpop.permute.xlu0 %1382
        %1386 = vset.pattern.permute.xlu0 0
        %1387 = vperm.xlu0 %1386, %v1365
        %v1388 = vpop.permute.xlu0 %1387
        %1391 = vset.pattern.permute.xlu0 0
        %1392 = vperm.xlu0 %1391, %v1366
        %v1393 = vpop.permute.xlu0 %1392
        %1396 = vset.pattern.permute.xlu0 0
        %1397 = vperm.xlu0 %1396, %v1367
        %v1398 = vpop.permute.xlu0 %1397
        %1401 = vset.pattern.permute.xlu0 0
        %1402 = vperm.xlu0 %1401, %v1368
        %v1403 = vpop.permute.xlu0 %1402
        %1406 = vset.pattern.permute.xlu0 0
        %1407 = vperm.xlu0 %1406, %v1369
        %v1408 = vpop.permute.xlu0 %1407
        %v1434 = vunpack.c.l.b16 %v1266
        %v1435 = vunpack.c.h.b16 %v1266
        %v1436 = vunpack.c.l.b16 %v1267
        %v1437 = vunpack.c.h.b16 %v1267
        %v1438 = vunpack.c.l.b16 %v1268
        %v1439 = vunpack.c.l.b16 %v1269
        %v1440 = vunpack.c.h.b16 %v1269
        %v1441 = vunpack.c.l.b16 %v1270
        %v1442 = vunpack.c.h.b16 %v1270
        %v1443 = vunpack.c.l.b16 %v1271
        %v1444 = vunpack.c.l.b16 %v1272
        %v1445 = vunpack.c.h.b16 %v1272
        %v1446 = vunpack.c.l.b16 %v1273
        %v1447 = vunpack.c.h.b16 %v1273
        %v1448 = vunpack.c.l.b16 %v1274
        %v1449 = vunpack.c.l.b16 %v1275
        %v1450 = vunpack.c.h.b16 %v1275
        %v1451 = vunpack.c.l.b16 %v1276
        %v1452 = vunpack.c.h.b16 %v1276
        %v1453 = vunpack.c.l.b16 %v1277
        %v1454 = vunpack.c.l.b16 %v1278
        %v1455 = vunpack.c.h.b16 %v1278
        %v1456 = vunpack.c.l.b16 %v1279
        %v1457 = vunpack.c.h.b16 %v1279
        %v1458 = vunpack.c.l.b16 %v1280
        %v1459 = vunpack.c.l.b16 %v1281
        %v1460 = vunpack.c.h.b16 %v1281
        %v1461 = vunpack.c.l.b16 %v1282
        %v1462 = vunpack.c.h.b16 %v1282
        %v1463 = vunpack.c.l.b16 %v1283
        %v1464 = vunpack.c.l.b16 %v1284
        %v1465 = vunpack.c.h.b16 %v1284
        %v1466 = vunpack.c.l.b16 %v1285
        %v1467 = vunpack.c.h.b16 %v1285
        %v1468 = vunpack.c.l.b16 %v1286
        %v1469 = vunpack.c.l.b16 %v1287
        %v1470 = vunpack.c.h.b16 %v1287
        %v1471 = vunpack.c.l.b16 %v1288
        %v1472 = vunpack.c.h.b16 %v1288
        %v1473 = vunpack.c.l.b16 %v1289
        %v1474 = vpack.c.b16 %v1439, %v1434
        %v1475 = vpack.c.b16 %v1440, %v1435
        %v1476 = vpack.c.b16 %v1441, %v1436
        %v1477 = vpack.c.b16 %v1442, %v1437
        %v1478 = vpack.c.b16 %v1443, %v1438
        %v1479 = vpack.c.b16 %v1449, %v1444
        %v1480 = vpack.c.b16 %v1450, %v1445
        %v1481 = vpack.c.b16 %v1451, %v1446
        %v1482 = vpack.c.b16 %v1452, %v1447
        %v1483 = vpack.c.b16 %v1453, %v1448
        %v1484 = vpack.c.b16 %v1459, %v1454
        %v1485 = vpack.c.b16 %v1460, %v1455
        %v1486 = vpack.c.b16 %v1461, %v1456
        %v1487 = vpack.c.b16 %v1462, %v1457
        %v1488 = vpack.c.b16 %v1463, %v1458
        %v1489 = vpack.c.b16 %v1469, %v1464
        %v1490 = vpack.c.b16 %v1470, %v1465
        %v1491 = vpack.c.b16 %v1471, %v1466
        %v1492 = vpack.c.b16 %v1472, %v1467
        %v1493 = vpack.c.b16 %v1473, %v1468
        %vm1510 = vcmask 523264
        %v1512 = vsel %vm1510, %v1478, 0
        %v1515 = vsel %vm1510, %v1483, 0
        %v1518 = vsel %vm1510, %v1488, 0
        %v1521 = vsel %vm1510, %v1493, 0
        %1523 = vmatprep.subr.bf16.mxu0 %v1291
        %1524 = vmatpush1.bf16.msra.mxu0 %v1290
        %1525 = vmatprep.subr.bf16.mxu0 %v1293
        %1526 = vmatpush1.bf16.msra.mxu0 %v1292
        %1527 = vmatprep.subr.bf16.mxu0 %v1295
        %1528 = vmatpush1.bf16.msra.mxu0 %v1294
        %1529 = vmatprep.subr.bf16.mxu0 %v1297
        %1530 = vmatpush1.bf16.msra.mxu0 %v1296
        %1531 = vmatprep.subr.bf16.mxu0 %v1299
        %1532 = vmatpush1.bf16.msra.mxu0 %v1298
        %1533 = vmatprep.subr.bf16.mxu0 %v1301
        %1534 = vmatpush1.bf16.msra.mxu0 %v1300
        %1535 = vmatprep.subr.bf16.mxu0 %v1303
        %1536 = vmatpush1.bf16.msra.mxu0 %v1302
        %1537 = vmatprep.subr.bf16.mxu0 %v1305
        %1538 = vmatpush1.bf16.msra.mxu0 %v1304
        %1539 = vmatprep.subr.bf16.mxu0 %v1307
        %1540 = vmatpush1.bf16.msra.mxu0 %v1306
        %1541 = vmatprep.subr.bf16.mxu0 %v1309
        %1542 = vmatpush1.bf16.msra.mxu0 %v1308
        %1543 = vmatprep.subr.bf16.mxu0 %v1311
        %1544 = vmatpush1.bf16.msra.mxu0 %v1310
        %1545 = vmatprep.subr.bf16.mxu0 %v1313
        %1546 = vmatpush1.bf16.msra.mxu0 %v1312
        %1547 = vmatprep.subr.bf16.mxu0 %v1315
        %1548 = vmatpush1.bf16.msra.mxu0 %v1314
        %1549 = vmatprep.subr.bf16.mxu0 %v1317
        %1550 = vmatpush1.bf16.msra.mxu0 %v1316
        %1551 = vmatprep.subr.bf16.mxu0 %v1319
        %1552 = vmatpush1.bf16.msra.mxu0 %v1318
        %1553 = vmatprep.subr.bf16.mxu0 %v1321
        %1554 = vmatpush1.bf16.msra.mxu0 %v1320
        %1555 = vmatprep.mubr.bf16.mxu0 %v1475
        %1556 = vmatmul.mubr.bf16.gmra.mrb[0].mxu0 %v1474
        %v1557 = vpop.f32.mrb[0].mxu0
        %v1558 = vadd.f32 %v1373, %v1557
        %v1559 = vpop.f32.mrb[0].mxu0
        %v1560 = vadd.f32 %v1373, %v1559
        %v1561 = vpop.f32.mrb[0].mxu0
        %v1562 = vadd.f32 %v1378, %v1561
        %v1563 = vpop.f32.mrb[0].mxu0
        %v1564 = vadd.f32 %v1378, %v1563
        %1565 = vmatprep.mubr.bf16.mxu0 %v1480
        %1566 = vmatmul.mubr.bf16.gmra.mrb[0].mxu0 %v1479
        %v1567 = vpop.f32.mrb[0].mxu0
        %v1568 = vadd.f32 %v1383, %v1567
        %v1569 = vpop.f32.mrb[0].mxu0
        %v1570 = vadd.f32 %v1383, %v1569
        %v1571 = vpop.f32.mrb[0].mxu0
        %v1572 = vadd.f32 %v1388, %v1571
        %v1573 = vpop.f32.mrb[0].mxu0
        %v1574 = vadd.f32 %v1388, %v1573
        %1575 = vmatprep.mubr.bf16.mxu0 %v1485
        %1576 = vmatmul.mubr.bf16.gmra.mrb[0].mxu0 %v1484
        %v1577 = vpop.f32.mrb[0].mxu0
        %v1578 = vadd.f32 %v1393, %v1577
        %v1579 = vpop.f32.mrb[0].mxu0
        %v1580 = vadd.f32 %v1393, %v1579
        %v1581 = vpop.f32.mrb[0].mxu0
        %v1582 = vadd.f32 %v1398, %v1581
        %v1583 = vpop.f32.mrb[0].mxu0
        %v1584 = vadd.f32 %v1398, %v1583
        %1585 = vmatprep.mubr.bf16.mxu0 %v1490
        %1586 = vmatmul.mubr.bf16.gmra.mrb[0].mxu0 %v1489
        %v1587 = vpop.f32.mrb[0].mxu0
        %v1588 = vadd.f32 %v1403, %v1587
        %v1589 = vpop.f32.mrb[0].mxu0
        %v1590 = vadd.f32 %v1403, %v1589
        %v1591 = vpop.f32.mrb[0].mxu0
        %v1592 = vadd.f32 %v1408, %v1591
        %v1593 = vpop.f32.mrb[0].mxu0
        %v1594 = vadd.f32 %v1408, %v1593
        %1595 = vdwg.mxu0
        %1596 = vmatprep.subr.bf16.mxu0 %v1323
        %1597 = vmatpush1.bf16.msra.mxu0 %v1322
        %1598 = vmatprep.subr.bf16.mxu0 %v1325
        %1599 = vmatpush1.bf16.msra.mxu0 %v1324
        %1600 = vmatprep.subr.bf16.mxu0 %v1327
        %1601 = vmatpush1.bf16.msra.mxu0 %v1326
        %1602 = vmatprep.subr.bf16.mxu0 %v1329
        %1603 = vmatpush1.bf16.msra.mxu0 %v1328
        %1604 = vmatprep.subr.bf16.mxu0 %v1331
        %1605 = vmatpush1.bf16.msra.mxu0 %v1330
        %1606 = vmatprep.subr.bf16.mxu0 %v1333
        %1607 = vmatpush1.bf16.msra.mxu0 %v1332
        %1608 = vmatprep.subr.bf16.mxu0 %v1335
        %1609 = vmatpush1.bf16.msra.mxu0 %v1334
        %1610 = vmatprep.subr.bf16.mxu0 %v1337
        %1611 = vmatpush1.bf16.msra.mxu0 %v1336
        %1612 = vmatprep.subr.bf16.mxu0 %v1339
        %1613 = vmatpush1.bf16.msra.mxu0 %v1338
        %1614 = vmatprep.subr.bf16.mxu0 %v1341
        %1615 = vmatpush1.bf16.msra.mxu0 %v1340
        %1616 = vmatprep.subr.bf16.mxu0 %v1343
        %1617 = vmatpush1.bf16.msra.mxu0 %v1342
        %1618 = vmatprep.subr.bf16.mxu0 %v1345
        %1619 = vmatpush1.bf16.msra.mxu0 %v1344
        %1620 = vmatprep.subr.bf16.mxu0 %v1347
        %1621 = vmatpush1.bf16.msra.mxu0 %v1346
        %1622 = vmatprep.subr.bf16.mxu0 %v1349
        %1623 = vmatpush1.bf16.msra.mxu0 %v1348
        %1624 = vmatprep.subr.bf16.mxu0 %v1351
        %1625 = vmatpush1.bf16.msra.mxu0 %v1350
        %1626 = vmatprep.subr.bf16.mxu0 %v1353
        %1627 = vmatpush1.bf16.msra.mxu0 %v1352
        %1628 = vmatprep.mubr.bf16.mxu0 %v1477
        %1629 = vmatmul.mubr.bf16.gmra.mrb[0].mxu0 %v1476
        %v1630 = vpop.f32.mrb[0].mxu0
        %v1631 = vadd.f32 %v1558, %v1630
        %v1632 = vpop.f32.mrb[0].mxu0
        %v1633 = vadd.f32 %v1560, %v1632
        %v1634 = vpop.f32.mrb[0].mxu0
        %v1635 = vadd.f32 %v1562, %v1634
        %v1636 = vpop.f32.mrb[0].mxu0
        %v1637 = vadd.f32 %v1564, %v1636
        %1638 = vmatprep.mubr.bf16.mxu0 %v1482
        %1639 = vmatmul.mubr.bf16.gmra.mrb[0].mxu0 %v1481
        %v1640 = vpop.f32.mrb[0].mxu0
        %v1641 = vadd.f32 %v1568, %v1640
        %v1642 = vpop.f32.mrb[0].mxu0
        %v1643 = vadd.f32 %v1570, %v1642
        %v1644 = vpop.f32.mrb[0].mxu0
        %v1645 = vadd.f32 %v1572, %v1644
        %v1646 = vpop.f32.mrb[0].mxu0
        %v1647 = vadd.f32 %v1574, %v1646
        %1648 = vmatprep.mubr.bf16.mxu0 %v1487
        %1649 = vmatmul.mubr.bf16.gmra.mrb[0].mxu0 %v1486
        %v1650 = vpop.f32.mrb[0].mxu0
        %v1651 = vadd.f32 %v1578, %v1650
        %v1652 = vpop.f32.mrb[0].mxu0
        %v1653 = vadd.f32 %v1580, %v1652
        %v1654 = vpop.f32.mrb[0].mxu0
        %v1655 = vadd.f32 %v1582, %v1654
        %v1656 = vpop.f32.mrb[0].mxu0
        %v1657 = vadd.f32 %v1584, %v1656
        %1658 = vmatprep.mubr.bf16.mxu0 %v1492
        %1659 = vmatmul.mubr.bf16.gmra.mrb[0].mxu0 %v1491
        %v1660 = vpop.f32.mrb[0].mxu0
        %v1661 = vadd.f32 %v1588, %v1660
        %v1662 = vpop.f32.mrb[0].mxu0
        %v1663 = vadd.f32 %v1590, %v1662
        %v1664 = vpop.f32.mrb[0].mxu0
        %v1665 = vadd.f32 %v1592, %v1664
        %v1666 = vpop.f32.mrb[0].mxu0
        %v1667 = vadd.f32 %v1594, %v1666
        %1668 = vdwg.mxu0
        %1669 = vmatprep.subr.bf16.mxu0 %v1355
        %1670 = vmatpush1.bf16.msra.mxu0 %v1354
        %1671 = vmatprep.subr.bf16.mxu0 %v1357
        %1672 = vmatpush1.bf16.msra.mxu0 %v1356
        %1673 = vmatprep.subr.bf16.mxu0 %v1359
        %1674 = vmatpush1.bf16.msra.mxu0 %v1358
        %1675 = vmatprep.subr.bf16.mxu0 %v1361
        %1676 = vmatpush1.bf16.msra.mxu0 %v1360
        %1677 = vmatprep.subr.bf16.mxu0 0
        %1678 = vmatpush1.bf16.msra.mxu0 0
        %1679 = vmatprep.subr.bf16.mxu0 0
        %1680 = vmatpush1.bf16.msra.mxu0 0
        %1681 = vmatprep.subr.bf16.mxu0 0
        %1682 = vmatpush1.bf16.msra.mxu0 0
        %1683 = vmatprep.subr.bf16.mxu0 0
        %1684 = vmatpush1.bf16.msra.mxu0 0
        %1685 = vmatprep.subr.bf16.mxu0 0
        %1686 = vmatpush1.bf16.msra.mxu0 0
        %1687 = vmatprep.subr.bf16.mxu0 0
        %1688 = vmatpush1.bf16.msra.mxu0 0
        %1689 = vmatprep.subr.bf16.mxu0 0
        %1690 = vmatpush1.bf16.msra.mxu0 0
        %1691 = vmatprep.subr.bf16.mxu0 0
        %1692 = vmatpush1.bf16.msra.mxu0 0
        %1693 = vmatprep.subr.bf16.mxu0 0
        %1694 = vmatpush1.bf16.msra.mxu0 0
        %1695 = vmatprep.subr.bf16.mxu0 0
        %1696 = vmatpush1.bf16.msra.mxu0 0
        %1697 = vmatprep.subr.bf16.mxu0 0
        %1698 = vmatpush1.bf16.msra.mxu0 0
        %1699 = vmatprep.subr.bf16.mxu0 0
        %1700 = vmatpush1.bf16.msra.mxu0 0
        %1701 = vmatprep.mubr.bf16.mxu0 0
        %1702 = vmatmul.mubr.bf16.gmra.mrb[0].mxu0 %v1512
        %v1703 = vpop.f32.mrb[0].mxu0
        %v1704 = vadd.f32 %v1631, %v1703
        %v1705 = vpop.f32.mrb[0].mxu0
        %v1706 = vadd.f32 %v1633, %v1705
        %v1707 = vpop.f32.mrb[0].mxu0
        %v1708 = vadd.f32 %v1635, %v1707
        %v1709 = vpop.f32.mrb[0].mxu0
        %v1710 = vadd.f32 %v1637, %v1709
        %1711 = vmatprep.mubr.bf16.mxu0 0
        %1712 = vmatmul.mubr.bf16.gmra.mrb[0].mxu0 %v1515
        %v1713 = vpop.f32.mrb[0].mxu0
        %v1714 = vadd.f32 %v1641, %v1713
        %v1715 = vpop.f32.mrb[0].mxu0
        %v1716 = vadd.f32 %v1643, %v1715
        %v1717 = vpop.f32.mrb[0].mxu0
        %v1718 = vadd.f32 %v1645, %v1717
        %v1719 = vpop.f32.mrb[0].mxu0
        %v1720 = vadd.f32 %v1647, %v1719
        %1721 = vmatprep.mubr.bf16.mxu0 0
        %1722 = vmatmul.mubr.bf16.gmra.mrb[0].mxu0 %v1518
        %v1723 = vpop.f32.mrb[0].mxu0
        %v1724 = vadd.f32 %v1651, %v1723
        %v1725 = vpop.f32.mrb[0].mxu0
        %v1726 = vadd.f32 %v1653, %v1725
        %v1727 = vpop.f32.mrb[0].mxu0
        %v1728 = vadd.f32 %v1655, %v1727
        %v1729 = vpop.f32.mrb[0].mxu0
        %v1730 = vadd.f32 %v1657, %v1729
        %1731 = vmatprep.mubr.bf16.mxu0 0
        %1732 = vmatmul.mubr.bf16.gmra.mrb[0].mxu0 %v1521
        %v1733 = vpop.f32.mrb[0].mxu0
        %v1734 = vadd.f32 %v1661, %v1733
        %v1735 = vpop.f32.mrb[0].mxu0
        %v1736 = vadd.f32 %v1663, %v1735
        %v1737 = vpop.f32.mrb[0].mxu0
        %v1738 = vadd.f32 %v1665, %v1737
        %v1739 = vpop.f32.mrb[0].mxu0
        %v1740 = vadd.f32 %v1667, %v1739
        %1741 = vdwg.mxu0
        %v1742 = vmul.f32 %v1704, 0.5
        %v1743 = vmul.f32 %v1706, 0.5
        %v1744 = vmul.f32 %v1708, 0.5
        %v1745 = vmul.f32 %v1710, 0.5
        %v1746 = vmul.f32 %v1714, 0.5
        %v1747 = vmul.f32 %v1716, 0.5
        %v1748 = vmul.f32 %v1718, 0.5
        %v1749 = vmul.f32 %v1720, 0.5
        %v1750 = vtanh.pop %v1742
        %v1751 = vtanh.pop %v1743
        %v1752 = vtanh.pop %v1744
        %v1753 = vtanh.pop %v1745
        %v1754 = vtanh.pop %v1746
        %v1755 = vtanh.pop %v1747
        %v1756 = vtanh.pop %v1748
        %v1757 = vtanh.pop %v1749
        %v1758 = vadd.f32 %v1750, 1.0
        %v1759 = vadd.f32 %v1751, 1.0
        %v1760 = vadd.f32 %v1752, 1.0
        %v1761 = vadd.f32 %v1753, 1.0
        %v1762 = vadd.f32 %v1754, 1.0
        %v1763 = vadd.f32 %v1755, 1.0
        %v1764 = vadd.f32 %v1756, 1.0
        %v1765 = vadd.f32 %v1757, 1.0
        %v1766 = vmul.f32 %v1758, 0.5
        %v1767 = vmul.f32 %v1759, 0.5
        %v1768 = vmul.f32 %v1760, 0.5
        %v1769 = vmul.f32 %v1761, 0.5
        %v1770 = vmul.f32 %v1762, 0.5
        %v1771 = vmul.f32 %v1763, 0.5
        %v1772 = vmul.f32 %v1764, 0.5
        %v1773 = vmul.f32 %v1765, 0.5
        %v1774 = vmul.f32 %v1724, 0.5
        %v1775 = vmul.f32 %v1726, 0.5
        %v1776 = vmul.f32 %v1728, 0.5
        %v1777 = vmul.f32 %v1730, 0.5
        %v1778 = vmul.f32 %v1734, 0.5
        %v1779 = vmul.f32 %v1736, 0.5
        %v1780 = vmul.f32 %v1738, 0.5
        %v1781 = vmul.f32 %v1740, 0.5
        %v1782 = vtanh.pop %v1774
        %v1783 = vtanh.pop %v1775
        %v1784 = vtanh.pop %v1776
        %v1785 = vtanh.pop %v1777
        %v1786 = vtanh.pop %v1778
        %v1787 = vtanh.pop %v1779
        %v1788 = vtanh.pop %v1780
        %v1789 = vtanh.pop %v1781
        %v1790 = vadd.f32 %v1782, 1.0
        %v1791 = vadd.f32 %v1783, 1.0
        %v1792 = vadd.f32 %v1784, 1.0
        %v1793 = vadd.f32 %v1785, 1.0
        %v1794 = vadd.f32 %v1786, 1.0
        %v1795 = vadd.f32 %v1787, 1.0
        %v1796 = vadd.f32 %v1788, 1.0
        %v1797 = vadd.f32 %v1789, 1.0
        %v1798 = vmul.f32 %v1790, 0.5
        %v1799 = vmul.f32 %v1791, 0.5
        %v1800 = vmul.f32 %v1792, 0.5
        %v1801 = vmul.f32 %v1793, 0.5
        %v1802 = vmul.f32 %v1794, 0.5
        %v1803 = vmul.f32 %v1795, 0.5
        %v1804 = vmul.f32 %v1796, 0.5
        %v1805 = vmul.f32 %v1797, 0.5
        %v1806 = vld [vmem:[%s3] sm:$0xff]
        %v1807 = vld [vmem:[%s3 + $0x8] sm:$0xf]
        %v1808 = vld [vmem:[%s3 + $0xc] sm:$0xff]
        %v1809 = vld [vmem:[%s3 + $0x14] sm:$0xf]
        %v1810 = vld [vmem:[%s3 + $0x18] sm:$0xff]
        %v1811 = vld [vmem:[%s3 + $0x20] sm:$0xf]
        %v1812 = vld [vmem:[%s3 + $0x24] sm:$0xff]
        %v1813 = vld [vmem:[%s3 + $0x2c] sm:$0xf]
        %v1822 = vunpack.c.l.b16 %v1806
        %v1823 = vunpack.c.h.b16 %v1806
        %v1824 = vunpack.c.l.b16 %v1807
        %v1825 = vunpack.c.l.b16 %v1808
        %v1826 = vunpack.c.h.b16 %v1808
        %v1827 = vunpack.c.l.b16 %v1809
        %v1828 = vunpack.c.l.b16 %v1810
        %v1829 = vunpack.c.h.b16 %v1810
        %v1830 = vunpack.c.l.b16 %v1811
        %v1831 = vunpack.c.l.b16 %v1812
        %v1832 = vunpack.c.h.b16 %v1812
        %v1833 = vunpack.c.l.b16 %v1813
        %v1834 = vpack.c.b16 %v1825, %v1822
        %v1835 = vpack.c.b16 %v1826, %v1823
        %v1836 = vpack.c.b16 %v1827, %v1824
        %v1837 = vpack.c.b16 %v1831, %v1828
        %v1838 = vpack.c.b16 %v1832, %v1829
        %v1839 = vpack.c.b16 %v1833, %v1830
        %vm1844 = vcmask 261120
        %v1846 = vsel %vm1844, %v1836, 0
        %v1849 = vsel %vm1844, %v1839, 0
        %1851 = vmatprep.subr.bf16.mxu0 %v1327
        %1852 = vmatpush1.bf16.msra.mxu0 %v1326
        %1853 = vmatprep.subr.bf16.mxu0 %v1329
        %1854 = vmatpush1.bf16.msra.mxu0 %v1328
        %1855 = vmatprep.subr.bf16.mxu0 %v1331
        %1856 = vmatpush1.bf16.msra.mxu0 %v1330
        %1857 = vmatprep.subr.bf16.mxu0 %v1333
        %1858 = vmatpush1.bf16.msra.mxu0 %v1332
        %1859 = vmatprep.subr.bf16.mxu0 %v1335
        %1860 = vmatpush1.bf16.msra.mxu0 %v1334
        %1861 = vmatprep.subr.bf16.mxu0 %v1337
        %1862 = vmatpush1.bf16.msra.mxu0 %v1336
        %1863 = vmatprep.subr.bf16.mxu0 %v1339
        %1864 = vmatpush1.bf16.msra.mxu0 %v1338
        %1865 = vmatprep.subr.bf16.mxu0 %v1341
        %1866 = vmatpush1.bf16.msra.mxu0 %v1340
        %1867 = vmatprep.subr.bf16.mxu0 %v1343
        %1868 = vmatpush1.bf16.msra.mxu0 %v1342
        %1869 = vmatprep.subr.bf16.mxu0 %v1345
        %1870 = vmatpush1.bf16.msra.mxu0 %v1344
        %1871 = vmatprep.subr.bf16.mxu0 %v1347
        %1872 = vmatpush1.bf16.msra.mxu0 %v1346
        %1873 = vmatprep.subr.bf16.mxu0 %v1349
        %1874 = vmatpush1.bf16.msra.mxu0 %v1348
        %1875 = vmatprep.subr.bf16.mxu0 %v1351
        %1876 = vmatpush1.bf16.msra.mxu0 %v1350
        %1877 = vmatprep.subr.bf16.mxu0 %v1353
        %1878 = vmatpush1.bf16.msra.mxu0 %v1352
        %1879 = vmatprep.subr.bf16.mxu0 %v1355
        %1880 = vmatpush1.bf16.msra.mxu0 %v1354
        %1881 = vmatprep.subr.bf16.mxu0 %v1357
        %1882 = vmatpush1.bf16.msra.mxu0 %v1356
        %1883 = vmatprep.mubr.bf16.mxu0 %v1835
        %1884 = vmatmul.mubr.bf16.gmra.mrb[0].mxu0 %v1834
        %v1885 = vpop.f32.mrb[0].mxu0
        %v1886 = vadd.f32 0.0, %v1885
        %v1887 = vpop.f32.mrb[0].mxu0
        %v1888 = vadd.f32 0.0, %v1887
        %v1889 = vpop.f32.mrb[0].mxu0
        %v1890 = vadd.f32 0.0, %v1889
        %v1891 = vpop.f32.mrb[0].mxu0
        %v1892 = vadd.f32 0.0, %v1891
        %1893 = vmatprep.mubr.bf16.mxu0 %v1838
        %1894 = vmatmul.mubr.bf16.gmra.mrb[0].mxu0 %v1837
        %v1895 = vpop.f32.mrb[0].mxu0
        %v1896 = vadd.f32 0.0, %v1895
        %v1897 = vpop.f32.mrb[0].mxu0
        %v1898 = vadd.f32 0.0, %v1897
        %v1899 = vpop.f32.mrb[0].mxu0
        %v1900 = vadd.f32 0.0, %v1899
        %v1901 = vpop.f32.mrb[0].mxu0
        %v1902 = vadd.f32 0.0, %v1901
        %1903 = vdwg.mxu0
        %1904 = vmatprep.subr.bf16.mxu0 %v1359
        %1905 = vmatpush1.bf16.msra.mxu0 %v1358
        %1906 = vmatprep.subr.bf16.mxu0 %v1361
        %1907 = vmatpush1.bf16.msra.mxu0 %v1360
        %1908 = vmatprep.subr.bf16.mxu0 0
        %1909 = vmatpush1.bf16.msra.mxu0 0
        %1910 = vmatprep.subr.bf16.mxu0 0
        %1911 = vmatpush1.bf16.msra.mxu0 0
        %1912 = vmatprep.subr.bf16.mxu0 0
        %1913 = vmatpush1.bf16.msra.mxu0 0
        %1914 = vmatprep.subr.bf16.mxu0 0
        %1915 = vmatpush1.bf16.msra.mxu0 0
        %1916 = vmatprep.subr.bf16.mxu0 0
        %1917 = vmatpush1.bf16.msra.mxu0 0
        %1918 = vmatprep.subr.bf16.mxu0 0
        %1919 = vmatpush1.bf16.msra.mxu0 0
        %1920 = vmatprep.subr.bf16.mxu0 0
        %1921 = vmatpush1.bf16.msra.mxu0 0
        %1922 = vmatprep.subr.bf16.mxu0 0
        %1923 = vmatpush1.bf16.msra.mxu0 0
        %1924 = vmatprep.subr.bf16.mxu0 0
        %1925 = vmatpush1.bf16.msra.mxu0 0
        %1926 = vmatprep.subr.bf16.mxu0 0
        %1927 = vmatpush1.bf16.msra.mxu0 0
        %1928 = vmatprep.subr.bf16.mxu0 0
        %1929 = vmatpush1.bf16.msra.mxu0 0
        %1930 = vmatprep.subr.bf16.mxu0 0
        %1931 = vmatpush1.bf16.msra.mxu0 0
        %1932 = vmatprep.subr.bf16.mxu0 0
        %1933 = vmatpush1.bf16.msra.mxu0 0
        %1934 = vmatprep.subr.bf16.mxu0 0
        %1935 = vmatpush1.bf16.msra.mxu0 0
        %1936 = vmatprep.mubr.bf16.mxu0 0
        %1937 = vmatmul.mubr.bf16.gmra.mrb[0].mxu0 %v1846
        %v1938 = vpop.f32.mrb[0].mxu0
        %v1939 = vadd.f32 %v1886, %v1938
        %v1940 = vpop.f32.mrb[0].mxu0
        %v1941 = vadd.f32 %v1888, %v1940
        %v1942 = vpop.f32.mrb[0].mxu0
        %v1943 = vadd.f32 %v1890, %v1942
        %v1944 = vpop.f32.mrb[0].mxu0
        %v1945 = vadd.f32 %v1892, %v1944
        %1946 = vmatprep.mubr.bf16.mxu0 0
        %1947 = vmatmul.mubr.bf16.gmra.mrb[0].mxu0 %v1849
        %v1948 = vpop.f32.mrb[0].mxu0
        %v1949 = vadd.f32 %v1896, %v1948
        %v1950 = vpop.f32.mrb[0].mxu0
        %v1951 = vadd.f32 %v1898, %v1950
        %v1952 = vpop.f32.mrb[0].mxu0
        %v1953 = vadd.f32 %v1900, %v1952
        %v1954 = vpop.f32.mrb[0].mxu0
        %v1955 = vadd.f32 %v1902, %v1954
        %1956 = vdwg.mxu0
        %v1957 = vld [vmem:[%s6] sm:$0xff]
        %v1958 = vld [vmem:[%s6 + $0x8] sm:$0xff]
        %v1959 = vld [vmem:[%s6 + $0x10] sm:$0xff]
        %v1960 = vld [vmem:[%s6 + $0x18] sm:$0xff]
        %1962 = vset.pattern.permute.xlu0 0
        %1963 = vperm.xlu0 %1962, %v1957
        %v1964 = vpop.permute.xlu0 %1963
        %1967 = vset.pattern.permute.xlu0 0
        %1968 = vperm.xlu0 %1967, %v1958
        %v1969 = vpop.permute.xlu0 %1968
        %1972 = vset.pattern.permute.xlu0 0
        %1973 = vperm.xlu0 %1972, %v1959
        %v1974 = vpop.permute.xlu0 %1973
        %1977 = vset.pattern.permute.xlu0 0
        %1978 = vperm.xlu0 %1977, %v1960
        %v1979 = vpop.permute.xlu0 %1978
        %v1981 = vadd.f32 %v1939, %v1964
        %v1982 = vadd.f32 %v1941, %v1964
        %v1983 = vadd.f32 %v1943, %v1969
        %v1984 = vadd.f32 %v1945, %v1969
        %v1985 = vadd.f32 %v1949, %v1974
        %v1986 = vadd.f32 %v1951, %v1974
        %v1987 = vadd.f32 %v1953, %v1979
        %v1988 = vadd.f32 %v1955, %v1979
        %v1989 = vld [vmem:[%s324] sm:$0xff]
        %v1990 = vld [vmem:[%s324 + $0x8] sm:$0xff]
        %v1991 = vld [vmem:[%s324 + $0x10] sm:$0xff]
        %v1992 = vld [vmem:[%s324 + $0x18] sm:$0xff]
        %v1993 = vld [vmem:[%s324 + $0x20] sm:$0xff]
        %v1994 = vld [vmem:[%s324 + $0x28] sm:$0xff]
        %v1995 = vld [vmem:[%s324 + $0x30] sm:$0xff]
        %v1996 = vld [vmem:[%s324 + $0x38] sm:$0xff]
        %2005 = vrot.lane.b32.xlu0 %v1989, 111
        %v2006 = vpop.permute.xlu0 %2005
        %2007 = vrot.lane.b32.xlu0 %v1990, 111
        %v2008 = vpop.permute.xlu0 %2007
        %2009 = vrot.lane.b32.xlu0 %v1991, 111
        %v2010 = vpop.permute.xlu0 %2009
        %2011 = vrot.lane.b32.xlu0 %v1992, 111
        %v2012 = vpop.permute.xlu0 %2011
        %2013 = vrot.lane.b32.xlu0 %v1993, 111
        %v2014 = vpop.permute.xlu0 %2013
        %2015 = vrot.lane.b32.xlu0 %v1994, 111
        %v2016 = vpop.permute.xlu0 %2015
        %2017 = vrot.lane.b32.xlu0 %v1995, 111
        %v2018 = vpop.permute.xlu0 %2017
        %2019 = vrot.lane.b32.xlu0 %v1996, 111
        %v2020 = vpop.permute.xlu0 %2019
        %vm2021 = vcmask 908288
        %v2022 = vsel %vm2021, %v2006, %v2008
        %v2023 = vsel %vm2021, %v2010, %v2012
        %v2024 = vsel %vm2021, %v2014, %v2016
        %v2025 = vsel %vm2021, %v2018, %v2020
        %v2034 = vmul.f32 %v1798, %v2022
        %v2035 = vmul.f32 %v1799, %v2008
        %v2036 = vmul.f32 %v1800, %v2023
        %v2037 = vmul.f32 %v1801, %v2012
        %v2038 = vmul.f32 %v1802, %v2024
        %v2039 = vmul.f32 %v1803, %v2016
        %v2040 = vmul.f32 %v1804, %v2025
        %v2041 = vmul.f32 %v1805, %v2020
        %2042 = vst [vmem:[#allocation3] sm:$0xff] %v2034
        %2043 = vst.msk [vmem:[#allocation3 + $0x8] sm:$0xff] %vm462, %v2035
        %2044 = vst [vmem:[#allocation3 + $0x10] sm:$0xff] %v2036
        %2045 = vst.msk [vmem:[#allocation3 + $0x18] sm:$0xff] %vm462, %v2037
        %2046 = vst [vmem:[#allocation3 + $0x20] sm:$0xff] %v2038
        %2047 = vst.msk [vmem:[#allocation3 + $0x28] sm:$0xff] %vm462, %v2039
        %2048 = vst [vmem:[#allocation3 + $0x30] sm:$0xff] %v2040
        %2049 = vst.msk [vmem:[#allocation3 + $0x38] sm:$0xff] %vm462, %v2041
        %v2050 = vld [vmem:[#allocation3] sm:$0xff]
        %v2051 = vld [vmem:[#allocation3 + $0x10] sm:$0xff]
        %v2052 = vld [vmem:[#allocation3 + $0x20] sm:$0xff]
        %v2053 = vld [vmem:[#allocation3 + $0x30] sm:$0xff]
        %v2054 = vsel %vm426, 1, 0
        %vm2055 = vcmp.eq.s32.totalorder %v2054, 1
        %v2056 = vsel %vm2055, %v2050, 0.0
        %v2057 = vsel %vm2055, %v2051, 0.0
        %v2058 = vsel %vm2055, %v2052, 0.0
        %v2059 = vsel %vm2055, %v2053, 0.0
        %v2060 = vpack.c.bf16 %v2057, %v2056
        %v2061 = vpack.c.bf16 %v2059, %v2058
        %2062 = vst [vmem:[#allocation2] sm:$0xff] %v2060
        %2063 = vst [vmem:[#allocation2 + $0x10] sm:$0xff] %v2061
        %v2064 = vld [vmem:[#allocation3] sm:$0xff]
        %v2065 = vld [vmem:[#allocation3 + $0x8] sm:$0xff]
        %v2066 = vld [vmem:[#allocation3 + $0x10] sm:$0xff]
        %v2067 = vld [vmem:[#allocation3 + $0x18] sm:$0xff]
        %v2068 = vld [vmem:[#allocation3 + $0x20] sm:$0xff]
        %v2069 = vld [vmem:[#allocation3 + $0x28] sm:$0xff]
        %v2070 = vld [vmem:[#allocation3 + $0x30] sm:$0xff]
        %v2071 = vld [vmem:[#allocation3 + $0x38] sm:$0xff]
        %v2072 = vpack.c.bf16 %v2066, %v2064
        %v2073 = vpack.c.bf16 %v2067, %v2065
        %v2074 = vpack.c.bf16 %v2070, %v2068
        %v2075 = vpack.c.bf16 %v2071, %v2069
        %2080 = vrot.lane.b32.xlu0 %v2072, 127
        %v2081 = vpop.permute.xlu0 %2080
        %2082 = vrot.lane.b32.xlu0 %v2073, 127
        %v2083 = vpop.permute.xlu0 %2082
        %2084 = vrot.lane.b32.xlu0 %v2074, 127
        %v2085 = vpop.permute.xlu0 %2084
        %2086 = vrot.lane.b32.xlu0 %v2075, 127
        %v2087 = vpop.permute.xlu0 %2086
        %v2088 = vsel %vm518, %v2081, %v2083
        %v2089 = vsel %vm518, %v2085, %v2087
        %2092 = vst [vmem:[#allocation2 + $0x20] sm:$0xff] %v2088
        %2093 = vst [vmem:[#allocation2 + $0x30] sm:$0xff] %v2089
        %v2094 = vld [vmem:[#allocation3] sm:$0xff]
        %v2095 = vld [vmem:[#allocation3 + $0x8] sm:$0xff]
        %v2096 = vld [vmem:[#allocation3 + $0x10] sm:$0xff]
        %v2097 = vld [vmem:[#allocation3 + $0x18] sm:$0xff]
        %v2098 = vld [vmem:[#allocation3 + $0x20] sm:$0xff]
        %v2099 = vld [vmem:[#allocation3 + $0x28] sm:$0xff]
        %v2100 = vld [vmem:[#allocation3 + $0x30] sm:$0xff]
        %v2101 = vld [vmem:[#allocation3 + $0x38] sm:$0xff]
        %v2102 = vsel %vm427, 1, 0
        %vm2103 = vcmp.eq.s32.totalorder %v2102, 1
        %2112 = vrot.lane.b32.xlu0 %v2094, 126
        %v2113 = vpop.permute.xlu0 %2112
        %2114 = vrot.lane.b32.xlu0 %v2095, 126
        %v2115 = vpop.permute.xlu0 %2114
        %2116 = vrot.lane.b32.xlu0 %v2096, 126
        %v2117 = vpop.permute.xlu0 %2116
        %2118 = vrot.lane.b32.xlu0 %v2097, 126
        %v2119 = vpop.permute.xlu0 %2118
        %2120 = vrot.lane.b32.xlu0 %v2098, 126
        %v2121 = vpop.permute.xlu0 %2120
        %2122 = vrot.lane.b32.xlu0 %v2099, 126
        %v2123 = vpop.permute.xlu0 %2122
        %2124 = vrot.lane.b32.xlu0 %v2100, 126
        %v2125 = vpop.permute.xlu0 %2124
        %2126 = vrot.lane.b32.xlu0 %v2101, 126
        %v2127 = vpop.permute.xlu0 %2126
        %v2128 = vsel %vm603, %v2113, %v2115
        %v2129 = vsel %vm603, %v2117, %v2119
        %v2130 = vsel %vm603, %v2121, %v2123
        %v2131 = vsel %vm603, %v2125, %v2127
        %v2136 = vsel %vm2103, %v2128, 0.0
        %v2137 = vsel %vm2103, %v2129, 0.0
        %v2138 = vsel %vm2103, %v2130, 0.0
        %v2139 = vsel %vm2103, %v2131, 0.0
        %v2140 = vpack.c.bf16 %v2137, %v2136
        %v2141 = vpack.c.bf16 %v2139, %v2138
        %2142 = vst [vmem:[#allocation2 + $0x40] sm:$0xff] %v2140
        %2143 = vst [vmem:[#allocation2 + $0x50] sm:$0xff] %v2141
        %v2144 = vld [vmem:[#allocation3] sm:$0xff]
        %v2145 = vld [vmem:[#allocation3 + $0x8] sm:$0xff]
        %v2146 = vld [vmem:[#allocation3 + $0x10] sm:$0xff]
        %v2147 = vld [vmem:[#allocation3 + $0x18] sm:$0xff]
        %v2148 = vld [vmem:[#allocation3 + $0x20] sm:$0xff]
        %v2149 = vld [vmem:[#allocation3 + $0x28] sm:$0xff]
        %v2150 = vld [vmem:[#allocation3 + $0x30] sm:$0xff]
        %v2151 = vld [vmem:[#allocation3 + $0x38] sm:$0xff]
        %2160 = vrot.lane.b32.xlu0 %v2144, 112
        %v2161 = vpop.permute.xlu0 %2160
        %2162 = vrot.lane.b32.xlu0 %v2145, 112
        %v2163 = vpop.permute.xlu0 %2162
        %2164 = vrot.lane.b32.xlu0 %v2146, 112
        %v2165 = vpop.permute.xlu0 %2164
        %2166 = vrot.lane.b32.xlu0 %v2147, 112
        %v2167 = vpop.permute.xlu0 %2166
        %2168 = vrot.lane.b32.xlu0 %v2148, 112
        %v2169 = vpop.permute.xlu0 %2168
        %2170 = vrot.lane.b32.xlu0 %v2149, 112
        %v2171 = vpop.permute.xlu0 %2170
        %2172 = vrot.lane.b32.xlu0 %v2150, 112
        %v2173 = vpop.permute.xlu0 %2172
        %2174 = vrot.lane.b32.xlu0 %v2151, 112
        %v2175 = vpop.permute.xlu0 %2174
        %v2176 = vsel %vm715, %v2161, %v2163
        %v2177 = vsel %vm715, %v2165, %v2167
        %v2178 = vsel %vm715, %v2169, %v2171
        %v2179 = vsel %vm715, %v2173, %v2175
        %v2184 = vsel %vm2055, %v2176, 0.0
        %v2185 = vsel %vm2055, %v2177, 0.0
        %v2186 = vsel %vm2055, %v2178, 0.0
        %v2187 = vsel %vm2055, %v2179, 0.0
        %v2188 = vpack.c.bf16 %v2185, %v2184
        %v2189 = vpack.c.bf16 %v2187, %v2186
        %2190 = vst [vmem:[#allocation2 + $0x60] sm:$0xff] %v2188
        %2191 = vst [vmem:[#allocation2 + $0x70] sm:$0xff] %v2189
        %v2192 = vld [vmem:[#allocation3] sm:$0xff]
        %v2193 = vld [vmem:[#allocation3 + $0x8] sm:$0xff]
        %v2194 = vld [vmem:[#allocation3 + $0x10] sm:$0xff]
        %v2195 = vld [vmem:[#allocation3 + $0x18] sm:$0xff]
        %v2196 = vld [vmem:[#allocation3 + $0x20] sm:$0xff]
        %v2197 = vld [vmem:[#allocation3 + $0x28] sm:$0xff]
        %v2198 = vld [vmem:[#allocation3 + $0x30] sm:$0xff]
        %v2199 = vld [vmem:[#allocation3 + $0x38] sm:$0xff]
        %v2200 = vpack.c.bf16 %v2194, %v2192
        %v2201 = vpack.c.bf16 %v2195, %v2193
        %v2202 = vpack.c.bf16 %v2198, %v2196
        %v2203 = vpack.c.bf16 %v2199, %v2197
        %2208 = vrot.lane.b32.xlu0 %v2200, 111
        %v2209 = vpop.permute.xlu0 %2208
        %2210 = vrot.lane.b32.xlu0 %v2201, 111
        %v2211 = vpop.permute.xlu0 %2210
        %2212 = vrot.lane.b32.xlu0 %v2202, 111
        %v2213 = vpop.permute.xlu0 %2212
        %2214 = vrot.lane.b32.xlu0 %v2203, 111
        %v2215 = vpop.permute.xlu0 %2214
        %v2216 = vsel %vm818, %v2209, %v2211
        %v2217 = vsel %vm818, %v2213, %v2215
        %2220 = vst [vmem:[#allocation2 + $0x80] sm:$0xff] %v2216
        %2221 = vst [vmem:[#allocation2 + $0x90] sm:$0xff] %v2217
        %v2222 = vld [vmem:[#allocation3] sm:$0xff]
        %v2223 = vld [vmem:[#allocation3 + $0x8] sm:$0xff]
        %v2224 = vld [vmem:[#allocation3 + $0x10] sm:$0xff]
        %v2225 = vld [vmem:[#allocation3 + $0x18] sm:$0xff]
        %v2226 = vld [vmem:[#allocation3 + $0x20] sm:$0xff]
        %v2227 = vld [vmem:[#allocation3 + $0x28] sm:$0xff]
        %v2228 = vld [vmem:[#allocation3 + $0x30] sm:$0xff]
        %v2229 = vld [vmem:[#allocation3 + $0x38] sm:$0xff]
        %2238 = vrot.lane.b32.xlu0 %v2222, 110
        %v2239 = vpop.permute.xlu0 %2238
        %2240 = vrot.lane.b32.xlu0 %v2223, 110
        %v2241 = vpop.permute.xlu0 %2240
        %2242 = vrot.lane.b32.xlu0 %v2224, 110
        %v2243 = vpop.permute.xlu0 %2242
        %2244 = vrot.lane.b32.xlu0 %v2225, 110
        %v2245 = vpop.permute.xlu0 %2244
        %2246 = vrot.lane.b32.xlu0 %v2226, 110
        %v2247 = vpop.permute.xlu0 %2246
        %2248 = vrot.lane.b32.xlu0 %v2227, 110
        %v2249 = vpop.permute.xlu0 %2248
        %2250 = vrot.lane.b32.xlu0 %v2228, 110
        %v2251 = vpop.permute.xlu0 %2250
        %2252 = vrot.lane.b32.xlu0 %v2229, 110
        %v2253 = vpop.permute.xlu0 %2252
        %v2254 = vsel %vm899, %v2239, %v2241
        %v2255 = vsel %vm899, %v2243, %v2245
        %v2256 = vsel %vm899, %v2247, %v2249
        %v2257 = vsel %vm899, %v2251, %v2253
        %v2262 = vsel %vm2103, %v2254, 0.0
        %v2263 = vsel %vm2103, %v2255, 0.0
        %v2264 = vsel %vm2103, %v2256, 0.0
        %v2265 = vsel %vm2103, %v2257, 0.0
        %v2266 = vpack.c.bf16 %v2263, %v2262
        %v2267 = vpack.c.bf16 %v2265, %v2264
        %2268 = vst [vmem:[#allocation2 + $0xa0] sm:$0xff] %v2266
        %2269 = vst [vmem:[#allocation2 + $0xb0] sm:$0xff] %v2267
        %v2270 = vld [vmem:[#allocation3] sm:$0xff]
        %v2271 = vld [vmem:[#allocation3 + $0x8] sm:$0xff]
        %v2272 = vld [vmem:[#allocation3 + $0x10] sm:$0xff]
        %v2273 = vld [vmem:[#allocation3 + $0x18] sm:$0xff]
        %v2274 = vld [vmem:[#allocation3 + $0x20] sm:$0xff]
        %v2275 = vld [vmem:[#allocation3 + $0x28] sm:$0xff]
        %v2276 = vld [vmem:[#allocation3 + $0x30] sm:$0xff]
        %v2277 = vld [vmem:[#allocation3 + $0x38] sm:$0xff]
        %2286 = vrot.lane.b32.xlu0 %v2270, 96
        %v2287 = vpop.permute.xlu0 %2286
        %2288 = vrot.lane.b32.xlu0 %v2271, 96
        %v2289 = vpop.permute.xlu0 %2288
        %2290 = vrot.lane.b32.xlu0 %v2272, 96
        %v2291 = vpop.permute.xlu0 %2290
        %2292 = vrot.lane.b32.xlu0 %v2273, 96
        %v2293 = vpop.permute.xlu0 %2292
        %2294 = vrot.lane.b32.xlu0 %v2274, 96
        %v2295 = vpop.permute.xlu0 %2294
        %2296 = vrot.lane.b32.xlu0 %v2275, 96
        %v2297 = vpop.permute.xlu0 %2296
        %2298 = vrot.lane.b32.xlu0 %v2276, 96
        %v2299 = vpop.permute.xlu0 %2298
        %2300 = vrot.lane.b32.xlu0 %v2277, 96
        %v2301 = vpop.permute.xlu0 %2300
        %v2302 = vsel %vm1009, %v2287, %v2289
        %v2303 = vsel %vm1009, %v2291, %v2293
        %v2304 = vsel %vm1009, %v2295, %v2297
        %v2305 = vsel %vm1009, %v2299, %v2301
        %v2310 = vsel %vm2055, %v2302, 0.0
        %v2311 = vsel %vm2055, %v2303, 0.0
        %v2312 = vsel %vm2055, %v2304, 0.0
        %v2313 = vsel %vm2055, %v2305, 0.0
        %v2314 = vpack.c.bf16 %v2311, %v2310
        %v2315 = vpack.c.bf16 %v2313, %v2312
        %2316 = vst [vmem:[#allocation2 + $0xc0] sm:$0xff] %v2314
        %2317 = vst [vmem:[#allocation2 + $0xd0] sm:$0xff] %v2315
        %v2318 = vld [vmem:[#allocation3] sm:$0xff]
        %v2319 = vld [vmem:[#allocation3 + $0x8] sm:$0xff]
        %v2320 = vld [vmem:[#allocation3 + $0x10] sm:$0xff]
        %v2321 = vld [vmem:[#allocation3 + $0x18] sm:$0xff]
        %v2322 = vld [vmem:[#allocation3 + $0x20] sm:$0xff]
        %v2323 = vld [vmem:[#allocation3 + $0x28] sm:$0xff]
        %v2324 = vld [vmem:[#allocation3 + $0x30] sm:$0xff]
        %v2325 = vld [vmem:[#allocation3 + $0x38] sm:$0xff]
        %v2326 = vpack.c.bf16 %v2320, %v2318
        %v2327 = vpack.c.bf16 %v2321, %v2319
        %v2328 = vpack.c.bf16 %v2324, %v2322
        %v2329 = vpack.c.bf16 %v2325, %v2323
        %2334 = vrot.lane.b32.xlu0 %v2326, 95
        %v2335 = vpop.permute.xlu0 %2334
        %2336 = vrot.lane.b32.xlu0 %v2327, 95
        %v2337 = vpop.permute.xlu0 %2336
        %2338 = vrot.lane.b32.xlu0 %v2328, 95
        %v2339 = vpop.permute.xlu0 %2338
        %2340 = vrot.lane.b32.xlu0 %v2329, 95
        %v2341 = vpop.permute.xlu0 %2340
        %v2342 = vsel %vm1111, %v2335, %v2337
        %v2343 = vsel %vm1111, %v2339, %v2341
        %2346 = vst [vmem:[#allocation2 + $0xe0] sm:$0xff] %v2342
        %2347 = vst [vmem:[#allocation2 + $0xf0] sm:$0xff] %v2343
        %v2348 = vld [vmem:[#allocation3] sm:$0xff]
        %v2349 = vld [vmem:[#allocation3 + $0x8] sm:$0xff]
        %v2350 = vld [vmem:[#allocation3 + $0x10] sm:$0xff]
        %v2351 = vld [vmem:[#allocation3 + $0x18] sm:$0xff]
        %v2352 = vld [vmem:[#allocation3 + $0x20] sm:$0xff]
        %v2353 = vld [vmem:[#allocation3 + $0x28] sm:$0xff]
        %v2354 = vld [vmem:[#allocation3 + $0x30] sm:$0xff]
        %v2355 = vld [vmem:[#allocation3 + $0x38] sm:$0xff]
        %2364 = vrot.lane.b32.xlu0 %v2348, 94
        %v2365 = vpop.permute.xlu0 %2364
        %2366 = vrot.lane.b32.xlu0 %v2349, 94
        %v2367 = vpop.permute.xlu0 %2366
        %2368 = vrot.lane.b32.xlu0 %v2350, 94
        %v2369 = vpop.permute.xlu0 %2368
        %2370 = vrot.lane.b32.xlu0 %v2351, 94
        %v2371 = vpop.permute.xlu0 %2370
        %2372 = vrot.lane.b32.xlu0 %v2352, 94
        %v2373 = vpop.permute.xlu0 %2372
        %2374 = vrot.lane.b32.xlu0 %v2353, 94
        %v2375 = vpop.permute.xlu0 %2374
        %2376 = vrot.lane.b32.xlu0 %v2354, 94
        %v2377 = vpop.permute.xlu0 %2376
        %2378 = vrot.lane.b32.xlu0 %v2355, 94
        %v2379 = vpop.permute.xlu0 %2378
        %v2380 = vsel %vm1192, %v2365, %v2367
        %v2381 = vsel %vm1192, %v2369, %v2371
        %v2382 = vsel %vm1192, %v2373, %v2375
        %v2383 = vsel %vm1192, %v2377, %v2379
        %v2388 = vsel %vm2103, %v2380, 0.0
        %v2389 = vsel %vm2103, %v2381, 0.0
        %v2390 = vsel %vm2103, %v2382, 0.0
        %v2391 = vsel %vm2103, %v2383, 0.0
        %v2392 = vpack.c.bf16 %v2389, %v2388
        %v2393 = vpack.c.bf16 %v2391, %v2390
        %2394 = vst [vmem:[#allocation2 + $0x100] sm:$0xff] %v2392
        %2395 = vst [vmem:[#allocation2 + $0x110] sm:$0xff] %v2393
        %v2396 = vld [vmem:[%s4] sm:$0xff]
        %v2397 = vld [vmem:[%s4 + $0x8] sm:$0xf]
        %v2398 = vld [vmem:[%s4 + $0xc] sm:$0xff]
        %v2399 = vld [vmem:[%s4 + $0x14] sm:$0xf]
        %v2400 = vld [vmem:[%s4 + $0x18] sm:$0xff]
        %v2401 = vld [vmem:[%s4 + $0x20] sm:$0xf]
        %v2402 = vld [vmem:[%s4 + $0x24] sm:$0xff]
        %v2403 = vld [vmem:[%s4 + $0x2c] sm:$0xf]
        %v2404 = vld [vmem:[#allocation2] sm:$0xff]
        %v2405 = vld [vmem:[#allocation2 + $0x10] sm:$0xff]
        %v2406 = vld [vmem:[#allocation2 + $0x20] sm:$0xff]
        %v2407 = vld [vmem:[#allocation2 + $0x30] sm:$0xff]
        %v2408 = vld [vmem:[#allocation2 + $0x40] sm:$0xff]
        %v2409 = vld [vmem:[#allocation2 + $0x50] sm:$0xff]
        %v2410 = vld [vmem:[#allocation2 + $0x60] sm:$0xff]
        %v2411 = vld [vmem:[#allocation2 + $0x70] sm:$0xff]
        %v2412 = vld [vmem:[#allocation2 + $0x80] sm:$0xff]
        %v2413 = vld [vmem:[#allocation2 + $0x90] sm:$0xff]
        %v2414 = vld [vmem:[#allocation2 + $0xa0] sm:$0xff]
        %v2415 = vld [vmem:[#allocation2 + $0xb0] sm:$0xff]
        %v2416 = vld [vmem:[#allocation2 + $0xc0] sm:$0xff]
        %v2417 = vld [vmem:[#allocation2 + $0xd0] sm:$0xff]
        %v2418 = vld [vmem:[#allocation2 + $0xe0] sm:$0xff]
        %v2419 = vld [vmem:[#allocation2 + $0xf0] sm:$0xff]
        %v2420 = vld [vmem:[#allocation2 + $0x100] sm:$0xff]
        %v2421 = vld [vmem:[#allocation2 + $0x110] sm:$0xff]
        %v2430 = vunpack.c.l.b16 %v2396
        %v2431 = vunpack.c.h.b16 %v2396
        %v2432 = vunpack.c.l.b16 %v2397
        %v2433 = vunpack.c.l.b16 %v2398
        %v2434 = vunpack.c.h.b16 %v2398
        %v2435 = vunpack.c.l.b16 %v2399
        %v2436 = vunpack.c.l.b16 %v2400
        %v2437 = vunpack.c.h.b16 %v2400
        %v2438 = vunpack.c.l.b16 %v2401
        %v2439 = vunpack.c.l.b16 %v2402
        %v2440 = vunpack.c.h.b16 %v2402
        %v2441 = vunpack.c.l.b16 %v2403
        %v2442 = vpack.c.b16 %v2433, %v2430
        %v2443 = vpack.c.b16 %v2434, %v2431
        %v2444 = vpack.c.b16 %v2435, %v2432
        %v2445 = vpack.c.b16 %v2439, %v2436
        %v2446 = vpack.c.b16 %v2440, %v2437
        %v2447 = vpack.c.b16 %v2441, %v2438
        %2460 = vrot.lane.b32.xlu0 %v1981, 111
        %v2461 = vpop.permute.xlu0 %2460
        %2462 = vrot.lane.b32.xlu0 %v1982, 111
        %v2463 = vpop.permute.xlu0 %2462
        %2464 = vrot.lane.b32.xlu0 %v1983, 111
        %v2465 = vpop.permute.xlu0 %2464
        %2466 = vrot.lane.b32.xlu0 %v1984, 111
        %v2467 = vpop.permute.xlu0 %2466
        %2468 = vrot.lane.b32.xlu0 %v1985, 111
        %v2469 = vpop.permute.xlu0 %2468
        %2470 = vrot.lane.b32.xlu0 %v1986, 111
        %v2471 = vpop.permute.xlu0 %2470
        %2472 = vrot.lane.b32.xlu0 %v1987, 111
        %v2473 = vpop.permute.xlu0 %2472
        %2474 = vrot.lane.b32.xlu0 %v1988, 111
        %v2475 = vpop.permute.xlu0 %2474
        %v2476 = vsel %vm2021, %v2461, %v2463
        %v2477 = vsel %vm2021, %v2465, %v2467
        %v2478 = vsel %vm2021, %v2469, %v2471
        %v2479 = vsel %vm2021, %v2473, %v2475
        %v2485 = vsel %vm1844, %v2444, 0
        %v2488 = vsel %vm1844, %v2447, 0
        %2490 = vmatprep.subr.bf16.mxu0 0
        %2491 = vmatpush1.bf16.msra.mxu0 %v2404
        %2492 = vmatprep.subr.bf16.mxu0 0
        %2493 = vmatpush1.bf16.msra.mxu0 %v2405
        %2494 = vmatprep.subr.bf16.mxu0 0
        %2495 = vmatpush1.bf16.msra.mxu0 %v2406
        %2496 = vmatprep.subr.bf16.mxu0 0
        %2497 = vmatpush1.bf16.msra.mxu0 %v2407
        %2498 = vmatprep.subr.bf16.mxu0 0
        %2499 = vmatpush1.bf16.msra.mxu0 %v2408
        %2500 = vmatprep.subr.bf16.mxu0 0
        %2501 = vmatpush1.bf16.msra.mxu0 %v2409
        %2502 = vmatprep.subr.bf16.mxu0 0
        %2503 = vmatpush1.bf16.msra.mxu0 %v2410
        %2504 = vmatprep.subr.bf16.mxu0 0
        %2505 = vmatpush1.bf16.msra.mxu0 %v2411
        %2506 = vmatprep.subr.bf16.mxu0 0
        %2507 = vmatpush1.bf16.msra.mxu0 %v2412
        %2508 = vmatprep.subr.bf16.mxu0 0
        %2509 = vmatpush1.bf16.msra.mxu0 %v2413
        %2510 = vmatprep.subr.bf16.mxu0 0
        %2511 = vmatpush1.bf16.msra.mxu0 %v2414
        %2512 = vmatprep.subr.bf16.mxu0 0
        %2513 = vmatpush1.bf16.msra.mxu0 %v2415
        %2514 = vmatprep.subr.bf16.mxu0 0
        %2515 = vmatpush1.bf16.msra.mxu0 %v2416
        %2516 = vmatprep.subr.bf16.mxu0 0
        %2517 = vmatpush1.bf16.msra.mxu0 %v2417
        %2518 = vmatprep.subr.bf16.mxu0 0
        %2519 = vmatpush1.bf16.msra.mxu0 %v2418
        %2520 = vmatprep.subr.bf16.mxu0 0
        %2521 = vmatpush1.bf16.msra.mxu0 %v2419
        %2522 = vmatprep.mubr.bf16.mxu0 %v2443
        %2523 = vmatmul.mubr.bf16.gmra.mrb[0].mxu0 %v2442
        %v2524 = vpop.f32.mrb[0].mxu0
        %v2525 = vadd.f32 %v2476, %v2524
        %v2526 = vpop.f32.mrb[0].mxu0
        %v2527 = vpop.f32.mrb[0].mxu0
        %v2528 = vadd.f32 %v2477, %v2527
        %v2529 = vpop.f32.mrb[0].mxu0
        %2530 = vmatprep.mubr.bf16.mxu0 %v2446
        %2531 = vmatmul.mubr.bf16.gmra.mrb[0].mxu0 %v2445
        %v2532 = vpop.f32.mrb[0].mxu0
        %v2533 = vadd.f32 %v2478, %v2532
        %v2534 = vpop.f32.mrb[0].mxu0
        %v2535 = vpop.f32.mrb[0].mxu0
        %v2536 = vadd.f32 %v2479, %v2535
        %v2537 = vpop.f32.mrb[0].mxu0
        %2538 = vdwg.mxu0
        %2539 = vmatprep.subr.bf16.mxu0 0
        %2540 = vmatpush1.bf16.msra.mxu0 %v2420
        %2541 = vmatprep.subr.bf16.mxu0 0
        %2542 = vmatpush1.bf16.msra.mxu0 %v2421
        %2543 = vmatprep.subr.bf16.mxu0 0
        %2544 = vmatpush1.bf16.msra.mxu0 0
        %2545 = vmatprep.subr.bf16.mxu0 0
        %2546 = vmatpush1.bf16.msra.mxu0 0
        %2547 = vmatprep.subr.bf16.mxu0 0
        %2548 = vmatpush1.bf16.msra.mxu0 0
        %2549 = vmatprep.subr.bf16.mxu0 0
        %2550 = vmatpush1.bf16.msra.mxu0 0
        %2551 = vmatprep.subr.bf16.mxu0 0
        %2552 = vmatpush1.bf16.msra.mxu0 0
        %2553 = vmatprep.subr.bf16.mxu0 0
        %2554 = vmatpush1.bf16.msra.mxu0 0
        %2555 = vmatprep.subr.bf16.mxu0 0
        %2556 = vmatpush1.bf16.msra.mxu0 0
        %2557 = vmatprep.subr.bf16.mxu0 0
        %2558 = vmatpush1.bf16.msra.mxu0 0
        %2559 = vmatprep.subr.bf16.mxu0 0
        %2560 = vmatpush1.bf16.msra.mxu0 0
        %2561 = vmatprep.subr.bf16.mxu0 0
        %2562 = vmatpush1.bf16.msra.mxu0 0
        %2563 = vmatprep.subr.bf16.mxu0 0
        %2564 = vmatpush1.bf16.msra.mxu0 0
        %2565 = vmatprep.subr.bf16.mxu0 0
        %2566 = vmatpush1.bf16.msra.mxu0 0
        %2567 = vmatprep.subr.bf16.mxu0 0
        %2568 = vmatpush1.bf16.msra.mxu0 0
        %2569 = vmatprep.subr.bf16.mxu0 0
        %2570 = vmatpush1.bf16.msra.mxu0 0
        %2571 = vmatprep.mubr.bf16.mxu0 0
        %2572 = vmatmul.mubr.bf16.gmra.mrb[0].mxu0 %v2485
        %v2573 = vpop.f32.mrb[0].mxu0
        %v2574 = vadd.f32 %v2525, %v2573
        %v2575 = vpop.f32.mrb[0].mxu0
        %v2576 = vpop.f32.mrb[0].mxu0
        %v2577 = vadd.f32 %v2528, %v2576
        %v2578 = vpop.f32.mrb[0].mxu0
        %2579 = vmatprep.mubr.bf16.mxu0 0
        %2580 = vmatmul.mubr.bf16.gmra.mrb[0].mxu0 %v2488
        %v2581 = vpop.f32.mrb[0].mxu0
        %v2582 = vadd.f32 %v2533, %v2581
        %v2583 = vpop.f32.mrb[0].mxu0
        %v2584 = vpop.f32.mrb[0].mxu0
        %v2585 = vadd.f32 %v2536, %v2584
        %v2586 = vpop.f32.mrb[0].mxu0
        %2587 = vdwg.mxu0
        %v2588 = vtanh.pop %v2574
        %v2589 = vtanh.pop %v2577
        %v2590 = vtanh.pop %v2582
        %v2591 = vtanh.pop %v2585
        %v2592 = vld [vmem:[%s324] sm:$0xff]
        %v2593 = vld [vmem:[%s324 + $0x8] sm:$0xff]
        %v2594 = vld [vmem:[%s324 + $0x10] sm:$0xff]
        %v2595 = vld [vmem:[%s324 + $0x18] sm:$0xff]
        %v2596 = vld [vmem:[%s324 + $0x20] sm:$0xff]
        %v2597 = vld [vmem:[%s324 + $0x28] sm:$0xff]
        %v2598 = vld [vmem:[%s324 + $0x30] sm:$0xff]
        %v2599 = vld [vmem:[%s324 + $0x38] sm:$0xff]
        %v2600 = vsub.f32 1.0, %v1766
        %v2601 = vsub.f32 1.0, %v1767
        %v2602 = vsub.f32 1.0, %v1768
        %v2603 = vsub.f32 1.0, %v1769
        %v2604 = vsub.f32 1.0, %v1770
        %v2605 = vsub.f32 1.0, %v1771
        %v2606 = vsub.f32 1.0, %v1772
        %v2607 = vsub.f32 1.0, %v1773
        %2616 = vrot.lane.b32.xlu0 %v2592, 111
        %v2617 = vpop.permute.xlu0 %2616
        %2618 = vrot.lane.b32.xlu0 %v2593, 111
        %v2619 = vpop.permute.xlu0 %2618
        %2620 = vrot.lane.b32.xlu0 %v2594, 111
        %v2621 = vpop.permute.xlu0 %2620
        %2622 = vrot.lane.b32.xlu0 %v2595, 111
        %v2623 = vpop.permute.xlu0 %2622
        %2624 = vrot.lane.b32.xlu0 %v2596, 111
        %v2625 = vpop.permute.xlu0 %2624
        %2626 = vrot.lane.b32.xlu0 %v2597, 111
        %v2627 = vpop.permute.xlu0 %2626
        %2628 = vrot.lane.b32.xlu0 %v2598, 111
        %v2629 = vpop.permute.xlu0 %2628
        %2630 = vrot.lane.b32.xlu0 %v2599, 111
        %v2631 = vpop.permute.xlu0 %2630
        %v2632 = vsel %vm2021, %v2617, %v2619
        %v2633 = vsel %vm2021, %v2621, %v2623
        %v2634 = vsel %vm2021, %v2625, %v2627
        %v2635 = vsel %vm2021, %v2629, %v2631
        %v2644 = vmul.f32 %v2600, %v2632
        %v2645 = vmul.f32 %v2601, %v2619
        %v2646 = vmul.f32 %v2602, %v2633
        %v2647 = vmul.f32 %v2603, %v2623
        %v2648 = vmul.f32 %v2604, %v2634
        %v2649 = vmul.f32 %v2605, %v2627
        %v2650 = vmul.f32 %v2606, %v2635
        %v2651 = vmul.f32 %v2607, %v2631
        %2656 = vrot.lane.b32.xlu0 %v2588, 17
        %v2657 = vpop.permute.xlu0 %2656
        %2658 = vrot.lane.b32.xlu0 %v2589, 17
        %v2659 = vpop.permute.xlu0 %2658
        %2660 = vrot.lane.b32.xlu0 %v2590, 17
        %v2661 = vpop.permute.xlu0 %2660
        %2662 = vrot.lane.b32.xlu0 %v2591, 17
        %v2663 = vpop.permute.xlu0 %2662
        %v2668 = vmul.f32 %v1766, %v2657
        %v2669 = vmul.f32 %v1767, %v2657
        %v2670 = vmul.f32 %v1768, %v2659
        %v2671 = vmul.f32 %v1769, %v2659
        %v2672 = vmul.f32 %v1770, %v2661
        %v2673 = vmul.f32 %v1771, %v2661
        %v2674 = vmul.f32 %v1772, %v2663
        %v2675 = vmul.f32 %v1773, %v2663
        %v2676 = vadd.f32 %v2644, %v2668
        %v2677 = vadd.f32 %v2645, %v2669
        %v2678 = vadd.f32 %v2646, %v2670
        %v2679 = vadd.f32 %v2647, %v2671
        %v2680 = vadd.f32 %v2648, %v2672
        %v2681 = vadd.f32 %v2649, %v2673
        %v2682 = vadd.f32 %v2650, %v2674
        %v2683 = vadd.f32 %v2651, %v2675
        %2692 = vrot.lane.b32.xlu0 %v2676, 111
        %v2693 = vpop.permute.xlu0 %2692
        %2694 = vrot.lane.b32.xlu0 %v2677, 111
        %v2695 = vpop.permute.xlu0 %2694
        %2696 = vrot.lane.b32.xlu0 %v2678, 111
        %v2697 = vpop.permute.xlu0 %2696
        %2698 = vrot.lane.b32.xlu0 %v2679, 111
        %v2699 = vpop.permute.xlu0 %2698
        %2700 = vrot.lane.b32.xlu0 %v2680, 111
        %v2701 = vpop.permute.xlu0 %2700
        %2702 = vrot.lane.b32.xlu0 %v2681, 111
        %v2703 = vpop.permute.xlu0 %2702
        %2704 = vrot.lane.b32.xlu0 %v2682, 111
        %v2705 = vpop.permute.xlu0 %2704
        %2706 = vrot.lane.b32.xlu0 %v2683, 111
        %v2707 = vpop.permute.xlu0 %2706
        %v2708 = vsel %vm2021, %v2693, %v2695
        %v2709 = vsel %vm2021, %v2697, %v2699
        %v2710 = vsel %vm2021, %v2701, %v2703
        %v2711 = vsel %vm2021, %v2705, %v2707
        %2716 = vst [vmem:[%s372] sm:$0xff] %v2708
        %2717 = vst [vmem:[%s372 + $0x8] sm:$0xff] %v2709
        %2718 = vst [vmem:[%s372 + $0x10] sm:$0xff] %v2710
        %2719 = vst [vmem:[%s372 + $0x18] sm:$0xff] %v2711
        %s2720 = sand.u32 %s210, 1
        %s2721 = scalar_lea.sflag [#allocation6], %s2720
        %s2722 = sand.u32 %s210, 1
        %s2723 = smul.addr %s2722, 32
        %s2724 = scalar_lea.vmem [#allocation10], %s2723
        // Predicated region
        $region61: #{tpu_custom_call.1} parent=47 // pred_check
          %p2725 = pneg %p220
        $region62: #{tpu_custom_call.1} parent=47 // pred_check_branch
          %2727 = sbr.rel (%p2725) target = $region64
        $region63: #{tpu_custom_call.1} parent=47 // pred_region
          %s2729 = ssub.s32 512, 512
          %2730 = vsyncadd %s2721, %s2729
          %s2731 = smul.addr %s31, 8
          %s2732 = sadd.s32 %s32, %s2731
          %s2733 = smul.addr %s2732, 128
          %s2734 = scalar_lea.hbm %s7, %s2733
          %s2735 = sshll.u32 %s2724, 4
          %s2736 = int_to_ptr.vmem [resolvable:$true] %s2735
          %2741 = dma.vmem_to_hbm [thread:$0]  %s2736, 512, %s2734, %s2721, 128, 256, 8
        $region64: #{tpu_custom_call.1} parent=47 // pred_fallthru
          _
      $region48: #{tpu_custom_call.1} parent=5 // pred_fallthru
        _
      %p2742 = scmp.le.s32.totalorder 2, %s22
      // Predicated region
      $region65: #{tpu_custom_call.1} parent=5 // pred_check
        %p2743 = pneg %p2742
      $region66: #{tpu_custom_call.1} parent=5 // pred_check_branch
        %2745 = sbr.rel (%p2743) target = $region68
      $region67: #{tpu_custom_call.1} parent=5 // pred_region
        %s2746 = ssub.s32 %s22, 2
        // Predicated region
        $region69: #{tpu_custom_call.1} parent=67 // pred_check
          %p2747 = pneg %p226
        $region70: #{tpu_custom_call.1} parent=67 // pred_check_branch
          %2749 = sbr.rel (%p2747) target = $region72
        $region71: #{tpu_custom_call.1} parent=67 // pred_region
          %s2750 = sand.u32 %s211, 1
          %s2751 = scalar_lea.sflag [#allocation6], %s2750
          %s2752 = sand.u32 %s211, 1
          %s2753 = smul.addr %s2752, 32
          %s2754 = scalar_lea.vmem [#allocation10], %s2753
          %2755 = dma.done %s2751, 512
        $region72: #{tpu_custom_call.1} parent=67 // pred_fallthru
          _
      $region68: #{tpu_custom_call.1} parent=5 // pred_fallthru
        _
    $region6: #{tpu_custom_call.1} parent=1 // loop_footer
      %s26 = sadd.s32 1, %s22
    $region7: #{tpu_custom_call.1} parent=1 // loop_footer_branch
      %21 = sbr.rel target = $region3
    $region8: #{tpu_custom_call.1} parent=1 // loop_exit
      _
    %2756 = vsyncpa [#allocation5], 1
    %s2757 = scalar_lea.sflag [#allocation5], 1
    %2758 = vsyncpa %s2757, 1
    %2759 = vsyncpa [#allocation8], 1
    %s2760 = scalar_lea.sflag [#allocation8], 1
    %2761 = vsyncpa %s2760, 1
    %2762 = vsyncpa [#allocation6], 1
    %s2763 = scalar_lea.sflag [#allocation6], 1
    %2764 = vsyncpa %s2763, 1

</llo_original>
